<compile_context>
chip_gen: v6e
topology: v6e:2x2x1
jax: 0.10.0
libtpu: 0.0.40
codegen_flags: <defaults>
</compile_context>

<pallas_src>
import jax
import jax.numpy as jnp
from jax.experimental import pallas as pl
from jax.experimental.pallas import tpu as pltpu


# ------------------------------ Fused kernel --------------------------------------

def _slot_rnn_kernel(tok_ref, table_ref,
                     wih0_ref, bias0i_ref,
                     whh_blk_ref, ghb_ref,
                     wih1_ref, bias1i_ref,
                     wlin_ref, blin_ref,
                     o_ref):
    """One batch-shard: (Bs, T) int32 token ids -> (Bs, T, C) log-probs (softmax over T)."""
    Bs, T = tok_ref.shape
    V = table_ref.shape[0]
    H3 = wih0_ref.shape[1]
    H = H3 // 3
    C = o_ref.shape[2]

    # Hoisted loads: read each weight/bias from VMEM once.
    table = table_ref[...]                     # (V, E)
    wih0 = wih0_ref[...]                       # (E, 3H)
    bias0i = bias0i_ref[...]                   # (1, 3H)  bih0 + [bhh0_rz, 0]
    whh_blk = whh_blk_ref[...]                 # (2H, 6H) block-diag(whh0.T, whh1.T)
    gh_bias = ghb_ref[...]                     # (1, 6H)  [0, bhh0_n, 0, bhh1_n]
    wih1 = wih1_ref[...]                       # (H, 3H)
    bias1i = bias1i_ref[...]                   # (1, 3H)  bih1 + [bhh1_rz, 0]

    # ---- Fused embedding gather: one-hot matmul (exact for integer ids) ----
    toks = tok_ref[...]                                                   # (Bs, T) i32
    iota_v = jax.lax.broadcasted_iota(jnp.int32, (Bs, T, V), 2)
    onehot = (toks[:, :, None] == iota_v).astype(jnp.float32)             # (Bs, T, V)
    onehot = onehot.reshape(Bs * T, V)
    emb = jnp.dot(onehot, table, preferred_element_type=jnp.float32)      # (Bs*T, E)

    # ---- Layer-0 input projection hoisted off the recurrence ----
    gi0_all = (jnp.dot(emb, wih0, preferred_element_type=jnp.float32)
               + bias0i).reshape(Bs, T, H3)                               # (Bs, T, 3H)

    h0 = jnp.zeros((Bs, H), jnp.float32)
    h1 = jnp.zeros((Bs, H), jnp.float32)
    outs = []
    # Fully-unrolled time loop (static trip count; fine at T=8 -- for large T
    # switch to lax.fori_loop with chunked unroll to bound vreg live ranges).
    for t in range(T):
        # One fused recurrent matmul for both layers (block-diag weights);
        # the n-slice bhh biases are folded into a single (1,6H) add.
        hcat = jnp.concatenate([h0, h1], axis=1)                          # (Bs, 2H)
        gh = jnp.dot(hcat, whh_blk, preferred_element_type=jnp.float32) + gh_bias

        # ---- Layer 0 (PyTorch GRU cell semantics) ----
        gi0 = gi0_all[:, t, :]
        gh0 = gh[:, :H3]
        rz0 = jax.nn.sigmoid(gi0[:, :2 * H] + gh0[:, :2 * H])             # one EUP slab
        n0 = jnp.tanh(gi0[:, 2 * H:] + rz0[:, :H] * gh0[:, 2 * H:])
        h0 = n0 + rz0[:, H:] * (h0 - n0)                                  # (1-z)n + z h

        # ---- Layer 1 ----
        gi1 = jnp.dot(h0, wih1, preferred_element_type=jnp.float32) + bias1i
        gh1 = gh[:, H3:]
        rz1 = jax.nn.sigmoid(gi1[:, :2 * H] + gh1[:, :2 * H])
        n1 = jnp.tanh(gi1[:, 2 * H:] + rz1[:, :H] * gh1[:, 2 * H:])
        h1 = n1 + rz1[:, H:] * (h1 - n1)
        outs.append(h1)

    # ---- Fused head: one (Bs*T, H) @ (H, C) matmul, log_softmax over T ----
    h_all = jnp.stack(outs, axis=1)                                       # (Bs, T, H)
    logits = (jnp.dot(h_all.reshape(Bs * T, H), wlin_ref[...],
                      preferred_element_type=jnp.float32) + blin_ref[...])
    logits = logits.reshape(Bs, T, C)
    m = jnp.max(logits, axis=1, keepdims=True)
    s = logits - m
    lse = jnp.log(jnp.sum(jnp.exp(s), axis=1, keepdims=True))
    o_ref[...] = s - lse


def slot_rnn_forward(tokens, kp, *, batch_shards=None):
    """tokens: (B, T) int32 -> (B, T, C) log-probs.  kp holds pre-fused weights."""
    B, T = tokens.shape
    C = kp["w_lin"].shape[1]

    if batch_shards is None:
        # Only shard the batch when each shard still fills the sublanes (Bs >= 8):
        # on single-TC v5e/v6e the grid is a sequential loop (sharding a tiny B
        # just halves MXU occupancy and doubles the serial T-loop), and on v7x
        # the 2-TC split only pays off once per-core work is big enough.
        batch_shards = 2 if (B % 2 == 0 and (B // 2) >= 8) else 1
    assert B % batch_shards == 0
    Bs = B // batch_shards

    def const_spec(arr):
        nd = arr.ndim
        return pl.BlockSpec(arr.shape, lambda i, _nd=nd: (0,) * _nd)

    grid_spec = pltpu.PrefetchScalarGridSpec(
        num_scalar_prefetch=0,
        grid=(batch_shards,),
        in_specs=[
            pl.BlockSpec((Bs, T), lambda i: (i, 0)),          # token ids
            const_spec(kp["table"]),
            const_spec(kp["wih0"]), const_spec(kp["bias0i"]),
            const_spec(kp["whh_blk"]), const_spec(kp["gh_bias"]),
            const_spec(kp["wih1"]), const_spec(kp["bias1i"]),
            const_spec(kp["w_lin"]), const_spec(kp["b_lin"]),
        ],
        # NOTE: C=10 (< 128 lanes) -> one masked store of the final block;
        # padding C to 128 would only pay off at much larger C.
        out_specs=pl.BlockSpec((Bs, T, C), lambda i: (i, 0, 0)),
    )
    return pl.pallas_call(
        _slot_rnn_kernel,
        out_shape=jax.ShapeDtypeStruct((B, T, C), jnp.float32),
        grid_spec=grid_spec,
        compiler_params=pltpu.CompilerParams(
            dimension_semantics=("parallel",)),
    )(tokens,
      kp["table"],
      kp["wih0"], kp["bias0i"],
      kp["whh_blk"], kp["gh_bias"],
      kp["wih1"], kp["bias1i"],
      kp["w_lin"], kp["b_lin"])


# -------------------------- Param prep (one-time fusion) ---------------------------

def prepare_kernel_params(p):
    """Pre-transpose / pre-fuse weights ONCE so the kernel's per-step work is minimal."""
    H = p["whh0"].shape[1]
    zH = jnp.zeros((1, H), jnp.float32)
    z2H = jnp.zeros((1, 2 * H), jnp.float32)
    zH3 = jnp.zeros((H, 3 * H), jnp.float32)

    # Block-diagonal recurrent weight: [h0, h1] @ whh_blk == [h0@whh0.T, h1@whh1.T]
    whh_blk = jnp.concatenate([
        jnp.concatenate([p["whh0"].T, zH3], axis=1),
        jnp.concatenate([zH3, p["whh1"].T], axis=1),
    ], axis=0)                                                   # (2H, 6H)

    # r/z bias halves pre-summed into the input-projection bias; n-slice bhh
    # biases go into one (1, 6H) add on the fused gh.
    bias0i = p["bih0"] + jnp.concatenate([p["bhh0"][:, :2 * H], zH], axis=1)
    bias1i = p["bih1"] + jnp.concatenate([p["bhh1"][:, :2 * H], zH], axis=1)
    gh_bias = jnp.concatenate(
        [z2H, p["bhh0"][:, 2 * H:], z2H, p["bhh1"][:, 2 * H:]], axis=1)   # (1, 6H)

    return {
        "table": p["embedding"],        # (V, E)
        "wih0": p["wih0"].T,            # (E, 3H)
        "bias0i": bias0i,               # (1, 3H)
        "whh_blk": whh_blk,             # (2H, 6H)
        "gh_bias": gh_bias,             # (1, 6H)
        "wih1": p["wih1"].T,            # (H, 3H)
        "bias1i": bias1i,               # (1, 3H)
        "w_lin": p["w_lin"].T,          # (H, C)
        "b_lin": p["b_lin"],            # (1, C)
    }


# -------------------------------- Reference (JAX) ----------------------------------

def _gru_ref_layer(x_bte, wih, whh, bih, bhh):
    B, T, _ = x_bte.shape
    H = whh.shape[1]
    h = jnp.zeros((B, H), jnp.float32)
    outs = []
    for t in range(T):
        gi = x_bte[:, t] @ wih.T + bih[0]
        gh = h @ whh.T + bhh[0]
        r = jax.nn.sigmoid(gi[:, :H] + gh[:, :H])
        z = jax.nn.sigmoid(gi[:, H:2 * H] + gh[:, H:2 * H])
        n = jnp.tanh(gi[:, 2 * H:] + r * gh[:, 2 * H:])
        h = (1.0 - z) * n + z * h
        outs.append(h)
    return jnp.stack(outs, axis=1)   # (B, T, H)


def slot_rnn_ref(tokens, p):
    emb = jnp.take(p["embedding"], tokens, axis=0)
    h1 = _gru_ref_layer(emb, p["wih0"], p["whh0"], p["bih0"], p["bhh0"])
    h2 = _gru_ref_layer(h1, p["wih1"], p["whh1"], p["bih1"], p["bhh1"])
    logits = h2 @ p["w_lin"].T + p["b_lin"][0]            # (B, T, C)
    return jax.nn.log_softmax(logits, axis=1)             # over T (torch dim=1)


# ------------------------------------ Main ------------------------------------------

if __name__ == "__main__":
    B, T = 2, 8          # batch, sequence length
    V, E = 20, 32        # vocab size, embedding dim
    H, C = 32, 10        # hidden size, n_classes

    key = jax.random.PRNGKey(0)
    keys = jax.random.split(key, 12)
    u = lambda k, shape, s: jax.random.uniform(k, shape, jnp.float32, -s, s)
    s = 1.0 / jnp.sqrt(H)

    params = {
        "embedding": jax.random.normal(keys[0], (V, E), jnp.float32),
        # GRU layer 0 (PyTorch orientation)
        "wih0": u(keys[1], (3 * H, E), s),
        "whh0": u(keys[2], (3 * H, H), s),
        "bih0": u(keys[3], (1, 3 * H), s),
        "bhh0": u(keys[4], (1, 3 * H), s),
        # GRU layer 1
        "wih1": u(keys[5], (3 * H, H), s),
        "whh1": u(keys[6], (3 * H, H), s),
        "bih1": u(keys[7], (1, 3 * H), s),
        "bhh1": u(keys[8], (1, 3 * H), s),
        # Linear head
        "w_lin": u(keys[9], (C, H), s),
        "b_lin": u(keys[10], (1, C), s),
    }

    tokens = jax.random.randint(keys[11], (B, T), 0, V, dtype=jnp.int32)

    kparams = prepare_kernel_params(params)

    out = jax.block_until_ready(slot_rnn_forward(tokens, kparams))
    ref = jax.block_until_ready(slot_rnn_ref(tokens, params))

    assert out.shape == (B, T, C), out.shape
    assert jnp.allclose(out, ref, atol=2e-5, rtol=2e-5), \
        f"max abs diff {jnp.max(jnp.abs(out - ref))}"
    print("KERNEL_OK")
</pallas_src>

<mosaic_0001>
module attributes {stable_mosaic.version = 11 : i64} {
  func.func @_slot_rnn_kernel(%arg0: i32, %arg1: memref<2x8xi32, #tpu.memory_space<vmem>>, %arg2: memref<20x32xf32, #tpu.memory_space<vmem>>, %arg3: memref<32x96xf32, #tpu.memory_space<vmem>>, %arg4: memref<1x96xf32, #tpu.memory_space<vmem>>, %arg5: memref<64x192xf32, #tpu.memory_space<vmem>>, %arg6: memref<1x192xf32, #tpu.memory_space<vmem>>, %arg7: memref<32x96xf32, #tpu.memory_space<vmem>>, %arg8: memref<1x96xf32, #tpu.memory_space<vmem>>, %arg9: memref<32x10xf32, #tpu.memory_space<vmem>>, %arg10: memref<1x10xf32, #tpu.memory_space<vmem>>, %arg11: memref<2x8x10xf32, #tpu.memory_space<vmem>>) attributes {dimension_semantics = [#tpu.dimension_semantics<parallel>], iteration_bounds = array<i64: 1>, scalar_prefetch = 0 : i64, scratch_operands = 0 : i64, tpu.core_type = #tpu.core_type<tc>, window_params = [{transform_indices = @transform_0, window_bounds = array<i64: 2, 8>}, {pipeline_mode = #tpu.pipeline_mode<synchronous>, transform_indices = @transform_1, window_bounds = array<i64: 20, 32>}, {pipeline_mode = #tpu.pipeline_mode<synchronous>, transform_indices = @transform_2, window_bounds = array<i64: 32, 96>}, {pipeline_mode = #tpu.pipeline_mode<synchronous>, transform_indices = @transform_3, window_bounds = array<i64: 1, 96>}, {pipeline_mode = #tpu.pipeline_mode<synchronous>, transform_indices = @transform_4, window_bounds = array<i64: 64, 192>}, {pipeline_mode = #tpu.pipeline_mode<synchronous>, transform_indices = @transform_5, window_bounds = array<i64: 1, 192>}, {pipeline_mode = #tpu.pipeline_mode<synchronous>, transform_indices = @transform_6, window_bounds = array<i64: 32, 96>}, {pipeline_mode = #tpu.pipeline_mode<synchronous>, transform_indices = @transform_7, window_bounds = array<i64: 1, 96>}, {pipeline_mode = #tpu.pipeline_mode<synchronous>, transform_indices = @transform_8, window_bounds = array<i64: 32, 10>}, {pipeline_mode = #tpu.pipeline_mode<synchronous>, transform_indices = @transform_9, window_bounds = array<i64: 1, 10>}, {transform_indices = @transform_10, window_bounds = array<i64: 2, 8, 10>}]} {
    %c0 = arith.constant 0 : index
    %c0_0 = arith.constant 0 : index
    %0 = vector.load %arg2[%c0, %c0_0] : memref<20x32xf32, #tpu.memory_space<vmem>>, vector<20x32xf32>
    %c0_1 = arith.constant 0 : index
    %c0_2 = arith.constant 0 : index
    %1 = vector.load %arg3[%c0_1, %c0_2] : memref<32x96xf32, #tpu.memory_space<vmem>>, vector<32x96xf32>
    %c0_3 = arith.constant 0 : index
    %c0_4 = arith.constant 0 : index
    %2 = vector.load %arg4[%c0_3, %c0_4] : memref<1x96xf32, #tpu.memory_space<vmem>>, vector<1x96xf32>
    %c0_5 = arith.constant 0 : index
    %c0_6 = arith.constant 0 : index
    %3 = vector.load %arg5[%c0_5, %c0_6] : memref<64x192xf32, #tpu.memory_space<vmem>>, vector<64x192xf32>
    %c0_7 = arith.constant 0 : index
    %c0_8 = arith.constant 0 : index
    %4 = vector.load %arg6[%c0_7, %c0_8] : memref<1x192xf32, #tpu.memory_space<vmem>>, vector<1x192xf32>
    %c0_9 = arith.constant 0 : index
    %c0_10 = arith.constant 0 : index
    %5 = vector.load %arg7[%c0_9, %c0_10] : memref<32x96xf32, #tpu.memory_space<vmem>>, vector<32x96xf32>
    %c0_11 = arith.constant 0 : index
    %c0_12 = arith.constant 0 : index
    %6 = vector.load %arg8[%c0_11, %c0_12] : memref<1x96xf32, #tpu.memory_space<vmem>>, vector<1x96xf32>
    %c0_13 = arith.constant 0 : index
    %c0_14 = arith.constant 0 : index
    %7 = vector.load %arg1[%c0_13, %c0_14] : memref<2x8xi32, #tpu.memory_space<vmem>>, vector<2x8xi32>
    %8 = tpu.iota {dimensions = array<i32: 2>} : vector<2x8x20xi32>
    %9 = vector.shape_cast %7 : vector<2x8xi32> to vector<2x8x1xi32>
    %10 = vector.broadcast %9 : vector<2x8x1xi32> to vector<2x8x20xi32>
    %11 = arith.cmpi eq, %10, %8 : vector<2x8x20xi32>
    %12 = arith.extui %11 : vector<2x8x20xi1> to vector<2x8x20xi32>
    %13 = arith.sitofp %12 : vector<2x8x20xi32> to vector<2x8x20xf32>
    %14 = vector.shape_cast %13 : vector<2x8x20xf32> to vector<16x20xf32>
    %cst = arith.constant dense<0.000000e+00> : vector<16x32xf32>
    %15 = tpu.matmul %14, %0, %cst {dimension_numbers = #tpu.dot_dimension_numbers<[1], [0], [0], [1], [0, 0, 1, 1], [], []>} : vector<16x20xf32>, vector<20x32xf32>, vector<16x32xf32> -> vector<16x32xf32>
    %cst_15 = arith.constant dense<0.000000e+00> : vector<16x96xf32>
    %16 = tpu.matmul %15, %1, %cst_15 {dimension_numbers = #tpu.dot_dimension_numbers<[1], [0], [0], [1], [0, 0, 1, 1], [], []>} : vector<16x32xf32>, vector<32x96xf32>, vector<16x96xf32> -> vector<16x96xf32>
    %17 = vector.broadcast %2 : vector<1x96xf32> to vector<16x96xf32>
    %18 = arith.addf %16, %17 : vector<16x96xf32>
    %19 = vector.shape_cast %18 : vector<16x96xf32> to vector<2x8x96xf32>
    %cst_16 = arith.constant 0.000000e+00 : f32
    %20 = vector.broadcast %cst_16 : f32 to vector<2x32xf32>
    %cst_17 = arith.constant 0.000000e+00 : f32
    %21 = vector.broadcast %cst_17 : f32 to vector<2x32xf32>
    %22 = tpu.concatenate %20, %21 in 1 : vector<2x32xf32>, vector<2x32xf32> -> vector<2x64xf32>
    %cst_18 = arith.constant dense<0.000000e+00> : vector<2x192xf32>
    %23 = tpu.matmul %22, %3, %cst_18 {dimension_numbers = #tpu.dot_dimension_numbers<[1], [0], [0], [1], [0, 0, 1, 1], [], []>} : vector<2x64xf32>, vector<64x192xf32>, vector<2x192xf32> -> vector<2x192xf32>
    %24 = vector.broadcast %4 : vector<1x192xf32> to vector<2x192xf32>
    %25 = arith.addf %23, %24 : vector<2x192xf32>
    %26 = vector.extract_strided_slice %19 {offsets = [0, 0, 0], sizes = [2, 1, 96], strides = [1, 1, 1]} : vector<2x8x96xf32> to vector<2x1x96xf32>
    %27 = vector.shape_cast %26 : vector<2x1x96xf32> to vector<2x96xf32>
    %28 = vector.extract_strided_slice %25 {offsets = [0, 0], sizes = [2, 96], strides = [1, 1]} : vector<2x192xf32> to vector<2x96xf32>
    %29 = vector.extract_strided_slice %27 {offsets = [0, 0], sizes = [2, 64], strides = [1, 1]} : vector<2x96xf32> to vector<2x64xf32>
    %30 = vector.extract_strided_slice %28 {offsets = [0, 0], sizes = [2, 64], strides = [1, 1]} : vector<2x96xf32> to vector<2x64xf32>
    %31 = arith.addf %29, %30 : vector<2x64xf32>
    %32 = arith.negf %31 : vector<2x64xf32>
    %33 = math.exp %32 : vector<2x64xf32>
    %cst_19 = arith.constant 1.000000e+00 : f32
    %34 = vector.broadcast %cst_19 : f32 to vector<2x64xf32>
    %35 = arith.addf %34, %33 : vector<2x64xf32>
    %36 = arith.divf %34, %35 : vector<2x64xf32>
    %37 = vector.extract_strided_slice %27 {offsets = [0, 64], sizes = [2, 32], strides = [1, 1]} : vector<2x96xf32> to vector<2x32xf32>
    %38 = vector.extract_strided_slice %36 {offsets = [0, 0], sizes = [2, 32], strides = [1, 1]} : vector<2x64xf32> to vector<2x32xf32>
    %39 = vector.extract_strided_slice %28 {offsets = [0, 64], sizes = [2, 32], strides = [1, 1]} : vector<2x96xf32> to vector<2x32xf32>
    %40 = arith.mulf %38, %39 : vector<2x32xf32>
    %41 = arith.addf %37, %40 : vector<2x32xf32>
    %42 = math.tanh %41 : vector<2x32xf32>
    %43 = vector.extract_strided_slice %36 {offsets = [0, 32], sizes = [2, 32], strides = [1, 1]} : vector<2x64xf32> to vector<2x32xf32>
    %44 = arith.subf %20, %42 : vector<2x32xf32>
    %45 = arith.mulf %43, %44 : vector<2x32xf32>
    %46 = arith.addf %42, %45 : vector<2x32xf32>
    %cst_20 = arith.constant dense<0.000000e+00> : vector<2x96xf32>
    %47 = tpu.matmul %46, %5, %cst_20 {dimension_numbers = #tpu.dot_dimension_numbers<[1], [0], [0], [1], [0, 0, 1, 1], [], []>} : vector<2x32xf32>, vector<32x96xf32>, vector<2x96xf32> -> vector<2x96xf32>
    %48 = vector.broadcast %6 : vector<1x96xf32> to vector<2x96xf32>
    %49 = arith.addf %47, %48 : vector<2x96xf32>
    %50 = vector.extract_strided_slice %25 {offsets = [0, 96], sizes = [2, 96], strides = [1, 1]} : vector<2x192xf32> to vector<2x96xf32>
    %51 = vector.extract_strided_slice %49 {offsets = [0, 0], sizes = [2, 64], strides = [1, 1]} : vector<2x96xf32> to vector<2x64xf32>
    %52 = vector.extract_strided_slice %50 {offsets = [0, 0], sizes = [2, 64], strides = [1, 1]} : vector<2x96xf32> to vector<2x64xf32>
    %53 = arith.addf %51, %52 : vector<2x64xf32>
    %54 = arith.negf %53 : vector<2x64xf32>
    %55 = math.exp %54 : vector<2x64xf32>
    %cst_21 = arith.constant 1.000000e+00 : f32
    %56 = vector.broadcast %cst_21 : f32 to vector<2x64xf32>
    %57 = arith.addf %56, %55 : vector<2x64xf32>
    %58 = arith.divf %56, %57 : vector<2x64xf32>
    %59 = vector.extract_strided_slice %49 {offsets = [0, 64], sizes = [2, 32], strides = [1, 1]} : vector<2x96xf32> to vector<2x32xf32>
    %60 = vector.extract_strided_slice %58 {offsets = [0, 0], sizes = [2, 32], strides = [1, 1]} : vector<2x64xf32> to vector<2x32xf32>
    %61 = vector.extract_strided_slice %50 {offsets = [0, 64], sizes = [2, 32], strides = [1, 1]} : vector<2x96xf32> to vector<2x32xf32>
    %62 = arith.mulf %60, %61 : vector<2x32xf32>
    %63 = arith.addf %59, %62 : vector<2x32xf32>
    %64 = math.tanh %63 : vector<2x32xf32>
    %65 = vector.extract_strided_slice %58 {offsets = [0, 32], sizes = [2, 32], strides = [1, 1]} : vector<2x64xf32> to vector<2x32xf32>
    %66 = arith.subf %21, %64 : vector<2x32xf32>
    %67 = arith.mulf %65, %66 : vector<2x32xf32>
    %68 = arith.addf %64, %67 : vector<2x32xf32>
    %69 = tpu.concatenate %46, %68 in 1 : vector<2x32xf32>, vector<2x32xf32> -> vector<2x64xf32>
    %cst_22 = arith.constant dense<0.000000e+00> : vector<2x192xf32>
    %70 = tpu.matmul %69, %3, %cst_22 {dimension_numbers = #tpu.dot_dimension_numbers<[1], [0], [0], [1], [0, 0, 1, 1], [], []>} : vector<2x64xf32>, vector<64x192xf32>, vector<2x192xf32> -> vector<2x192xf32>
    %71 = vector.broadcast %4 : vector<1x192xf32> to vector<2x192xf32>
    %72 = arith.addf %70, %71 : vector<2x192xf32>
    %73 = vector.extract_strided_slice %19 {offsets = [0, 1, 0], sizes = [2, 1, 96], strides = [1, 1, 1]} : vector<2x8x96xf32> to vector<2x1x96xf32>
    %74 = vector.shape_cast %73 : vector<2x1x96xf32> to vector<2x96xf32>
    %75 = vector.extract_strided_slice %72 {offsets = [0, 0], sizes = [2, 96], strides = [1, 1]} : vector<2x192xf32> to vector<2x96xf32>
    %76 = vector.extract_strided_slice %74 {offsets = [0, 0], sizes = [2, 64], strides = [1, 1]} : vector<2x96xf32> to vector<2x64xf32>
    %77 = vector.extract_strided_slice %75 {offsets = [0, 0], sizes = [2, 64], strides = [1, 1]} : vector<2x96xf32> to vector<2x64xf32>
    %78 = arith.addf %76, %77 : vector<2x64xf32>
    %79 = arith.negf %78 : vector<2x64xf32>
    %80 = math.exp %79 : vector<2x64xf32>
    %cst_23 = arith.constant 1.000000e+00 : f32
    %81 = vector.broadcast %cst_23 : f32 to vector<2x64xf32>
    %82 = arith.addf %81, %80 : vector<2x64xf32>
    %83 = arith.divf %81, %82 : vector<2x64xf32>
    %84 = vector.extract_strided_slice %74 {offsets = [0, 64], sizes = [2, 32], strides = [1, 1]} : vector<2x96xf32> to vector<2x32xf32>
    %85 = vector.extract_strided_slice %83 {offsets = [0, 0], sizes = [2, 32], strides = [1, 1]} : vector<2x64xf32> to vector<2x32xf32>
    %86 = vector.extract_strided_slice %75 {offsets = [0, 64], sizes = [2, 32], strides = [1, 1]} : vector<2x96xf32> to vector<2x32xf32>
    %87 = arith.mulf %85, %86 : vector<2x32xf32>
    %88 = arith.addf %84, %87 : vector<2x32xf32>
    %89 = math.tanh %88 : vector<2x32xf32>
    %90 = vector.extract_strided_slice %83 {offsets = [0, 32], sizes = [2, 32], strides = [1, 1]} : vector<2x64xf32> to vector<2x32xf32>
    %91 = arith.subf %46, %89 : vector<2x32xf32>
    %92 = arith.mulf %90, %91 : vector<2x32xf32>
    %93 = arith.addf %89, %92 : vector<2x32xf32>
    %cst_24 = arith.constant dense<0.000000e+00> : vector<2x96xf32>
    %94 = tpu.matmul %93, %5, %cst_24 {dimension_numbers = #tpu.dot_dimension_numbers<[1], [0], [0], [1], [0, 0, 1, 1], [], []>} : vector<2x32xf32>, vector<32x96xf32>, vector<2x96xf32> -> vector<2x96xf32>
    %95 = vector.broadcast %6 : vector<1x96xf32> to vector<2x96xf32>
    %96 = arith.addf %94, %95 : vector<2x96xf32>
    %97 = vector.extract_strided_slice %72 {offsets = [0, 96], sizes = [2, 96], strides = [1, 1]} : vector<2x192xf32> to vector<2x96xf32>
    %98 = vector.extract_strided_slice %96 {offsets = [0, 0], sizes = [2, 64], strides = [1, 1]} : vector<2x96xf32> to vector<2x64xf32>
    %99 = vector.extract_strided_slice %97 {offsets = [0, 0], sizes = [2, 64], strides = [1, 1]} : vector<2x96xf32> to vector<2x64xf32>
    %100 = arith.addf %98, %99 : vector<2x64xf32>
    %101 = arith.negf %100 : vector<2x64xf32>
    %102 = math.exp %101 : vector<2x64xf32>
    %cst_25 = arith.constant 1.000000e+00 : f32
    %103 = vector.broadcast %cst_25 : f32 to vector<2x64xf32>
    %104 = arith.addf %103, %102 : vector<2x64xf32>
    %105 = arith.divf %103, %104 : vector<2x64xf32>
    %106 = vector.extract_strided_slice %96 {offsets = [0, 64], sizes = [2, 32], strides = [1, 1]} : vector<2x96xf32> to vector<2x32xf32>
    %107 = vector.extract_strided_slice %105 {offsets = [0, 0], sizes = [2, 32], strides = [1, 1]} : vector<2x64xf32> to vector<2x32xf32>
    %108 = vector.extract_strided_slice %97 {offsets = [0, 64], sizes = [2, 32], strides = [1, 1]} : vector<2x96xf32> to vector<2x32xf32>
    %109 = arith.mulf %107, %108 : vector<2x32xf32>
    %110 = arith.addf %106, %109 : vector<2x32xf32>
    %111 = math.tanh %110 : vector<2x32xf32>
    %112 = vector.extract_strided_slice %105 {offsets = [0, 32], sizes = [2, 32], strides = [1, 1]} : vector<2x64xf32> to vector<2x32xf32>
    %113 = arith.subf %68, %111 : vector<2x32xf32>
    %114 = arith.mulf %112, %113 : vector<2x32xf32>
    %115 = arith.addf %111, %114 : vector<2x32xf32>
    %116 = tpu.concatenate %93, %115 in 1 : vector<2x32xf32>, vector<2x32xf32> -> vector<2x64xf32>
    %cst_26 = arith.constant dense<0.000000e+00> : vector<2x192xf32>
    %117 = tpu.matmul %116, %3, %cst_26 {dimension_numbers = #tpu.dot_dimension_numbers<[1], [0], [0], [1], [0, 0, 1, 1], [], []>} : vector<2x64xf32>, vector<64x192xf32>, vector<2x192xf32> -> vector<2x192xf32>
    %118 = vector.broadcast %4 : vector<1x192xf32> to vector<2x192xf32>
    %119 = arith.addf %117, %118 : vector<2x192xf32>
    %120 = vector.extract_strided_slice %19 {offsets = [0, 2, 0], sizes = [2, 1, 96], strides = [1, 1, 1]} : vector<2x8x96xf32> to vector<2x1x96xf32>
    %121 = vector.shape_cast %120 : vector<2x1x96xf32> to vector<2x96xf32>
    %122 = vector.extract_strided_slice %119 {offsets = [0, 0], sizes = [2, 96], strides = [1, 1]} : vector<2x192xf32> to vector<2x96xf32>
    %123 = vector.extract_strided_slice %121 {offsets = [0, 0], sizes = [2, 64], strides = [1, 1]} : vector<2x96xf32> to vector<2x64xf32>
    %124 = vector.extract_strided_slice %122 {offsets = [0, 0], sizes = [2, 64], strides = [1, 1]} : vector<2x96xf32> to vector<2x64xf32>
    %125 = arith.addf %123, %124 : vector<2x64xf32>
    %126 = arith.negf %125 : vector<2x64xf32>
    %127 = math.exp %126 : vector<2x64xf32>
    %cst_27 = arith.constant 1.000000e+00 : f32
    %128 = vector.broadcast %cst_27 : f32 to vector<2x64xf32>
    %129 = arith.addf %128, %127 : vector<2x64xf32>
    %130 = arith.divf %128, %129 : vector<2x64xf32>
    %131 = vector.extract_strided_slice %121 {offsets = [0, 64], sizes = [2, 32], strides = [1, 1]} : vector<2x96xf32> to vector<2x32xf32>
    %132 = vector.extract_strided_slice %130 {offsets = [0, 0], sizes = [2, 32], strides = [1, 1]} : vector<2x64xf32> to vector<2x32xf32>
    %133 = vector.extract_strided_slice %122 {offsets = [0, 64], sizes = [2, 32], strides = [1, 1]} : vector<2x96xf32> to vector<2x32xf32>
    %134 = arith.mulf %132, %133 : vector<2x32xf32>
    %135 = arith.addf %131, %134 : vector<2x32xf32>
    %136 = math.tanh %135 : vector<2x32xf32>
    %137 = vector.extract_strided_slice %130 {offsets = [0, 32], sizes = [2, 32], strides = [1, 1]} : vector<2x64xf32> to vector<2x32xf32>
    %138 = arith.subf %93, %136 : vector<2x32xf32>
    %139 = arith.mulf %137, %138 : vector<2x32xf32>
    %140 = arith.addf %136, %139 : vector<2x32xf32>
    %cst_28 = arith.constant dense<0.000000e+00> : vector<2x96xf32>
    %141 = tpu.matmul %140, %5, %cst_28 {dimension_numbers = #tpu.dot_dimension_numbers<[1], [0], [0], [1], [0, 0, 1, 1], [], []>} : vector<2x32xf32>, vector<32x96xf32>, vector<2x96xf32> -> vector<2x96xf32>
    %142 = vector.broadcast %6 : vector<1x96xf32> to vector<2x96xf32>
    %143 = arith.addf %141, %142 : vector<2x96xf32>
    %144 = vector.extract_strided_slice %119 {offsets = [0, 96], sizes = [2, 96], strides = [1, 1]} : vector<2x192xf32> to vector<2x96xf32>
    %145 = vector.extract_strided_slice %143 {offsets = [0, 0], sizes = [2, 64], strides = [1, 1]} : vector<2x96xf32> to vector<2x64xf32>
    %146 = vector.extract_strided_slice %144 {offsets = [0, 0], sizes = [2, 64], strides = [1, 1]} : vector<2x96xf32> to vector<2x64xf32>
    %147 = arith.addf %145, %146 : vector<2x64xf32>
    %148 = arith.negf %147 : vector<2x64xf32>
    %149 = math.exp %148 : vector<2x64xf32>
    %cst_29 = arith.constant 1.000000e+00 : f32
    %150 = vector.broadcast %cst_29 : f32 to vector<2x64xf32>
    %151 = arith.addf %150, %149 : vector<2x64xf32>
    %152 = arith.divf %150, %151 : vector<2x64xf32>
    %153 = vector.extract_strided_slice %143 {offsets = [0, 64], sizes = [2, 32], strides = [1, 1]} : vector<2x96xf32> to vector<2x32xf32>
    %154 = vector.extract_strided_slice %152 {offsets = [0, 0], sizes = [2, 32], strides = [1, 1]} : vector<2x64xf32> to vector<2x32xf32>
    %155 = vector.extract_strided_slice %144 {offsets = [0, 64], sizes = [2, 32], strides = [1, 1]} : vector<2x96xf32> to vector<2x32xf32>
    %156 = arith.mulf %154, %155 : vector<2x32xf32>
    %157 = arith.addf %153, %156 : vector<2x32xf32>
    %158 = math.tanh %157 : vector<2x32xf32>
    %159 = vector.extract_strided_slice %152 {offsets = [0, 32], sizes = [2, 32], strides = [1, 1]} : vector<2x64xf32> to vector<2x32xf32>
    %160 = arith.subf %115, %158 : vector<2x32xf32>
    %161 = arith.mulf %159, %160 : vector<2x32xf32>
    %162 = arith.addf %158, %161 : vector<2x32xf32>
    %163 = tpu.concatenate %140, %162 in 1 : vector<2x32xf32>, vector<2x32xf32> -> vector<2x64xf32>
    %cst_30 = arith.constant dense<0.000000e+00> : vector<2x192xf32>
    %164 = tpu.matmul %163, %3, %cst_30 {dimension_numbers = #tpu.dot_dimension_numbers<[1], [0], [0], [1], [0, 0, 1, 1], [], []>} : vector<2x64xf32>, vector<64x192xf32>, vector<2x192xf32> -> vector<2x192xf32>
    %165 = vector.broadcast %4 : vector<1x192xf32> to vector<2x192xf32>
    %166 = arith.addf %164, %165 : vector<2x192xf32>
    %167 = vector.extract_strided_slice %19 {offsets = [0, 3, 0], sizes = [2, 1, 96], strides = [1, 1, 1]} : vector<2x8x96xf32> to vector<2x1x96xf32>
    %168 = vector.shape_cast %167 : vector<2x1x96xf32> to vector<2x96xf32>
    %169 = vector.extract_strided_slice %166 {offsets = [0, 0], sizes = [2, 96], strides = [1, 1]} : vector<2x192xf32> to vector<2x96xf32>
    %170 = vector.extract_strided_slice %168 {offsets = [0, 0], sizes = [2, 64], strides = [1, 1]} : vector<2x96xf32> to vector<2x64xf32>
    %171 = vector.extract_strided_slice %169 {offsets = [0, 0], sizes = [2, 64], strides = [1, 1]} : vector<2x96xf32> to vector<2x64xf32>
    %172 = arith.addf %170, %171 : vector<2x64xf32>
    %173 = arith.negf %172 : vector<2x64xf32>
    %174 = math.exp %173 : vector<2x64xf32>
    %cst_31 = arith.constant 1.000000e+00 : f32
    %175 = vector.broadcast %cst_31 : f32 to vector<2x64xf32>
    %176 = arith.addf %175, %174 : vector<2x64xf32>
    %177 = arith.divf %175, %176 : vector<2x64xf32>
    %178 = vector.extract_strided_slice %168 {offsets = [0, 64], sizes = [2, 32], strides = [1, 1]} : vector<2x96xf32> to vector<2x32xf32>
    %179 = vector.extract_strided_slice %177 {offsets = [0, 0], sizes = [2, 32], strides = [1, 1]} : vector<2x64xf32> to vector<2x32xf32>
    %180 = vector.extract_strided_slice %169 {offsets = [0, 64], sizes = [2, 32], strides = [1, 1]} : vector<2x96xf32> to vector<2x32xf32>
    %181 = arith.mulf %179, %180 : vector<2x32xf32>
    %182 = arith.addf %178, %181 : vector<2x32xf32>
    %183 = math.tanh %182 : vector<2x32xf32>
    %184 = vector.extract_strided_slice %177 {offsets = [0, 32], sizes = [2, 32], strides = [1, 1]} : vector<2x64xf32> to vector<2x32xf32>
    %185 = arith.subf %140, %183 : vector<2x32xf32>
    %186 = arith.mulf %184, %185 : vector<2x32xf32>
    %187 = arith.addf %183, %186 : vector<2x32xf32>
    %cst_32 = arith.constant dense<0.000000e+00> : vector<2x96xf32>
    %188 = tpu.matmul %187, %5, %cst_32 {dimension_numbers = #tpu.dot_dimension_numbers<[1], [0], [0], [1], [0, 0, 1, 1], [], []>} : vector<2x32xf32>, vector<32x96xf32>, vector<2x96xf32> -> vector<2x96xf32>
    %189 = vector.broadcast %6 : vector<1x96xf32> to vector<2x96xf32>
    %190 = arith.addf %188, %189 : vector<2x96xf32>
    %191 = vector.extract_strided_slice %166 {offsets = [0, 96], sizes = [2, 96], strides = [1, 1]} : vector<2x192xf32> to vector<2x96xf32>
    %192 = vector.extract_strided_slice %190 {offsets = [0, 0], sizes = [2, 64], strides = [1, 1]} : vector<2x96xf32> to vector<2x64xf32>
    %193 = vector.extract_strided_slice %191 {offsets = [0, 0], sizes = [2, 64], strides = [1, 1]} : vector<2x96xf32> to vector<2x64xf32>
    %194 = arith.addf %192, %193 : vector<2x64xf32>
    %195 = arith.negf %194 : vector<2x64xf32>
    %196 = math.exp %195 : vector<2x64xf32>
    %cst_33 = arith.constant 1.000000e+00 : f32
    %197 = vector.broadcast %cst_33 : f32 to vector<2x64xf32>
    %198 = arith.addf %197, %196 : vector<2x64xf32>
    %199 = arith.divf %197, %198 : vector<2x64xf32>
    %200 = vector.extract_strided_slice %190 {offsets = [0, 64], sizes = [2, 32], strides = [1, 1]} : vector<2x96xf32> to vector<2x32xf32>
    %201 = vector.extract_strided_slice %199 {offsets = [0, 0], sizes = [2, 32], strides = [1, 1]} : vector<2x64xf32> to vector<2x32xf32>
    %202 = vector.extract_strided_slice %191 {offsets = [0, 64], sizes = [2, 32], strides = [1, 1]} : vector<2x96xf32> to vector<2x32xf32>
    %203 = arith.mulf %201, %202 : vector<2x32xf32>
    %204 = arith.addf %200, %203 : vector<2x32xf32>
    %205 = math.tanh %204 : vector<2x32xf32>
    %206 = vector.extract_strided_slice %199 {offsets = [0, 32], sizes = [2, 32], strides = [1, 1]} : vector<2x64xf32> to vector<2x32xf32>
    %207 = arith.subf %162, %205 : vector<2x32xf32>
    %208 = arith.mulf %206, %207 : vector<2x32xf32>
    %209 = arith.addf %205, %208 : vector<2x32xf32>
    %210 = tpu.concatenate %187, %209 in 1 : vector<2x32xf32>, vector<2x32xf32> -> vector<2x64xf32>
    %cst_34 = arith.constant dense<0.000000e+00> : vector<2x192xf32>
    %211 = tpu.matmul %210, %3, %cst_34 {dimension_numbers = #tpu.dot_dimension_numbers<[1], [0], [0], [1], [0, 0, 1, 1], [], []>} : vector<2x64xf32>, vector<64x192xf32>, vector<2x192xf32> -> vector<2x192xf32>
    %212 = vector.broadcast %4 : vector<1x192xf32> to vector<2x192xf32>
    %213 = arith.addf %211, %212 : vector<2x192xf32>
    %214 = vector.extract_strided_slice %19 {offsets = [0, 4, 0], sizes = [2, 1, 96], strides = [1, 1, 1]} : vector<2x8x96xf32> to vector<2x1x96xf32>
    %215 = vector.shape_cast %214 : vector<2x1x96xf32> to vector<2x96xf32>
    %216 = vector.extract_strided_slice %213 {offsets = [0, 0], sizes = [2, 96], strides = [1, 1]} : vector<2x192xf32> to vector<2x96xf32>
    %217 = vector.extract_strided_slice %215 {offsets = [0, 0], sizes = [2, 64], strides = [1, 1]} : vector<2x96xf32> to vector<2x64xf32>
    %218 = vector.extract_strided_slice %216 {offsets = [0, 0], sizes = [2, 64], strides = [1, 1]} : vector<2x96xf32> to vector<2x64xf32>
    %219 = arith.addf %217, %218 : vector<2x64xf32>
    %220 = arith.negf %219 : vector<2x64xf32>
    %221 = math.exp %220 : vector<2x64xf32>
    %cst_35 = arith.constant 1.000000e+00 : f32
    %222 = vector.broadcast %cst_35 : f32 to vector<2x64xf32>
    %223 = arith.addf %222, %221 : vector<2x64xf32>
    %224 = arith.divf %222, %223 : vector<2x64xf32>
    %225 = vector.extract_strided_slice %215 {offsets = [0, 64], sizes = [2, 32], strides = [1, 1]} : vector<2x96xf32> to vector<2x32xf32>
    %226 = vector.extract_strided_slice %224 {offsets = [0, 0], sizes = [2, 32], strides = [1, 1]} : vector<2x64xf32> to vector<2x32xf32>
    %227 = vector.extract_strided_slice %216 {offsets = [0, 64], sizes = [2, 32], strides = [1, 1]} : vector<2x96xf32> to vector<2x32xf32>
    %228 = arith.mulf %226, %227 : vector<2x32xf32>
    %229 = arith.addf %225, %228 : vector<2x32xf32>
    %230 = math.tanh %229 : vector<2x32xf32>
    %231 = vector.extract_strided_slice %224 {offsets = [0, 32], sizes = [2, 32], strides = [1, 1]} : vector<2x64xf32> to vector<2x32xf32>
    %232 = arith.subf %187, %230 : vector<2x32xf32>
    %233 = arith.mulf %231, %232 : vector<2x32xf32>
    %234 = arith.addf %230, %233 : vector<2x32xf32>
    %cst_36 = arith.constant dense<0.000000e+00> : vector<2x96xf32>
    %235 = tpu.matmul %234, %5, %cst_36 {dimension_numbers = #tpu.dot_dimension_numbers<[1], [0], [0], [1], [0, 0, 1, 1], [], []>} : vector<2x32xf32>, vector<32x96xf32>, vector<2x96xf32> -> vector<2x96xf32>
    %236 = vector.broadcast %6 : vector<1x96xf32> to vector<2x96xf32>
    %237 = arith.addf %235, %236 : vector<2x96xf32>
    %238 = vector.extract_strided_slice %213 {offsets = [0, 96], sizes = [2, 96], strides = [1, 1]} : vector<2x192xf32> to vector<2x96xf32>
    %239 = vector.extract_strided_slice %237 {offsets = [0, 0], sizes = [2, 64], strides = [1, 1]} : vector<2x96xf32> to vector<2x64xf32>
    %240 = vector.extract_strided_slice %238 {offsets = [0, 0], sizes = [2, 64], strides = [1, 1]} : vector<2x96xf32> to vector<2x64xf32>
    %241 = arith.addf %239, %240 : vector<2x64xf32>
    %242 = arith.negf %241 : vector<2x64xf32>
    %243 = math.exp %242 : vector<2x64xf32>
    %cst_37 = arith.constant 1.000000e+00 : f32
    %244 = vector.broadcast %cst_37 : f32 to vector<2x64xf32>
    %245 = arith.addf %244, %243 : vector<2x64xf32>
    %246 = arith.divf %244, %245 : vector<2x64xf32>
    %247 = vector.extract_strided_slice %237 {offsets = [0, 64], sizes = [2, 32], strides = [1, 1]} : vector<2x96xf32> to vector<2x32xf32>
    %248 = vector.extract_strided_slice %246 {offsets = [0, 0], sizes = [2, 32], strides = [1, 1]} : vector<2x64xf32> to vector<2x32xf32>
    %249 = vector.extract_strided_slice %238 {offsets = [0, 64], sizes = [2, 32], strides = [1, 1]} : vector<2x96xf32> to vector<2x32xf32>
    %250 = arith.mulf %248, %249 : vector<2x32xf32>
    %251 = arith.addf %247, %250 : vector<2x32xf32>
    %252 = math.tanh %251 : vector<2x32xf32>
    %253 = vector.extract_strided_slice %246 {offsets = [0, 32], sizes = [2, 32], strides = [1, 1]} : vector<2x64xf32> to vector<2x32xf32>
    %254 = arith.subf %209, %252 : vector<2x32xf32>
    %255 = arith.mulf %253, %254 : vector<2x32xf32>
    %256 = arith.addf %252, %255 : vector<2x32xf32>
    %257 = tpu.concatenate %234, %256 in 1 : vector<2x32xf32>, vector<2x32xf32> -> vector<2x64xf32>
    %cst_38 = arith.constant dense<0.000000e+00> : vector<2x192xf32>
    %258 = tpu.matmul %257, %3, %cst_38 {dimension_numbers = #tpu.dot_dimension_numbers<[1], [0], [0], [1], [0, 0, 1, 1], [], []>} : vector<2x64xf32>, vector<64x192xf32>, vector<2x192xf32> -> vector<2x192xf32>
    %259 = vector.broadcast %4 : vector<1x192xf32> to vector<2x192xf32>
    %260 = arith.addf %258, %259 : vector<2x192xf32>
    %261 = vector.extract_strided_slice %19 {offsets = [0, 5, 0], sizes = [2, 1, 96], strides = [1, 1, 1]} : vector<2x8x96xf32> to vector<2x1x96xf32>
    %262 = vector.shape_cast %261 : vector<2x1x96xf32> to vector<2x96xf32>
    %263 = vector.extract_strided_slice %260 {offsets = [0, 0], sizes = [2, 96], strides = [1, 1]} : vector<2x192xf32> to vector<2x96xf32>
    %264 = vector.extract_strided_slice %262 {offsets = [0, 0], sizes = [2, 64], strides = [1, 1]} : vector<2x96xf32> to vector<2x64xf32>
    %265 = vector.extract_strided_slice %263 {offsets = [0, 0], sizes = [2, 64], strides = [1, 1]} : vector<2x96xf32> to vector<2x64xf32>
    %266 = arith.addf %264, %265 : vector<2x64xf32>
    %267 = arith.negf %266 : vector<2x64xf32>
    %268 = math.exp %267 : vector<2x64xf32>
    %cst_39 = arith.constant 1.000000e+00 : f32
    %269 = vector.broadcast %cst_39 : f32 to vector<2x64xf32>
    %270 = arith.addf %269, %268 : vector<2x64xf32>
    %271 = arith.divf %269, %270 : vector<2x64xf32>
    %272 = vector.extract_strided_slice %262 {offsets = [0, 64], sizes = [2, 32], strides = [1, 1]} : vector<2x96xf32> to vector<2x32xf32>
    %273 = vector.extract_strided_slice %271 {offsets = [0, 0], sizes = [2, 32], strides = [1, 1]} : vector<2x64xf32> to vector<2x32xf32>
    %274 = vector.extract_strided_slice %263 {offsets = [0, 64], sizes = [2, 32], strides = [1, 1]} : vector<2x96xf32> to vector<2x32xf32>
    %275 = arith.mulf %273, %274 : vector<2x32xf32>
    %276 = arith.addf %272, %275 : vector<2x32xf32>
    %277 = math.tanh %276 : vector<2x32xf32>
    %278 = vector.extract_strided_slice %271 {offsets = [0, 32], sizes = [2, 32], strides = [1, 1]} : vector<2x64xf32> to vector<2x32xf32>
    %279 = arith.subf %234, %277 : vector<2x32xf32>
    %280 = arith.mulf %278, %279 : vector<2x32xf32>
    %281 = arith.addf %277, %280 : vector<2x32xf32>
    %cst_40 = arith.constant dense<0.000000e+00> : vector<2x96xf32>
    %282 = tpu.matmul %281, %5, %cst_40 {dimension_numbers = #tpu.dot_dimension_numbers<[1], [0], [0], [1], [0, 0, 1, 1], [], []>} : vector<2x32xf32>, vector<32x96xf32>, vector<2x96xf32> -> vector<2x96xf32>
    %283 = vector.broadcast %6 : vector<1x96xf32> to vector<2x96xf32>
    %284 = arith.addf %282, %283 : vector<2x96xf32>
    %285 = vector.extract_strided_slice %260 {offsets = [0, 96], sizes = [2, 96], strides = [1, 1]} : vector<2x192xf32> to vector<2x96xf32>
    %286 = vector.extract_strided_slice %284 {offsets = [0, 0], sizes = [2, 64], strides = [1, 1]} : vector<2x96xf32> to vector<2x64xf32>
    %287 = vector.extract_strided_slice %285 {offsets = [0, 0], sizes = [2, 64], strides = [1, 1]} : vector<2x96xf32> to vector<2x64xf32>
    %288 = arith.addf %286, %287 : vector<2x64xf32>
    %289 = arith.negf %288 : vector<2x64xf32>
    %290 = math.exp %289 : vector<2x64xf32>
    %cst_41 = arith.constant 1.000000e+00 : f32
    %291 = vector.broadcast %cst_41 : f32 to vector<2x64xf32>
    %292 = arith.addf %291, %290 : vector<2x64xf32>
    %293 = arith.divf %291, %292 : vector<2x64xf32>
    %294 = vector.extract_strided_slice %284 {offsets = [0, 64], sizes = [2, 32], strides = [1, 1]} : vector<2x96xf32> to vector<2x32xf32>
    %295 = vector.extract_strided_slice %293 {offsets = [0, 0], sizes = [2, 32], strides = [1, 1]} : vector<2x64xf32> to vector<2x32xf32>
    %296 = vector.extract_strided_slice %285 {offsets = [0, 64], sizes = [2, 32], strides = [1, 1]} : vector<2x96xf32> to vector<2x32xf32>
    %297 = arith.mulf %295, %296 : vector<2x32xf32>
    %298 = arith.addf %294, %297 : vector<2x32xf32>
    %299 = math.tanh %298 : vector<2x32xf32>
    %300 = vector.extract_strided_slice %293 {offsets = [0, 32], sizes = [2, 32], strides = [1, 1]} : vector<2x64xf32> to vector<2x32xf32>
    %301 = arith.subf %256, %299 : vector<2x32xf32>
    %302 = arith.mulf %300, %301 : vector<2x32xf32>
    %303 = arith.addf %299, %302 : vector<2x32xf32>
    %304 = tpu.concatenate %281, %303 in 1 : vector<2x32xf32>, vector<2x32xf32> -> vector<2x64xf32>
    %cst_42 = arith.constant dense<0.000000e+00> : vector<2x192xf32>
    %305 = tpu.matmul %304, %3, %cst_42 {dimension_numbers = #tpu.dot_dimension_numbers<[1], [0], [0], [1], [0, 0, 1, 1], [], []>} : vector<2x64xf32>, vector<64x192xf32>, vector<2x192xf32> -> vector<2x192xf32>
    %306 = vector.broadcast %4 : vector<1x192xf32> to vector<2x192xf32>
    %307 = arith.addf %305, %306 : vector<2x192xf32>
    %308 = vector.extract_strided_slice %19 {offsets = [0, 6, 0], sizes = [2, 1, 96], strides = [1, 1, 1]} : vector<2x8x96xf32> to vector<2x1x96xf32>
    %309 = vector.shape_cast %308 : vector<2x1x96xf32> to vector<2x96xf32>
    %310 = vector.extract_strided_slice %307 {offsets = [0, 0], sizes = [2, 96], strides = [1, 1]} : vector<2x192xf32> to vector<2x96xf32>
    %311 = vector.extract_strided_slice %309 {offsets = [0, 0], sizes = [2, 64], strides = [1, 1]} : vector<2x96xf32> to vector<2x64xf32>
    %312 = vector.extract_strided_slice %310 {offsets = [0, 0], sizes = [2, 64], strides = [1, 1]} : vector<2x96xf32> to vector<2x64xf32>
    %313 = arith.addf %311, %312 : vector<2x64xf32>
    %314 = arith.negf %313 : vector<2x64xf32>
    %315 = math.exp %314 : vector<2x64xf32>
    %cst_43 = arith.constant 1.000000e+00 : f32
    %316 = vector.broadcast %cst_43 : f32 to vector<2x64xf32>
    %317 = arith.addf %316, %315 : vector<2x64xf32>
    %318 = arith.divf %316, %317 : vector<2x64xf32>
    %319 = vector.extract_strided_slice %309 {offsets = [0, 64], sizes = [2, 32], strides = [1, 1]} : vector<2x96xf32> to vector<2x32xf32>
    %320 = vector.extract_strided_slice %318 {offsets = [0, 0], sizes = [2, 32], strides = [1, 1]} : vector<2x64xf32> to vector<2x32xf32>
    %321 = vector.extract_strided_slice %310 {offsets = [0, 64], sizes = [2, 32], strides = [1, 1]} : vector<2x96xf32> to vector<2x32xf32>
    %322 = arith.mulf %320, %321 : vector<2x32xf32>
    %323 = arith.addf %319, %322 : vector<2x32xf32>
    %324 = math.tanh %323 : vector<2x32xf32>
    %325 = vector.extract_strided_slice %318 {offsets = [0, 32], sizes = [2, 32], strides = [1, 1]} : vector<2x64xf32> to vector<2x32xf32>
    %326 = arith.subf %281, %324 : vector<2x32xf32>
    %327 = arith.mulf %325, %326 : vector<2x32xf32>
    %328 = arith.addf %324, %327 : vector<2x32xf32>
    %cst_44 = arith.constant dense<0.000000e+00> : vector<2x96xf32>
    %329 = tpu.matmul %328, %5, %cst_44 {dimension_numbers = #tpu.dot_dimension_numbers<[1], [0], [0], [1], [0, 0, 1, 1], [], []>} : vector<2x32xf32>, vector<32x96xf32>, vector<2x96xf32> -> vector<2x96xf32>
    %330 = vector.broadcast %6 : vector<1x96xf32> to vector<2x96xf32>
    %331 = arith.addf %329, %330 : vector<2x96xf32>
    %332 = vector.extract_strided_slice %307 {offsets = [0, 96], sizes = [2, 96], strides = [1, 1]} : vector<2x192xf32> to vector<2x96xf32>
    %333 = vector.extract_strided_slice %331 {offsets = [0, 0], sizes = [2, 64], strides = [1, 1]} : vector<2x96xf32> to vector<2x64xf32>
    %334 = vector.extract_strided_slice %332 {offsets = [0, 0], sizes = [2, 64], strides = [1, 1]} : vector<2x96xf32> to vector<2x64xf32>
    %335 = arith.addf %333, %334 : vector<2x64xf32>
    %336 = arith.negf %335 : vector<2x64xf32>
    %337 = math.exp %336 : vector<2x64xf32>
    %cst_45 = arith.constant 1.000000e+00 : f32
    %338 = vector.broadcast %cst_45 : f32 to vector<2x64xf32>
    %339 = arith.addf %338, %337 : vector<2x64xf32>
    %340 = arith.divf %338, %339 : vector<2x64xf32>
    %341 = vector.extract_strided_slice %331 {offsets = [0, 64], sizes = [2, 32], strides = [1, 1]} : vector<2x96xf32> to vector<2x32xf32>
    %342 = vector.extract_strided_slice %340 {offsets = [0, 0], sizes = [2, 32], strides = [1, 1]} : vector<2x64xf32> to vector<2x32xf32>
    %343 = vector.extract_strided_slice %332 {offsets = [0, 64], sizes = [2, 32], strides = [1, 1]} : vector<2x96xf32> to vector<2x32xf32>
    %344 = arith.mulf %342, %343 : vector<2x32xf32>
    %345 = arith.addf %341, %344 : vector<2x32xf32>
    %346 = math.tanh %345 : vector<2x32xf32>
    %347 = vector.extract_strided_slice %340 {offsets = [0, 32], sizes = [2, 32], strides = [1, 1]} : vector<2x64xf32> to vector<2x32xf32>
    %348 = arith.subf %303, %346 : vector<2x32xf32>
    %349 = arith.mulf %347, %348 : vector<2x32xf32>
    %350 = arith.addf %346, %349 : vector<2x32xf32>
    %351 = tpu.concatenate %328, %350 in 1 : vector<2x32xf32>, vector<2x32xf32> -> vector<2x64xf32>
    %cst_46 = arith.constant dense<0.000000e+00> : vector<2x192xf32>
    %352 = tpu.matmul %351, %3, %cst_46 {dimension_numbers = #tpu.dot_dimension_numbers<[1], [0], [0], [1], [0, 0, 1, 1], [], []>} : vector<2x64xf32>, vector<64x192xf32>, vector<2x192xf32> -> vector<2x192xf32>
    %353 = vector.broadcast %4 : vector<1x192xf32> to vector<2x192xf32>
    %354 = arith.addf %352, %353 : vector<2x192xf32>
    %355 = vector.extract_strided_slice %19 {offsets = [0, 7, 0], sizes = [2, 1, 96], strides = [1, 1, 1]} : vector<2x8x96xf32> to vector<2x1x96xf32>
    %356 = vector.shape_cast %355 : vector<2x1x96xf32> to vector<2x96xf32>
    %357 = vector.extract_strided_slice %354 {offsets = [0, 0], sizes = [2, 96], strides = [1, 1]} : vector<2x192xf32> to vector<2x96xf32>
    %358 = vector.extract_strided_slice %356 {offsets = [0, 0], sizes = [2, 64], strides = [1, 1]} : vector<2x96xf32> to vector<2x64xf32>
    %359 = vector.extract_strided_slice %357 {offsets = [0, 0], sizes = [2, 64], strides = [1, 1]} : vector<2x96xf32> to vector<2x64xf32>
    %360 = arith.addf %358, %359 : vector<2x64xf32>
    %361 = arith.negf %360 : vector<2x64xf32>
    %362 = math.exp %361 : vector<2x64xf32>
    %cst_47 = arith.constant 1.000000e+00 : f32
    %363 = vector.broadcast %cst_47 : f32 to vector<2x64xf32>
    %364 = arith.addf %363, %362 : vector<2x64xf32>
    %365 = arith.divf %363, %364 : vector<2x64xf32>
    %366 = vector.extract_strided_slice %356 {offsets = [0, 64], sizes = [2, 32], strides = [1, 1]} : vector<2x96xf32> to vector<2x32xf32>
    %367 = vector.extract_strided_slice %365 {offsets = [0, 0], sizes = [2, 32], strides = [1, 1]} : vector<2x64xf32> to vector<2x32xf32>
    %368 = vector.extract_strided_slice %357 {offsets = [0, 64], sizes = [2, 32], strides = [1, 1]} : vector<2x96xf32> to vector<2x32xf32>
    %369 = arith.mulf %367, %368 : vector<2x32xf32>
    %370 = arith.addf %366, %369 : vector<2x32xf32>
    %371 = math.tanh %370 : vector<2x32xf32>
    %372 = vector.extract_strided_slice %365 {offsets = [0, 32], sizes = [2, 32], strides = [1, 1]} : vector<2x64xf32> to vector<2x32xf32>
    %373 = arith.subf %328, %371 : vector<2x32xf32>
    %374 = arith.mulf %372, %373 : vector<2x32xf32>
    %375 = arith.addf %371, %374 : vector<2x32xf32>
    %cst_48 = arith.constant dense<0.000000e+00> : vector<2x96xf32>
    %376 = tpu.matmul %375, %5, %cst_48 {dimension_numbers = #tpu.dot_dimension_numbers<[1], [0], [0], [1], [0, 0, 1, 1], [], []>} : vector<2x32xf32>, vector<32x96xf32>, vector<2x96xf32> -> vector<2x96xf32>
    %377 = vector.broadcast %6 : vector<1x96xf32> to vector<2x96xf32>
    %378 = arith.addf %376, %377 : vector<2x96xf32>
    %379 = vector.extract_strided_slice %354 {offsets = [0, 96], sizes = [2, 96], strides = [1, 1]} : vector<2x192xf32> to vector<2x96xf32>
    %380 = vector.extract_strided_slice %378 {offsets = [0, 0], sizes = [2, 64], strides = [1, 1]} : vector<2x96xf32> to vector<2x64xf32>
    %381 = vector.extract_strided_slice %379 {offsets = [0, 0], sizes = [2, 64], strides = [1, 1]} : vector<2x96xf32> to vector<2x64xf32>
    %382 = arith.addf %380, %381 : vector<2x64xf32>
    %383 = arith.negf %382 : vector<2x64xf32>
    %384 = math.exp %383 : vector<2x64xf32>
    %cst_49 = arith.constant 1.000000e+00 : f32
    %385 = vector.broadcast %cst_49 : f32 to vector<2x64xf32>
    %386 = arith.addf %385, %384 : vector<2x64xf32>
    %387 = arith.divf %385, %386 : vector<2x64xf32>
    %388 = vector.extract_strided_slice %378 {offsets = [0, 64], sizes = [2, 32], strides = [1, 1]} : vector<2x96xf32> to vector<2x32xf32>
    %389 = vector.extract_strided_slice %387 {offsets = [0, 0], sizes = [2, 32], strides = [1, 1]} : vector<2x64xf32> to vector<2x32xf32>
    %390 = vector.extract_strided_slice %379 {offsets = [0, 64], sizes = [2, 32], strides = [1, 1]} : vector<2x96xf32> to vector<2x32xf32>
    %391 = arith.mulf %389, %390 : vector<2x32xf32>
    %392 = arith.addf %388, %391 : vector<2x32xf32>
    %393 = math.tanh %392 : vector<2x32xf32>
    %394 = vector.extract_strided_slice %387 {offsets = [0, 32], sizes = [2, 32], strides = [1, 1]} : vector<2x64xf32> to vector<2x32xf32>
    %395 = arith.subf %350, %393 : vector<2x32xf32>
    %396 = arith.mulf %394, %395 : vector<2x32xf32>
    %397 = arith.addf %393, %396 : vector<2x32xf32>
    %398 = vector.shape_cast %68 : vector<2x32xf32> to vector<2x1x32xf32>
    %399 = vector.shape_cast %115 : vector<2x32xf32> to vector<2x1x32xf32>
    %400 = vector.shape_cast %162 : vector<2x32xf32> to vector<2x1x32xf32>
    %401 = vector.shape_cast %209 : vector<2x32xf32> to vector<2x1x32xf32>
    %402 = vector.shape_cast %256 : vector<2x32xf32> to vector<2x1x32xf32>
    %403 = vector.shape_cast %303 : vector<2x32xf32> to vector<2x1x32xf32>
    %404 = vector.shape_cast %350 : vector<2x32xf32> to vector<2x1x32xf32>
    %405 = vector.shape_cast %397 : vector<2x32xf32> to vector<2x1x32xf32>
    %406 = tpu.concatenate %398, %399, %400, %401, %402, %403, %404, %405 in 1 : vector<2x1x32xf32>, vector<2x1x32xf32>, vector<2x1x32xf32>, vector<2x1x32xf32>, vector<2x1x32xf32>, vector<2x1x32xf32>, vector<2x1x32xf32>, vector<2x1x32xf32> -> vector<2x8x32xf32>
    %407 = vector.shape_cast %406 : vector<2x8x32xf32> to vector<16x32xf32>
    %c0_50 = arith.constant 0 : index
    %c0_51 = arith.constant 0 : index
    %408 = vector.load %arg9[%c0_50, %c0_51] : memref<32x10xf32, #tpu.memory_space<vmem>>, vector<32x10xf32>
    %cst_52 = arith.constant dense<0.000000e+00> : vector<16x10xf32>
    %409 = tpu.matmul %407, %408, %cst_52 {dimension_numbers = #tpu.dot_dimension_numbers<[1], [0], [0], [1], [0, 0, 1, 1], [], []>} : vector<16x32xf32>, vector<32x10xf32>, vector<16x10xf32> -> vector<16x10xf32>
    %c0_53 = arith.constant 0 : index
    %c0_54 = arith.constant 0 : index
    %410 = vector.load %arg10[%c0_53, %c0_54] : memref<1x10xf32, #tpu.memory_space<vmem>>, vector<1x10xf32>
    %411 = vector.broadcast %410 : vector<1x10xf32> to vector<16x10xf32>
    %412 = arith.addf %409, %411 : vector<16x10xf32>
    %413 = vector.shape_cast %412 : vector<16x10xf32> to vector<2x8x10xf32>
    %cst_55 = arith.constant dense<0xFF800000> : vector<2x10xf32>
    %414 = vector.multi_reduction <maximumf>, %413, %cst_55 [1] : vector<2x8x10xf32> to vector<2x10xf32>
    %415 = vector.shape_cast %414 : vector<2x10xf32> to vector<2x1x10xf32>
    %416 = vector.broadcast %415 : vector<2x1x10xf32> to vector<2x8x10xf32>
    %417 = arith.subf %413, %416 : vector<2x8x10xf32>
    %418 = math.exp %417 : vector<2x8x10xf32>
    %cst_56 = arith.constant dense<0.000000e+00> : vector<2x10xf32>
    %419 = vector.multi_reduction <add>, %418, %cst_56 [1] : vector<2x8x10xf32> to vector<2x10xf32>
    %420 = vector.shape_cast %419 : vector<2x10xf32> to vector<2x1x10xf32>
    %421 = math.log %420 : vector<2x1x10xf32>
    %422 = vector.broadcast %421 : vector<2x1x10xf32> to vector<2x8x10xf32>
    %423 = arith.subf %417, %422 : vector<2x8x10xf32>
    %c0_57 = arith.constant 0 : index
    %c0_58 = arith.constant 0 : index
    %c0_59 = arith.constant 0 : index
    %424 = vector.load %arg11[%c0_57, %c0_58, %c0_59] : memref<2x8x10xf32, #tpu.memory_space<vmem>>, vector<2x8x10xf32>
    tpu.vector_store %arg11[%c0_57, %c0_58, %c0_59], %423 {strides = array<i32>} : memref<2x8x10xf32, #tpu.memory_space<vmem>>, vector<2x8x10xf32>,
    return
  }
  func.func @transform_0(%arg0: i32) -> (i32, i32) {
    %c0_i32 = arith.constant 0 : i32
    %c0_i32_0 = arith.constant 0 : i32
    return %arg0, %c0_i32 : i32, i32
  }
  func.func @transform_1(%arg0: i32) -> (i32, i32) {
    %c0_i32 = arith.constant 0 : i32
    %c0_i32_0 = arith.constant 0 : i32
    %c0_i32_1 = arith.constant 0 : i32
    return %c0_i32, %c0_i32_0 : i32, i32
  }
  func.func @transform_2(%arg0: i32) -> (i32, i32) {
    %c0_i32 = arith.constant 0 : i32
    %c0_i32_0 = arith.constant 0 : i32
    %c0_i32_1 = arith.constant 0 : i32
    return %c0_i32, %c0_i32_0 : i32, i32
  }
  func.func @transform_3(%arg0: i32) -> (i32, i32) {
    %c0_i32 = arith.constant 0 : i32
    %c0_i32_0 = arith.constant 0 : i32
    %c0_i32_1 = arith.constant 0 : i32
    return %c0_i32, %c0_i32_0 : i32, i32
  }
  func.func @transform_4(%arg0: i32) -> (i32, i32) {
    %c0_i32 = arith.constant 0 : i32
    %c0_i32_0 = arith.constant 0 : i32
    %c0_i32_1 = arith.constant 0 : i32
    return %c0_i32, %c0_i32_0 : i32, i32
  }
  func.func @transform_5(%arg0: i32) -> (i32, i32) {
    %c0_i32 = arith.constant 0 : i32
    %c0_i32_0 = arith.constant 0 : i32
    %c0_i32_1 = arith.constant 0 : i32
    return %c0_i32, %c0_i32_0 : i32, i32
  }
  func.func @transform_6(%arg0: i32) -> (i32, i32) {
    %c0_i32 = arith.constant 0 : i32
    %c0_i32_0 = arith.constant 0 : i32
    %c0_i32_1 = arith.constant 0 : i32
    return %c0_i32, %c0_i32_0 : i32, i32
  }
  func.func @transform_7(%arg0: i32) -> (i32, i32) {
    %c0_i32 = arith.constant 0 : i32
    %c0_i32_0 = arith.constant 0 : i32
    %c0_i32_1 = arith.constant 0 : i32
    return %c0_i32, %c0_i32_0 : i32, i32
  }
  func.func @transform_8(%arg0: i32) -> (i32, i32) {
    %c0_i32 = arith.constant 0 : i32
    %c0_i32_0 = arith.constant 0 : i32
    %c0_i32_1 = arith.constant 0 : i32
    return %c0_i32, %c0_i32_0 : i32, i32
  }
  func.func @transform_9(%arg0: i32) -> (i32, i32) {
    %c0_i32 = arith.constant 0 : i32
    %c0_i32_0 = arith.constant 0 : i32
    %c0_i32_1 = arith.constant 0 : i32
    return %c0_i32, %c0_i32_0 : i32, i32
  }
  func.func @transform_10(%arg0: i32) -> (i32, i32, i32) {
    %c0_i32 = arith.constant 0 : i32
    %c0_i32_0 = arith.constant 0 : i32
    %c0_i32_1 = arith.constant 0 : i32
    return %arg0, %c0_i32, %c0_i32_0 : i32, i32, i32
  }
}

</mosaic_0001>

<llo_original>
// kernel: tpu_custom_call.1
$region0: #{tpu_custom_call.1}
  #allocation0 [shape = 'u32[]', space=smem, size = 0x4, offset = 0x4, fixed_abs, tag = 'smem constant byte address 0x4 - core index']
  #allocation1 [shape = 'u32[144,128]{1,0:T(1,128)}', space=vmem, size = 0x12000, scoped, tag = 'internal scratch']
  %s0 = inlined_call_operand.vmem [shape: s32[2,8], index: 0, kind: input, shape index: {}]
  %s1 = inlined_call_operand.hbm [shape: f32[20,32], index: 1, kind: input, shape index: {}]
  %s2 = inlined_call_operand.vmem [shape: f32[32,96], index: 2, kind: input, shape index: {}]
  %s3 = inlined_call_operand.vmem [shape: f32[1,96], index: 3, kind: input, shape index: {}]
  %s4 = inlined_call_operand.hbm [shape: f32[64,192], index: 4, kind: input, shape index: {}]
  %s5 = inlined_call_operand.vmem [shape: f32[1,192], index: 5, kind: input, shape index: {}]
  %s6 = inlined_call_operand.hbm [shape: f32[32,96], index: 6, kind: input, shape index: {}]
  %s7 = inlined_call_operand.vmem [shape: f32[1,96], index: 7, kind: input, shape index: {}]
  %s8 = inlined_call_operand.vmem [shape: f32[32,10], index: 8, kind: input, shape index: {}]
  %s9 = inlined_call_operand.vmem [shape: f32[1,10], index: 9, kind: input, shape index: {}]
  %s10 = inlined_call_operand.hbm [shape: f32[2,8,10], index: 10, kind: output, shape index: {}]
  %s11 = sld [smem:[#allocation0]]
  $region62: #{tpu_custom_call.1} parent=0
    _
  %s13 = ssub.s32 1, %s11
  %s14 = scalar_select 0, %s13, %s11
  $region1: #{tpu_custom_call.1} parent=0
    #allocation2 [shape = 'u8[12288]{0}', space=vmem, size = 0x3000, scoped, tag = 'input window, operand 1, single buffered']
    #allocation3 [shape = 's32[1]{0}', space=sflag, size = 0x4, scoped, tag = 'scoped memory for tpu_custom_call.1']
    #allocation4 [shape = 's32[1]{0}', space=sflag, size = 0x4, scoped, tag = 'scoped memory for tpu_custom_call.1']
    #allocation5 [shape = 'u8[65536]{0}', space=vmem, size = 0x10000, scoped, tag = 'input window, operand 4, single buffered']
    #allocation6 [shape = 's32[1]{0}', space=sflag, size = 0x4, scoped, tag = 'scoped memory for tpu_custom_call.1']
    #allocation7 [shape = 'u8[16384]{0}', space=vmem, size = 0x4000, scoped, tag = 'input window, operand 6, single buffered']
    #allocation8 [shape = 'u8[8192]{0}', space=vmem, size = 0x2000, scoped, tag = 'output window, operand 0, single buffered']
    %15 = vsyncpa [#allocation3], 0
    %16 = vsyncpa [#allocation6], 0
    %17 = vsyncpa [#allocation4], 0
    // Predicated region
    $region2: #{tpu_custom_call.1} parent=1 // pred_check
      _
    $region3: #{tpu_custom_call.1} parent=1 // pred_check_branch
      %19 = sbr.rel (0) target = $region5
    $region4: #{tpu_custom_call.1} parent=1 // pred_region
      _
    $region5: #{tpu_custom_call.1} parent=1 // pred_fallthru
      _
    // Predicated region
    $region6: #{tpu_custom_call.1} parent=1 // pred_check
      _
    $region7: #{tpu_custom_call.1} parent=1 // pred_check_branch
      %21 = sbr.rel (0) target = $region9
    $region8: #{tpu_custom_call.1} parent=1 // pred_region
      %s23 = ssub.s32 384, 384
      %24 = vsyncadd [#allocation3], %s23
      %s25 = sshll.u32 [#allocation2], 4
      %s26 = int_to_ptr.vmem [resolvable:$true] %s25
      %31 = dma.hbm_to_vmem [thread:$0]  %s1, 384, %s26, [#allocation3], 128, 128, 8
    $region9: #{tpu_custom_call.1} parent=1 // pred_fallthru
      _
    // Predicated region
    $region10: #{tpu_custom_call.1} parent=1 // pred_check
      _
    $region11: #{tpu_custom_call.1} parent=1 // pred_check_branch
      %33 = sbr.rel (0) target = $region13
    $region12: #{tpu_custom_call.1} parent=1 // pred_region
      _
    $region13: #{tpu_custom_call.1} parent=1 // pred_fallthru
      _
    // Predicated region
    $region14: #{tpu_custom_call.1} parent=1 // pred_check
      _
    $region15: #{tpu_custom_call.1} parent=1 // pred_check_branch
      %35 = sbr.rel (0) target = $region17
    $region16: #{tpu_custom_call.1} parent=1 // pred_region
      _
    $region17: #{tpu_custom_call.1} parent=1 // pred_fallthru
      _
    // Predicated region
    $region18: #{tpu_custom_call.1} parent=1 // pred_check
      _
    $region19: #{tpu_custom_call.1} parent=1 // pred_check_branch
      %37 = sbr.rel (0) target = $region21
    $region20: #{tpu_custom_call.1} parent=1 // pred_region
      %s39 = ssub.s32 2048, 2048
      %40 = vsyncadd [#allocation6], %s39
      %s41 = sshll.u32 [#allocation5], 4
      %s42 = int_to_ptr.vmem [resolvable:$true] %s41
      %47 = dma.hbm_to_vmem [thread:$0]  %s4, 2048, %s42, [#allocation6], 256, 256, 16
    $region21: #{tpu_custom_call.1} parent=1 // pred_fallthru
      _
    // Predicated region
    $region22: #{tpu_custom_call.1} parent=1 // pred_check
      _
    $region23: #{tpu_custom_call.1} parent=1 // pred_check_branch
      %49 = sbr.rel (0) target = $region25
    $region24: #{tpu_custom_call.1} parent=1 // pred_region
      _
    $region25: #{tpu_custom_call.1} parent=1 // pred_fallthru
      _
    // Predicated region
    $region26: #{tpu_custom_call.1} parent=1 // pred_check
      _
    $region27: #{tpu_custom_call.1} parent=1 // pred_check_branch
      %51 = sbr.rel (0) target = $region29
    $region28: #{tpu_custom_call.1} parent=1 // pred_region
      %s53 = ssub.s32 512, 512
      %54 = vsyncadd [#allocation6], %s53
      %s55 = sshll.u32 [#allocation7], 4
      %s56 = int_to_ptr.vmem [resolvable:$true] %s55
      %61 = dma.hbm_to_vmem [thread:$0]  %s6, 512, %s56, [#allocation6], 128, 128, 8
    $region29: #{tpu_custom_call.1} parent=1 // pred_fallthru
      _
    // Predicated region
    $region30: #{tpu_custom_call.1} parent=1 // pred_check
      _
    $region31: #{tpu_custom_call.1} parent=1 // pred_check_branch
      %63 = sbr.rel (0) target = $region33
    $region32: #{tpu_custom_call.1} parent=1 // pred_region
      _
    $region33: #{tpu_custom_call.1} parent=1 // pred_fallthru
      _
    // Predicated region
    $region34: #{tpu_custom_call.1} parent=1 // pred_check
      _
    $region35: #{tpu_custom_call.1} parent=1 // pred_check_branch
      %65 = sbr.rel (0) target = $region37
    $region36: #{tpu_custom_call.1} parent=1 // pred_region
      _
    $region37: #{tpu_custom_call.1} parent=1 // pred_fallthru
      _
    // Predicated region
    $region38: #{tpu_custom_call.1} parent=1 // pred_check
      _
    $region39: #{tpu_custom_call.1} parent=1 // pred_check_branch
      %67 = sbr.rel (0) target = $region41
    $region40: #{tpu_custom_call.1} parent=1 // pred_region
      _
    $region41: #{tpu_custom_call.1} parent=1 // pred_fallthru
      _
    // Predicated region
    $region42: #{tpu_custom_call.1} parent=1 // pred_check
      _
    $region43: #{tpu_custom_call.1} parent=1 // pred_check_branch
      %69 = sbr.rel (0) target = $region45
    $region44: #{tpu_custom_call.1} parent=1 // pred_region
      %70 = dma.done [#allocation3], 384
    $region45: #{tpu_custom_call.1} parent=1 // pred_fallthru
      _
    // Predicated region
    $region46: #{tpu_custom_call.1} parent=1 // pred_check
      _
    $region47: #{tpu_custom_call.1} parent=1 // pred_check_branch
      %72 = sbr.rel (0) target = $region49
    $region48: #{tpu_custom_call.1} parent=1 // pred_region
      %73 = dma.done [#allocation6], 2048
    $region49: #{tpu_custom_call.1} parent=1 // pred_fallthru
      _
    // Predicated region
    $region50: #{tpu_custom_call.1} parent=1 // pred_check
      _
    $region51: #{tpu_custom_call.1} parent=1 // pred_check_branch
      %75 = sbr.rel (0) target = $region53
    $region52: #{tpu_custom_call.1} parent=1 // pred_region
      %76 = dma.done [#allocation6], 512
    $region53: #{tpu_custom_call.1} parent=1 // pred_fallthru
      _
    %v77 = vld [vmem:[#allocation2] sm:$0xff]
    %v78 = vld [vmem:[#allocation2 + $0x8] sm:$0xff]
    %v79 = vld [vmem:[#allocation2 + $0x10] sm:$0xf]
    %v80 = vld [vmem:[%s2] sm:$0xff]
    %v81 = vld [vmem:[%s2 + $0x8] sm:$0xff]
    %v82 = vld [vmem:[%s2 + $0x10] sm:$0xff]
    %v83 = vld [vmem:[%s2 + $0x18] sm:$0xff]
    %v84 = vld [vmem:[%s3] sm:$0x1]
    %v85 = vld [vmem:[#allocation5] sm:$0xff]
    %v86 = vld [vmem:[#allocation5 + $0x8] sm:$0xff]
    %v87 = vld [vmem:[#allocation5 + $0x10] sm:$0xff]
    %v88 = vld [vmem:[#allocation5 + $0x18] sm:$0xff]
    %v89 = vld [vmem:[#allocation5 + $0x20] sm:$0xff]
    %v90 = vld [vmem:[#allocation5 + $0x28] sm:$0xff]
    %v91 = vld [vmem:[#allocation5 + $0x30] sm:$0xff]
    %v92 = vld [vmem:[#allocation5 + $0x38] sm:$0xff]
    %v93 = vld [vmem:[#allocation5 + $0x40] sm:$0xff]
    %v94 = vld [vmem:[#allocation5 + $0x48] sm:$0xff]
    %v95 = vld [vmem:[#allocation5 + $0x50] sm:$0xff]
    %v96 = vld [vmem:[#allocation5 + $0x58] sm:$0xff]
    %v97 = vld [vmem:[#allocation5 + $0x60] sm:$0xff]
    %v98 = vld [vmem:[#allocation5 + $0x68] sm:$0xff]
    %v99 = vld [vmem:[#allocation5 + $0x70] sm:$0xff]
    %v100 = vld [vmem:[#allocation5 + $0x78] sm:$0xff]
    %v101 = vld [vmem:[%s5] sm:$0x3]
    %v102 = vld [vmem:[#allocation7] sm:$0xff]
    %v103 = vld [vmem:[#allocation7 + $0x8] sm:$0xff]
    %v104 = vld [vmem:[#allocation7 + $0x10] sm:$0xff]
    %v105 = vld [vmem:[#allocation7 + $0x18] sm:$0xff]
    %v106 = vld [vmem:[%s7] sm:$0x1]
    %v107 = vld [vmem:[%s0] sm:$0x3]
    %v108 = vlaneseq
    %v109 = vand.u32 %v108, 127
    %v110 = vlaneseq
    %v111 = vshrl.u32 %v110, 7
    %v112 = vsub.s32 0, %v111
    %v113 = vrot.slane %v107, %v112
    %115 = vbcast.lane.b32.xlu0 %v113, 256
    %v116 = vpop.permute.xlu0 %115
    %v117 = vlaneseq
    %v118 = vshrl.u32 %v117, 7
    %v119 = vsub.s32 1, %v118
    %v120 = vrot.slane %v107, %v119
    %122 = vbcast.lane.b32.xlu0 %v120, 256
    %v123 = vpop.permute.xlu0 %122
    %vm124 = vcmp.eq.s32.totalorder %v116, %v109
    %vm125 = vcmp.eq.s32.totalorder %v123, %v109
    %v126 = vsel %vm124, 1, 0
    %v127 = vsel %vm125, 1, 0
    %v128 = vcvt.s32.f32 %v126
    %v129 = vcvt.s32.f32 %v127
    %vm130 = vcmask 162816
    %v132 = vsel %vm130, %v128, 0
    %v135 = vsel %vm130, %v129, 0
    %vm137 = vcmask 1043456
    %v139 = vsel %vm137, %v79, 0
    %141 = vmatprep.subr.mxu0 0.0
    %142 = vmatpush1.msra.mxu0 0.0
    %143 = vmatprep.subr.mxu0 0.0
    %144 = vmatpush1.msra.mxu0 0.0
    %145 = vmatprep.subr.mxu0 0.0
    %146 = vmatpush1.msra.mxu0 0.0
    %147 = vmatprep.subr.mxu0 0.0
    %148 = vmatpush1.msra.mxu0 0.0
    %149 = vmatprep.subr.mxu0 0.0
    %150 = vmatpush1.msra.mxu0 0.0
    %151 = vmatprep.subr.mxu0 0.0
    %152 = vmatpush1.msra.mxu0 0.0
    %153 = vmatprep.subr.mxu0 0.0
    %154 = vmatpush1.msra.mxu0 0.0
    %155 = vmatprep.subr.mxu0 0.0
    %156 = vmatpush1.msra.mxu0 0.0
    %157 = vmatprep.subr.mxu0 0.0
    %158 = vmatpush1.msra.mxu0 0.0
    %159 = vmatprep.subr.mxu0 0.0
    %160 = vmatpush1.msra.mxu0 0.0
    %161 = vmatprep.subr.mxu0 0.0
    %162 = vmatpush1.msra.mxu0 0.0
    %163 = vmatprep.subr.mxu0 0.0
    %164 = vmatpush1.msra.mxu0 0.0
    %165 = vmatprep.subr.mxu0 0.0
    %166 = vmatpush1.msra.mxu0 0.0
    %167 = vmatprep.subr.mxu0 0.0
    %168 = vmatpush1.msra.mxu0 %v139
    %169 = vmatprep.subr.mxu0 0.0
    %170 = vmatpush1.msra.mxu0 %v78
    %171 = vmatprep.subr.mxu0 0.0
    %172 = vmatpush1.msra.mxu0 %v77
    %173 = vmatprep.subr.mxu0 0.0
    %174 = vmatpush2.msra.mxu0 0.0
    %175 = vmatprep.subr.mxu0 0.0
    %176 = vmatpush2.msra.mxu0 0.0
    %177 = vmatprep.subr.mxu0 0.0
    %178 = vmatpush2.msra.mxu0 0.0
    %179 = vmatprep.subr.mxu0 0.0
    %180 = vmatpush2.msra.mxu0 0.0
    %181 = vmatprep.subr.mxu0 0.0
    %182 = vmatpush2.msra.mxu0 0.0
    %183 = vmatprep.subr.mxu0 0.0
    %184 = vmatpush2.msra.mxu0 0.0
    %185 = vmatprep.subr.mxu0 0.0
    %186 = vmatpush2.msra.mxu0 0.0
    %187 = vmatprep.subr.mxu0 0.0
    %188 = vmatpush2.msra.mxu0 0.0
    %189 = vmatprep.subr.mxu0 0.0
    %190 = vmatpush2.msra.mxu0 0.0
    %191 = vmatprep.subr.mxu0 0.0
    %192 = vmatpush2.msra.mxu0 0.0
    %193 = vmatprep.subr.mxu0 0.0
    %194 = vmatpush2.msra.mxu0 0.0
    %195 = vmatprep.subr.mxu0 0.0
    %196 = vmatpush2.msra.mxu0 0.0
    %197 = vmatprep.subr.mxu0 0.0
    %198 = vmatpush2.msra.mxu0 0.0
    %199 = vmatprep.subr.mxu0 0.0
    %200 = vmatpush2.msra.mxu0 0.0
    %201 = vmatprep.subr.mxu0 0.0
    %202 = vmatpush2.msra.mxu0 0.0
    %203 = vmatprep.subr.mxu0 0.0
    %204 = vmatpush2.msra.mxu0 0.0
    %205 = vmatprep.mubr.f32.mxu0 0.0
    %206 = vmatmul.mubr.f32.gmra.mxu0 %v132
    %v207 = vpop.f32.mrf.mxu0
    %v208 = vadd.f32 0.0, %v207
    %v209 = vpop.f32.mrf.mxu0
    %210 = vmatprep.mubr.f32.mxu0 0.0
    %211 = vmatmul.mubr.f32.gmra.mxu0 %v135
    %v212 = vpop.f32.mrf.mxu0
    %v213 = vadd.f32 0.0, %v212
    %v214 = vpop.f32.mrf.mxu0
    %215 = vdwg.mxu0
    %v217 = vlaneseq
    %v218 = vshrl.u32 %v217, 7
    %v219 = vsub.s32 0, %v218
    %v220 = vrot.slane %v84, %v219
    %vm222 = vcmask 261120
    %v224 = vsel %vm222, %v208, 0
    %v227 = vsel %vm222, %v213, 0
    %229 = vmatprep.subr.mxu0 0.0
    %230 = vmatpush1.msra.mxu0 0.0
    %231 = vmatprep.subr.mxu0 0.0
    %232 = vmatpush1.msra.mxu0 0.0
    %233 = vmatprep.subr.mxu0 0.0
    %234 = vmatpush1.msra.mxu0 0.0
    %235 = vmatprep.subr.mxu0 0.0
    %236 = vmatpush1.msra.mxu0 0.0
    %237 = vmatprep.subr.mxu0 0.0
    %238 = vmatpush1.msra.mxu0 0.0
    %239 = vmatprep.subr.mxu0 0.0
    %240 = vmatpush1.msra.mxu0 0.0
    %241 = vmatprep.subr.mxu0 0.0
    %242 = vmatpush1.msra.mxu0 0.0
    %243 = vmatprep.subr.mxu0 0.0
    %244 = vmatpush1.msra.mxu0 0.0
    %245 = vmatprep.subr.mxu0 0.0
    %246 = vmatpush1.msra.mxu0 0.0
    %247 = vmatprep.subr.mxu0 0.0
    %248 = vmatpush1.msra.mxu0 0.0
    %249 = vmatprep.subr.mxu0 0.0
    %250 = vmatpush1.msra.mxu0 0.0
    %251 = vmatprep.subr.mxu0 0.0
    %252 = vmatpush1.msra.mxu0 0.0
    %253 = vmatprep.subr.mxu0 0.0
    %254 = vmatpush1.msra.mxu0 %v83
    %255 = vmatprep.subr.mxu0 0.0
    %256 = vmatpush1.msra.mxu0 %v82
    %257 = vmatprep.subr.mxu0 0.0
    %258 = vmatpush1.msra.mxu0 %v81
    %259 = vmatprep.subr.mxu0 0.0
    %260 = vmatpush1.msra.mxu0 %v80
    %261 = vmatprep.subr.mxu0 0.0
    %262 = vmatpush2.msra.mxu0 0.0
    %263 = vmatprep.subr.mxu0 0.0
    %264 = vmatpush2.msra.mxu0 0.0
    %265 = vmatprep.subr.mxu0 0.0
    %266 = vmatpush2.msra.mxu0 0.0
    %267 = vmatprep.subr.mxu0 0.0
    %268 = vmatpush2.msra.mxu0 0.0
    %269 = vmatprep.subr.mxu0 0.0
    %270 = vmatpush2.msra.mxu0 0.0
    %271 = vmatprep.subr.mxu0 0.0
    %272 = vmatpush2.msra.mxu0 0.0
    %273 = vmatprep.subr.mxu0 0.0
    %274 = vmatpush2.msra.mxu0 0.0
    %275 = vmatprep.subr.mxu0 0.0
    %276 = vmatpush2.msra.mxu0 0.0
    %277 = vmatprep.subr.mxu0 0.0
    %278 = vmatpush2.msra.mxu0 0.0
    %279 = vmatprep.subr.mxu0 0.0
    %280 = vmatpush2.msra.mxu0 0.0
    %281 = vmatprep.subr.mxu0 0.0
    %282 = vmatpush2.msra.mxu0 0.0
    %283 = vmatprep.subr.mxu0 0.0
    %284 = vmatpush2.msra.mxu0 0.0
    %285 = vmatprep.subr.mxu0 0.0
    %286 = vmatpush2.msra.mxu0 0.0
    %287 = vmatprep.subr.mxu0 0.0
    %288 = vmatpush2.msra.mxu0 0.0
    %289 = vmatprep.subr.mxu0 0.0
    %290 = vmatpush2.msra.mxu0 0.0
    %291 = vmatprep.subr.mxu0 0.0
    %292 = vmatpush2.msra.mxu0 0.0
    %293 = vmatprep.mubr.f32.mxu0 0.0
    %294 = vmatmul.mubr.f32.gmra.mxu0 %v224
    %v295 = vpop.f32.mrf.mxu0
    %v296 = vadd.f32 %v220, %v295
    %v297 = vpop.f32.mrf.mxu0
    %298 = vmatprep.mubr.f32.mxu0 0.0
    %299 = vmatmul.mubr.f32.gmra.mxu0 %v227
    %v300 = vpop.f32.mrf.mxu0
    %v301 = vadd.f32 %v220, %v300
    %v302 = vpop.f32.mrf.mxu0
    %303 = vdwg.mxu0
    %v305 = vlaneseq
    %v306 = vshrl.u32 %v305, 7
    %v307 = vsub.s32 0, %v306
    %v308 = vrot.slane %v101, %v307
    %v309 = vlaneseq
    %v310 = vshrl.u32 %v309, 7
    %v311 = vsub.s32 1, %v310
    %v312 = vrot.slane %v101, %v311
    %vm315 = vcmask 523264
    %v317 = vsel %vm315, 0.0, 0
    %319 = vmatprep.subr.mxu0 0.0
    %320 = vmatpush1.msra.mxu0 0.0
    %321 = vmatprep.subr.mxu0 0.0
    %322 = vmatpush1.msra.mxu0 0.0
    %323 = vmatprep.subr.mxu0 0.0
    %324 = vmatpush1.msra.mxu0 0.0
    %325 = vmatprep.subr.mxu0 0.0
    %326 = vmatpush1.msra.mxu0 0.0
    %327 = vmatprep.subr.mxu0 0.0
    %328 = vmatpush1.msra.mxu0 0.0
    %329 = vmatprep.subr.mxu0 0.0
    %330 = vmatpush1.msra.mxu0 0.0
    %331 = vmatprep.subr.mxu0 0.0
    %332 = vmatpush1.msra.mxu0 0.0
    %333 = vmatprep.subr.mxu0 0.0
    %334 = vmatpush1.msra.mxu0 0.0
    %335 = vmatprep.subr.mxu0 %v100
    %336 = vmatpush1.msra.mxu0 %v99
    %337 = vmatprep.subr.mxu0 %v98
    %338 = vmatpush1.msra.mxu0 %v97
    %339 = vmatprep.subr.mxu0 %v96
    %340 = vmatpush1.msra.mxu0 %v95
    %341 = vmatprep.subr.mxu0 %v94
    %342 = vmatpush1.msra.mxu0 %v93
    %343 = vmatprep.subr.mxu0 %v92
    %344 = vmatpush1.msra.mxu0 %v91
    %345 = vmatprep.subr.mxu0 %v90
    %346 = vmatpush1.msra.mxu0 %v89
    %347 = vmatprep.subr.mxu0 %v88
    %348 = vmatpush1.msra.mxu0 %v87
    %349 = vmatprep.subr.mxu0 %v86
    %350 = vmatpush1.msra.mxu0 %v85
    %351 = vmatprep.subr.mxu0 0.0
    %352 = vmatpush2.msra.mxu0 0.0
    %353 = vmatprep.subr.mxu0 0.0
    %354 = vmatpush2.msra.mxu0 0.0
    %355 = vmatprep.subr.mxu0 0.0
    %356 = vmatpush2.msra.mxu0 0.0
    %357 = vmatprep.subr.mxu0 0.0
    %358 = vmatpush2.msra.mxu0 0.0
    %359 = vmatprep.subr.mxu0 0.0
    %360 = vmatpush2.msra.mxu0 0.0
    %361 = vmatprep.subr.mxu0 0.0
    %362 = vmatpush2.msra.mxu0 0.0
    %363 = vmatprep.subr.mxu0 0.0
    %364 = vmatpush2.msra.mxu0 0.0
    %365 = vmatprep.subr.mxu0 0.0
    %366 = vmatpush2.msra.mxu0 0.0
    %367 = vmatprep.subr.mxu0 0.0
    %368 = vmatpush2.msra.mxu0 0.0
    %369 = vmatprep.subr.mxu0 0.0
    %370 = vmatpush2.msra.mxu0 0.0
    %371 = vmatprep.subr.mxu0 0.0
    %372 = vmatpush2.msra.mxu0 0.0
    %373 = vmatprep.subr.mxu0 0.0
    %374 = vmatpush2.msra.mxu0 0.0
    %375 = vmatprep.subr.mxu0 0.0
    %376 = vmatpush2.msra.mxu0 0.0
    %377 = vmatprep.subr.mxu0 0.0
    %378 = vmatpush2.msra.mxu0 0.0
    %379 = vmatprep.subr.mxu0 0.0
    %380 = vmatpush2.msra.mxu0 0.0
    %381 = vmatprep.subr.mxu0 0.0
    %382 = vmatpush2.msra.mxu0 0.0
    %383 = vmatprep.mubr.f32.mxu0 0.0
    %384 = vmatmul.mubr.f32.gmra.mxu0 %v317
    %v385 = vpop.f32.mrf.mxu0
    %v386 = vadd.f32 %v308, %v385
    %v387 = vpop.f32.mrf.mxu0
    %v388 = vadd.f32 %v312, %v387
    %389 = vdwg.mxu0
    %v391 = vrot.slane %v386, 1
    %v394 = vadd.f32 %v296, %v386
    %v395 = vadd.f32 %v301, %v391
    %v396 = vxor.u32 %v394, 2147483648
    %v397 = vxor.u32 %v395, 2147483648
    %v398 = vmul.f32 %v396, 1.442695
    %v399 = vpow.pop %v398
    %v400 = vmul.f32 %v397, 1.442695
    %v401 = vpow.pop %v400
    %v402 = vadd.f32 %v399, 1.0
    %v403 = vadd.f32 %v401, 1.0
    %v404 = vrcp.pop %v402
    %v405 = vmul.f32 1.0, %v404
    %v406 = vrcp.pop %v403
    %v407 = vmul.f32 1.0, %v406
    %408 = vrot.lane.b32.xlu0 %v386, 64
    %v409 = vpop.permute.xlu0 %408
    %410 = vrot.lane.b32.xlu0 %v391, 64
    %v411 = vpop.permute.xlu0 %410
    %v414 = vmul.f32 %v405, %v409
    %v415 = vmul.f32 %v407, %v411
    %418 = vrot.lane.b32.xlu0 %v414, 64
    %v419 = vpop.permute.xlu0 %418
    %420 = vrot.lane.b32.xlu0 %v415, 64
    %v421 = vpop.permute.xlu0 %420
    %v424 = vadd.f32 %v296, %v419
    %v425 = vadd.f32 %v301, %v421
    %v426 = vtanh.pop %v424
    %v427 = vtanh.pop %v425
    %v428 = vsub.f32 0.0, %v426
    %v429 = vsub.f32 0.0, %v427
    %432 = vrot.lane.b32.xlu0 %v428, 96
    %v433 = vpop.permute.xlu0 %432
    %434 = vrot.lane.b32.xlu0 %v429, 96
    %v435 = vpop.permute.xlu0 %434
    %v438 = vmul.f32 %v405, %v433
    %v439 = vmul.f32 %v407, %v435
    %442 = vrot.lane.b32.xlu0 %v438, 32
    %v443 = vpop.permute.xlu0 %442
    %444 = vrot.lane.b32.xlu0 %v439, 32
    %v445 = vpop.permute.xlu0 %444
    %v448 = vadd.f32 %v426, %v443
    %v449 = vadd.f32 %v427, %v445
    %v451 = vlaneseq
    %v452 = vshrl.u32 %v451, 7
    %v453 = vsub.s32 0, %v452
    %v454 = vrot.slane %v106, %v453
    %v458 = vrot.slane %v449, 7
    %vm459 = vcmask 1041409
    %v460 = vsel %vm459, %v458, %v448
    %461 = vrot.lane.b32.xlu0 %v460, 64
    %v462 = vpop.permute.xlu0 %461
    %v463 = vsel %vm222, %v462, 0
    %465 = vmatprep.subr.mxu0 0.0
    %466 = vmatpush1.msra.mxu0 0.0
    %467 = vmatprep.subr.mxu0 0.0
    %468 = vmatpush1.msra.mxu0 0.0
    %469 = vmatprep.subr.mxu0 0.0
    %470 = vmatpush1.msra.mxu0 0.0
    %471 = vmatprep.subr.mxu0 0.0
    %472 = vmatpush1.msra.mxu0 0.0
    %473 = vmatprep.subr.mxu0 0.0
    %474 = vmatpush1.msra.mxu0 0.0
    %475 = vmatprep.subr.mxu0 0.0
    %476 = vmatpush1.msra.mxu0 0.0
    %477 = vmatprep.subr.mxu0 0.0
    %478 = vmatpush1.msra.mxu0 0.0
    %479 = vmatprep.subr.mxu0 0.0
    %480 = vmatpush1.msra.mxu0 0.0
    %481 = vmatprep.subr.mxu0 0.0
    %482 = vmatpush1.msra.mxu0 0.0
    %483 = vmatprep.subr.mxu0 0.0
    %484 = vmatpush1.msra.mxu0 0.0
    %485 = vmatprep.subr.mxu0 0.0
    %486 = vmatpush1.msra.mxu0 0.0
    %487 = vmatprep.subr.mxu0 0.0
    %488 = vmatpush1.msra.mxu0 0.0
    %489 = vmatprep.subr.mxu0 0.0
    %490 = vmatpush1.msra.mxu0 %v105
    %491 = vmatprep.subr.mxu0 0.0
    %492 = vmatpush1.msra.mxu0 %v104
    %493 = vmatprep.subr.mxu0 0.0
    %494 = vmatpush1.msra.mxu0 %v103
    %495 = vmatprep.subr.mxu0 0.0
    %496 = vmatpush1.msra.mxu0 %v102
    %497 = vmatprep.subr.mxu0 0.0
    %498 = vmatpush2.msra.mxu0 0.0
    %499 = vmatprep.subr.mxu0 0.0
    %500 = vmatpush2.msra.mxu0 0.0
    %501 = vmatprep.subr.mxu0 0.0
    %502 = vmatpush2.msra.mxu0 0.0
    %503 = vmatprep.subr.mxu0 0.0
    %504 = vmatpush2.msra.mxu0 0.0
    %505 = vmatprep.subr.mxu0 0.0
    %506 = vmatpush2.msra.mxu0 0.0
    %507 = vmatprep.subr.mxu0 0.0
    %508 = vmatpush2.msra.mxu0 0.0
    %509 = vmatprep.subr.mxu0 0.0
    %510 = vmatpush2.msra.mxu0 0.0
    %511 = vmatprep.subr.mxu0 0.0
    %512 = vmatpush2.msra.mxu0 0.0
    %513 = vmatprep.subr.mxu0 0.0
    %514 = vmatpush2.msra.mxu0 0.0
    %515 = vmatprep.subr.mxu0 0.0
    %516 = vmatpush2.msra.mxu0 0.0
    %517 = vmatprep.subr.mxu0 0.0
    %518 = vmatpush2.msra.mxu0 0.0
    %519 = vmatprep.subr.mxu0 0.0
    %520 = vmatpush2.msra.mxu0 0.0
    %521 = vmatprep.subr.mxu0 0.0
    %522 = vmatpush2.msra.mxu0 0.0
    %523 = vmatprep.subr.mxu0 0.0
    %524 = vmatpush2.msra.mxu0 0.0
    %525 = vmatprep.subr.mxu0 0.0
    %526 = vmatpush2.msra.mxu0 0.0
    %527 = vmatprep.subr.mxu0 0.0
    %528 = vmatpush2.msra.mxu0 0.0
    %529 = vmatprep.mubr.f32.mxu0 0.0
    %530 = vmatmul.mubr.f32.gmra.mxu0 %v463
    %v531 = vpop.f32.mrf.mxu0
    %v532 = vadd.f32 %v454, %v531
    %v533 = vpop.f32.mrf.mxu0
    %534 = vdwg.mxu0
    %536 = vrot.lane.b32.xlu0 %v386, 32
    %v537 = vpop.permute.xlu0 %536
    %538 = vrot.lane.b32.xlu0 %v388, 32
    %v539 = vpop.permute.xlu0 %538
    %v540 = vsel %vm222, %v537, %v539
    %v542 = vadd.f32 %v532, %v540
    %v543 = vxor.u32 %v542, 2147483648
    %v544 = vmul.f32 %v543, 1.442695
    %v545 = vpow.pop %v544
    %v546 = vadd.f32 %v545, 1.0
    %v547 = vrcp.pop %v546
    %v548 = vmul.f32 1.0, %v547
    %549 = vrot.lane.b32.xlu0 %v388, 96
    %v550 = vpop.permute.xlu0 %549
    %v552 = vmul.f32 %v548, %v550
    %554 = vrot.lane.b32.xlu0 %v552, 64
    %v555 = vpop.permute.xlu0 %554
    %v557 = vadd.f32 %v532, %v555
    %v558 = vtanh.pop %v557
    %v559 = vsub.f32 0.0, %v558
    %561 = vrot.lane.b32.xlu0 %v559, 96
    %v562 = vpop.permute.xlu0 %561
    %v564 = vmul.f32 %v548, %v562
    %566 = vrot.lane.b32.xlu0 %v564, 32
    %v567 = vpop.permute.xlu0 %566
    %v569 = vadd.f32 %v558, %v567
    %572 = vrot.lane.b32.xlu0 %v569, 96
    %v573 = vpop.permute.xlu0 %572
    %v575 = vsel %vm222, %v462, %v573
    %v577 = vsel %vm315, %v575, 0
    %579 = vmatprep.subr.mxu0 0.0
    %580 = vmatpush1.msra.mxu0 0.0
    %581 = vmatprep.subr.mxu0 0.0
    %582 = vmatpush1.msra.mxu0 0.0
    %583 = vmatprep.subr.mxu0 0.0
    %584 = vmatpush1.msra.mxu0 0.0
    %585 = vmatprep.subr.mxu0 0.0
    %586 = vmatpush1.msra.mxu0 0.0
    %587 = vmatprep.subr.mxu0 0.0
    %588 = vmatpush1.msra.mxu0 0.0
    %589 = vmatprep.subr.mxu0 0.0
    %590 = vmatpush1.msra.mxu0 0.0
    %591 = vmatprep.subr.mxu0 0.0
    %592 = vmatpush1.msra.mxu0 0.0
    %593 = vmatprep.subr.mxu0 0.0
    %594 = vmatpush1.msra.mxu0 0.0
    %595 = vmatprep.subr.mxu0 %v100
    %596 = vmatpush1.msra.mxu0 %v99
    %597 = vmatprep.subr.mxu0 %v98
    %598 = vmatpush1.msra.mxu0 %v97
    %599 = vmatprep.subr.mxu0 %v96
    %600 = vmatpush1.msra.mxu0 %v95
    %601 = vmatprep.subr.mxu0 %v94
    %602 = vmatpush1.msra.mxu0 %v93
    %603 = vmatprep.subr.mxu0 %v92
    %604 = vmatpush1.msra.mxu0 %v91
    %605 = vmatprep.subr.mxu0 %v90
    %606 = vmatpush1.msra.mxu0 %v89
    %607 = vmatprep.subr.mxu0 %v88
    %608 = vmatpush1.msra.mxu0 %v87
    %609 = vmatprep.subr.mxu0 %v86
    %610 = vmatpush1.msra.mxu0 %v85
    %611 = vmatprep.subr.mxu0 0.0
    %612 = vmatpush2.msra.mxu0 0.0
    %613 = vmatprep.subr.mxu0 0.0
    %614 = vmatpush2.msra.mxu0 0.0
    %615 = vmatprep.subr.mxu0 0.0
    %616 = vmatpush2.msra.mxu0 0.0
    %617 = vmatprep.subr.mxu0 0.0
    %618 = vmatpush2.msra.mxu0 0.0
    %619 = vmatprep.subr.mxu0 0.0
    %620 = vmatpush2.msra.mxu0 0.0
    %621 = vmatprep.subr.mxu0 0.0
    %622 = vmatpush2.msra.mxu0 0.0
    %623 = vmatprep.subr.mxu0 0.0
    %624 = vmatpush2.msra.mxu0 0.0
    %625 = vmatprep.subr.mxu0 0.0
    %626 = vmatpush2.msra.mxu0 0.0
    %627 = vmatprep.subr.mxu0 0.0
    %628 = vmatpush2.msra.mxu0 0.0
    %629 = vmatprep.subr.mxu0 0.0
    %630 = vmatpush2.msra.mxu0 0.0
    %631 = vmatprep.subr.mxu0 0.0
    %632 = vmatpush2.msra.mxu0 0.0
    %633 = vmatprep.subr.mxu0 0.0
    %634 = vmatpush2.msra.mxu0 0.0
    %635 = vmatprep.subr.mxu0 0.0
    %636 = vmatpush2.msra.mxu0 0.0
    %637 = vmatprep.subr.mxu0 0.0
    %638 = vmatpush2.msra.mxu0 0.0
    %639 = vmatprep.subr.mxu0 0.0
    %640 = vmatpush2.msra.mxu0 0.0
    %641 = vmatprep.subr.mxu0 0.0
    %642 = vmatpush2.msra.mxu0 0.0
    %643 = vmatprep.mubr.f32.mxu0 0.0
    %644 = vmatmul.mubr.f32.gmra.mxu0 %v577
    %v645 = vpop.f32.mrf.mxu0
    %v646 = vadd.f32 %v308, %v645
    %v647 = vpop.f32.mrf.mxu0
    %v648 = vadd.f32 %v312, %v647
    %649 = vdwg.mxu0
    %v651 = vrot.slane %v646, 7
    %v654 = vadd.f32 %v296, %v651
    %v655 = vadd.f32 %v301, %v646
    %v656 = vxor.u32 %v654, 2147483648
    %v657 = vxor.u32 %v655, 2147483648
    %v658 = vmul.f32 %v656, 1.442695
    %v659 = vpow.pop %v658
    %v660 = vmul.f32 %v657, 1.442695
    %v661 = vpow.pop %v660
    %v662 = vadd.f32 %v659, 1.0
    %v663 = vadd.f32 %v661, 1.0
    %v664 = vrcp.pop %v662
    %v665 = vmul.f32 1.0, %v664
    %v666 = vrcp.pop %v663
    %v667 = vmul.f32 1.0, %v666
    %668 = vrot.lane.b32.xlu0 %v651, 64
    %v669 = vpop.permute.xlu0 %668
    %670 = vrot.lane.b32.xlu0 %v646, 64
    %v671 = vpop.permute.xlu0 %670
    %v674 = vmul.f32 %v665, %v669
    %v675 = vmul.f32 %v667, %v671
    %678 = vrot.lane.b32.xlu0 %v674, 64
    %v679 = vpop.permute.xlu0 %678
    %680 = vrot.lane.b32.xlu0 %v675, 64
    %v681 = vpop.permute.xlu0 %680
    %v684 = vadd.f32 %v296, %v679
    %v685 = vadd.f32 %v301, %v681
    %v686 = vtanh.pop %v684
    %v687 = vtanh.pop %v685
    %v690 = vrot.slane %v686, 1
    %v691 = vrot.slane %v687, 1
    %v694 = vsub.f32 %v448, %v690
    %v695 = vsub.f32 %v449, %v691
    %v698 = vrot.slane %v694, 7
    %v699 = vrot.slane %v695, 7
    %700 = vrot.lane.b32.xlu0 %v698, 96
    %v701 = vpop.permute.xlu0 %700
    %702 = vrot.lane.b32.xlu0 %v699, 96
    %v703 = vpop.permute.xlu0 %702
    %v706 = vmul.f32 %v665, %v701
    %v707 = vmul.f32 %v667, %v703
    %710 = vrot.lane.b32.xlu0 %v706, 32
    %v711 = vpop.permute.xlu0 %710
    %712 = vrot.lane.b32.xlu0 %v707, 32
    %v713 = vpop.permute.xlu0 %712
    %v716 = vadd.f32 %v686, %v711
    %v717 = vadd.f32 %v687, %v713
    %v720 = vrot.slane %v716, 1
    %v721 = vsel %vm459, %v717, %v720
    %722 = vrot.lane.b32.xlu0 %v721, 64
    %v723 = vpop.permute.xlu0 %722
    %v724 = vsel %vm222, %v723, 0
    %726 = vmatprep.subr.mxu0 0.0
    %727 = vmatpush1.msra.mxu0 0.0
    %728 = vmatprep.subr.mxu0 0.0
    %729 = vmatpush1.msra.mxu0 0.0
    %730 = vmatprep.subr.mxu0 0.0
    %731 = vmatpush1.msra.mxu0 0.0
    %732 = vmatprep.subr.mxu0 0.0
    %733 = vmatpush1.msra.mxu0 0.0
    %734 = vmatprep.subr.mxu0 0.0
    %735 = vmatpush1.msra.mxu0 0.0
    %736 = vmatprep.subr.mxu0 0.0
    %737 = vmatpush1.msra.mxu0 0.0
    %738 = vmatprep.subr.mxu0 0.0
    %739 = vmatpush1.msra.mxu0 0.0
    %740 = vmatprep.subr.mxu0 0.0
    %741 = vmatpush1.msra.mxu0 0.0
    %742 = vmatprep.subr.mxu0 0.0
    %743 = vmatpush1.msra.mxu0 0.0
    %744 = vmatprep.subr.mxu0 0.0
    %745 = vmatpush1.msra.mxu0 0.0
    %746 = vmatprep.subr.mxu0 0.0
    %747 = vmatpush1.msra.mxu0 0.0
    %748 = vmatprep.subr.mxu0 0.0
    %749 = vmatpush1.msra.mxu0 0.0
    %750 = vmatprep.subr.mxu0 0.0
    %751 = vmatpush1.msra.mxu0 %v105
    %752 = vmatprep.subr.mxu0 0.0
    %753 = vmatpush1.msra.mxu0 %v104
    %754 = vmatprep.subr.mxu0 0.0
    %755 = vmatpush1.msra.mxu0 %v103
    %756 = vmatprep.subr.mxu0 0.0
    %757 = vmatpush1.msra.mxu0 %v102
    %758 = vmatprep.subr.mxu0 0.0
    %759 = vmatpush2.msra.mxu0 0.0
    %760 = vmatprep.subr.mxu0 0.0
    %761 = vmatpush2.msra.mxu0 0.0
    %762 = vmatprep.subr.mxu0 0.0
    %763 = vmatpush2.msra.mxu0 0.0
    %764 = vmatprep.subr.mxu0 0.0
    %765 = vmatpush2.msra.mxu0 0.0
    %766 = vmatprep.subr.mxu0 0.0
    %767 = vmatpush2.msra.mxu0 0.0
    %768 = vmatprep.subr.mxu0 0.0
    %769 = vmatpush2.msra.mxu0 0.0
    %770 = vmatprep.subr.mxu0 0.0
    %771 = vmatpush2.msra.mxu0 0.0
    %772 = vmatprep.subr.mxu0 0.0
    %773 = vmatpush2.msra.mxu0 0.0
    %774 = vmatprep.subr.mxu0 0.0
    %775 = vmatpush2.msra.mxu0 0.0
    %776 = vmatprep.subr.mxu0 0.0
    %777 = vmatpush2.msra.mxu0 0.0
    %778 = vmatprep.subr.mxu0 0.0
    %779 = vmatpush2.msra.mxu0 0.0
    %780 = vmatprep.subr.mxu0 0.0
    %781 = vmatpush2.msra.mxu0 0.0
    %782 = vmatprep.subr.mxu0 0.0
    %783 = vmatpush2.msra.mxu0 0.0
    %784 = vmatprep.subr.mxu0 0.0
    %785 = vmatpush2.msra.mxu0 0.0
    %786 = vmatprep.subr.mxu0 0.0
    %787 = vmatpush2.msra.mxu0 0.0
    %788 = vmatprep.subr.mxu0 0.0
    %789 = vmatpush2.msra.mxu0 0.0
    %790 = vmatprep.mubr.f32.mxu0 0.0
    %791 = vmatmul.mubr.f32.gmra.mxu0 %v724
    %v792 = vpop.f32.mrf.mxu0
    %v793 = vadd.f32 %v454, %v792
    %v794 = vpop.f32.mrf.mxu0
    %795 = vdwg.mxu0
    %797 = vrot.lane.b32.xlu0 %v646, 32
    %v798 = vpop.permute.xlu0 %797
    %799 = vrot.lane.b32.xlu0 %v648, 32
    %v800 = vpop.permute.xlu0 %799
    %v801 = vsel %vm222, %v798, %v800
    %v803 = vadd.f32 %v793, %v801
    %v804 = vxor.u32 %v803, 2147483648
    %v805 = vmul.f32 %v804, 1.442695
    %v806 = vpow.pop %v805
    %v807 = vadd.f32 %v806, 1.0
    %v808 = vrcp.pop %v807
    %v809 = vmul.f32 1.0, %v808
    %810 = vrot.lane.b32.xlu0 %v648, 96
    %v811 = vpop.permute.xlu0 %810
    %v813 = vmul.f32 %v809, %v811
    %815 = vrot.lane.b32.xlu0 %v813, 64
    %v816 = vpop.permute.xlu0 %815
    %v818 = vadd.f32 %v793, %v816
    %v819 = vtanh.pop %v818
    %v820 = vsub.f32 %v569, %v819
    %822 = vrot.lane.b32.xlu0 %v820, 96
    %v823 = vpop.permute.xlu0 %822
    %v825 = vmul.f32 %v809, %v823
    %827 = vrot.lane.b32.xlu0 %v825, 32
    %v828 = vpop.permute.xlu0 %827
    %v830 = vadd.f32 %v819, %v828
    %v831 = vrot.slane %v717, 7
    %vm832 = vcmask 1042434
    %v833 = vsel %vm832, %v831, %v716
    %834 = vrot.lane.b32.xlu0 %v833, 64
    %v835 = vpop.permute.xlu0 %834
    %v838 = vrot.slane %v830, 7
    %839 = vrot.lane.b32.xlu0 %v838, 96
    %v840 = vpop.permute.xlu0 %839
    %v842 = vsel %vm222, %v835, %v840
    %v844 = vrot.slane %v842, 1
    %v845 = vsel %vm315, %v844, 0
    %847 = vmatprep.subr.mxu0 0.0
    %848 = vmatpush1.msra.mxu0 0.0
    %849 = vmatprep.subr.mxu0 0.0
    %850 = vmatpush1.msra.mxu0 0.0
    %851 = vmatprep.subr.mxu0 0.0
    %852 = vmatpush1.msra.mxu0 0.0
    %853 = vmatprep.subr.mxu0 0.0
    %854 = vmatpush1.msra.mxu0 0.0
    %855 = vmatprep.subr.mxu0 0.0
    %856 = vmatpush1.msra.mxu0 0.0
    %857 = vmatprep.subr.mxu0 0.0
    %858 = vmatpush1.msra.mxu0 0.0
    %859 = vmatprep.subr.mxu0 0.0
    %860 = vmatpush1.msra.mxu0 0.0
    %861 = vmatprep.subr.mxu0 0.0
    %862 = vmatpush1.msra.mxu0 0.0
    %863 = vmatprep.subr.mxu0 %v100
    %864 = vmatpush1.msra.mxu0 %v99
    %865 = vmatprep.subr.mxu0 %v98
    %866 = vmatpush1.msra.mxu0 %v97
    %867 = vmatprep.subr.mxu0 %v96
    %868 = vmatpush1.msra.mxu0 %v95
    %869 = vmatprep.subr.mxu0 %v94
    %870 = vmatpush1.msra.mxu0 %v93
    %871 = vmatprep.subr.mxu0 %v92
    %872 = vmatpush1.msra.mxu0 %v91
    %873 = vmatprep.subr.mxu0 %v90
    %874 = vmatpush1.msra.mxu0 %v89
    %875 = vmatprep.subr.mxu0 %v88
    %876 = vmatpush1.msra.mxu0 %v87
    %877 = vmatprep.subr.mxu0 %v86
    %878 = vmatpush1.msra.mxu0 %v85
    %879 = vmatprep.subr.mxu0 0.0
    %880 = vmatpush2.msra.mxu0 0.0
    %881 = vmatprep.subr.mxu0 0.0
    %882 = vmatpush2.msra.mxu0 0.0
    %883 = vmatprep.subr.mxu0 0.0
    %884 = vmatpush2.msra.mxu0 0.0
    %885 = vmatprep.subr.mxu0 0.0
    %886 = vmatpush2.msra.mxu0 0.0
    %887 = vmatprep.subr.mxu0 0.0
    %888 = vmatpush2.msra.mxu0 0.0
    %889 = vmatprep.subr.mxu0 0.0
    %890 = vmatpush2.msra.mxu0 0.0
    %891 = vmatprep.subr.mxu0 0.0
    %892 = vmatpush2.msra.mxu0 0.0
    %893 = vmatprep.subr.mxu0 0.0
    %894 = vmatpush2.msra.mxu0 0.0
    %895 = vmatprep.subr.mxu0 0.0
    %896 = vmatpush2.msra.mxu0 0.0
    %897 = vmatprep.subr.mxu0 0.0
    %898 = vmatpush2.msra.mxu0 0.0
    %899 = vmatprep.subr.mxu0 0.0
    %900 = vmatpush2.msra.mxu0 0.0
    %901 = vmatprep.subr.mxu0 0.0
    %902 = vmatpush2.msra.mxu0 0.0
    %903 = vmatprep.subr.mxu0 0.0
    %904 = vmatpush2.msra.mxu0 0.0
    %905 = vmatprep.subr.mxu0 0.0
    %906 = vmatpush2.msra.mxu0 0.0
    %907 = vmatprep.subr.mxu0 0.0
    %908 = vmatpush2.msra.mxu0 0.0
    %909 = vmatprep.subr.mxu0 0.0
    %910 = vmatpush2.msra.mxu0 0.0
    %911 = vmatprep.mubr.f32.mxu0 0.0
    %912 = vmatmul.mubr.f32.gmra.mxu0 %v845
    %v913 = vpop.f32.mrf.mxu0
    %v914 = vadd.f32 %v308, %v913
    %v915 = vpop.f32.mrf.mxu0
    %v916 = vadd.f32 %v312, %v915
    %917 = vdwg.mxu0
    %v919 = vrot.slane %v914, 6
    %v920 = vrot.slane %v914, 7
    %v923 = vadd.f32 %v296, %v919
    %v924 = vadd.f32 %v301, %v920
    %v925 = vxor.u32 %v923, 2147483648
    %v926 = vxor.u32 %v924, 2147483648
    %v927 = vmul.f32 %v925, 1.442695
    %v928 = vpow.pop %v927
    %v929 = vmul.f32 %v926, 1.442695
    %v930 = vpow.pop %v929
    %v931 = vadd.f32 %v928, 1.0
    %v932 = vadd.f32 %v930, 1.0
    %v933 = vrcp.pop %v931
    %v934 = vmul.f32 1.0, %v933
    %v935 = vrcp.pop %v932
    %v936 = vmul.f32 1.0, %v935
    %937 = vrot.lane.b32.xlu0 %v919, 64
    %v938 = vpop.permute.xlu0 %937
    %939 = vrot.lane.b32.xlu0 %v920, 64
    %v940 = vpop.permute.xlu0 %939
    %v943 = vmul.f32 %v934, %v938
    %v944 = vmul.f32 %v936, %v940
    %947 = vrot.lane.b32.xlu0 %v943, 64
    %v948 = vpop.permute.xlu0 %947
    %949 = vrot.lane.b32.xlu0 %v944, 64
    %v950 = vpop.permute.xlu0 %949
    %v953 = vadd.f32 %v296, %v948
    %v954 = vadd.f32 %v301, %v950
    %v955 = vtanh.pop %v953
    %v956 = vtanh.pop %v954
    %v959 = vrot.slane %v955, 1
    %v960 = vrot.slane %v956, 1
    %v963 = vsub.f32 %v716, %v959
    %v964 = vsub.f32 %v717, %v960
    %v967 = vrot.slane %v963, 7
    %v968 = vrot.slane %v964, 7
    %969 = vrot.lane.b32.xlu0 %v967, 96
    %v970 = vpop.permute.xlu0 %969
    %971 = vrot.lane.b32.xlu0 %v968, 96
    %v972 = vpop.permute.xlu0 %971
    %v975 = vmul.f32 %v934, %v970
    %v976 = vmul.f32 %v936, %v972
    %979 = vrot.lane.b32.xlu0 %v975, 32
    %v980 = vpop.permute.xlu0 %979
    %981 = vrot.lane.b32.xlu0 %v976, 32
    %v982 = vpop.permute.xlu0 %981
    %v985 = vadd.f32 %v955, %v980
    %v986 = vadd.f32 %v956, %v982
    %v989 = vrot.slane %v985, 2
    %v990 = vrot.slane %v986, 1
    %v991 = vsel %vm459, %v990, %v989
    %992 = vrot.lane.b32.xlu0 %v991, 64
    %v993 = vpop.permute.xlu0 %992
    %v994 = vsel %vm222, %v993, 0
    %996 = vmatprep.subr.mxu0 0.0
    %997 = vmatpush1.msra.mxu0 0.0
    %998 = vmatprep.subr.mxu0 0.0
    %999 = vmatpush1.msra.mxu0 0.0
    %1000 = vmatprep.subr.mxu0 0.0
    %1001 = vmatpush1.msra.mxu0 0.0
    %1002 = vmatprep.subr.mxu0 0.0
    %1003 = vmatpush1.msra.mxu0 0.0
    %1004 = vmatprep.subr.mxu0 0.0
    %1005 = vmatpush1.msra.mxu0 0.0
    %1006 = vmatprep.subr.mxu0 0.0
    %1007 = vmatpush1.msra.mxu0 0.0
    %1008 = vmatprep.subr.mxu0 0.0
    %1009 = vmatpush1.msra.mxu0 0.0
    %1010 = vmatprep.subr.mxu0 0.0
    %1011 = vmatpush1.msra.mxu0 0.0
    %1012 = vmatprep.subr.mxu0 0.0
    %1013 = vmatpush1.msra.mxu0 0.0
    %1014 = vmatprep.subr.mxu0 0.0
    %1015 = vmatpush1.msra.mxu0 0.0
    %1016 = vmatprep.subr.mxu0 0.0
    %1017 = vmatpush1.msra.mxu0 0.0
    %1018 = vmatprep.subr.mxu0 0.0
    %1019 = vmatpush1.msra.mxu0 0.0
    %1020 = vmatprep.subr.mxu0 0.0
    %1021 = vmatpush1.msra.mxu0 %v105
    %1022 = vmatprep.subr.mxu0 0.0
    %1023 = vmatpush1.msra.mxu0 %v104
    %1024 = vmatprep.subr.mxu0 0.0
    %1025 = vmatpush1.msra.mxu0 %v103
    %1026 = vmatprep.subr.mxu0 0.0
    %1027 = vmatpush1.msra.mxu0 %v102
    %1028 = vmatprep.subr.mxu0 0.0
    %1029 = vmatpush2.msra.mxu0 0.0
    %1030 = vmatprep.subr.mxu0 0.0
    %1031 = vmatpush2.msra.mxu0 0.0
    %1032 = vmatprep.subr.mxu0 0.0
    %1033 = vmatpush2.msra.mxu0 0.0
    %1034 = vmatprep.subr.mxu0 0.0
    %1035 = vmatpush2.msra.mxu0 0.0
    %1036 = vmatprep.subr.mxu0 0.0
    %1037 = vmatpush2.msra.mxu0 0.0
    %1038 = vmatprep.subr.mxu0 0.0
    %1039 = vmatpush2.msra.mxu0 0.0
    %1040 = vmatprep.subr.mxu0 0.0
    %1041 = vmatpush2.msra.mxu0 0.0
    %1042 = vmatprep.subr.mxu0 0.0
    %1043 = vmatpush2.msra.mxu0 0.0
    %1044 = vmatprep.subr.mxu0 0.0
    %1045 = vmatpush2.msra.mxu0 0.0
    %1046 = vmatprep.subr.mxu0 0.0
    %1047 = vmatpush2.msra.mxu0 0.0
    %1048 = vmatprep.subr.mxu0 0.0
    %1049 = vmatpush2.msra.mxu0 0.0
    %1050 = vmatprep.subr.mxu0 0.0
    %1051 = vmatpush2.msra.mxu0 0.0
    %1052 = vmatprep.subr.mxu0 0.0
    %1053 = vmatpush2.msra.mxu0 0.0
    %1054 = vmatprep.subr.mxu0 0.0
    %1055 = vmatpush2.msra.mxu0 0.0
    %1056 = vmatprep.subr.mxu0 0.0
    %1057 = vmatpush2.msra.mxu0 0.0
    %1058 = vmatprep.subr.mxu0 0.0
    %1059 = vmatpush2.msra.mxu0 0.0
    %1060 = vmatprep.mubr.f32.mxu0 0.0
    %1061 = vmatmul.mubr.f32.gmra.mxu0 %v994
    %v1062 = vpop.f32.mrf.mxu0
    %v1063 = vadd.f32 %v454, %v1062
    %v1064 = vpop.f32.mrf.mxu0
    %1065 = vdwg.mxu0
    %1067 = vrot.lane.b32.xlu0 %v914, 32
    %v1068 = vpop.permute.xlu0 %1067
    %1069 = vrot.lane.b32.xlu0 %v916, 32
    %v1070 = vpop.permute.xlu0 %1069
    %v1071 = vsel %vm222, %v1068, %v1070
    %v1073 = vadd.f32 %v1063, %v1071
    %v1074 = vxor.u32 %v1073, 2147483648
    %v1075 = vmul.f32 %v1074, 1.442695
    %v1076 = vpow.pop %v1075
    %v1077 = vadd.f32 %v1076, 1.0
    %v1078 = vrcp.pop %v1077
    %v1079 = vmul.f32 1.0, %v1078
    %1080 = vrot.lane.b32.xlu0 %v916, 96
    %v1081 = vpop.permute.xlu0 %1080
    %v1083 = vmul.f32 %v1079, %v1081
    %1085 = vrot.lane.b32.xlu0 %v1083, 64
    %v1086 = vpop.permute.xlu0 %1085
    %v1088 = vadd.f32 %v1063, %v1086
    %v1089 = vtanh.pop %v1088
    %v1090 = vsub.f32 %v830, %v1089
    %1092 = vrot.lane.b32.xlu0 %v1090, 96
    %v1093 = vpop.permute.xlu0 %1092
    %v1095 = vmul.f32 %v1079, %v1093
    %1097 = vrot.lane.b32.xlu0 %v1095, 32
    %v1098 = vpop.permute.xlu0 %1097
    %v1100 = vadd.f32 %v1089, %v1098
    %v1101 = vrot.slane %v986, 7
    %vm1102 = vcmask 1043459
    %v1103 = vsel %vm1102, %v1101, %v985
    %1104 = vrot.lane.b32.xlu0 %v1103, 64
    %v1105 = vpop.permute.xlu0 %1104
    %v1108 = vrot.slane %v1100, 6
    %1109 = vrot.lane.b32.xlu0 %v1108, 96
    %v1110 = vpop.permute.xlu0 %1109
    %v1112 = vsel %vm222, %v1105, %v1110
    %v1114 = vrot.slane %v1112, 2
    %v1115 = vsel %vm315, %v1114, 0
    %1117 = vmatprep.subr.mxu0 0.0
    %1118 = vmatpush1.msra.mxu0 0.0
    %1119 = vmatprep.subr.mxu0 0.0
    %1120 = vmatpush1.msra.mxu0 0.0
    %1121 = vmatprep.subr.mxu0 0.0
    %1122 = vmatpush1.msra.mxu0 0.0
    %1123 = vmatprep.subr.mxu0 0.0
    %1124 = vmatpush1.msra.mxu0 0.0
    %1125 = vmatprep.subr.mxu0 0.0
    %1126 = vmatpush1.msra.mxu0 0.0
    %1127 = vmatprep.subr.mxu0 0.0
    %1128 = vmatpush1.msra.mxu0 0.0
    %1129 = vmatprep.subr.mxu0 0.0
    %1130 = vmatpush1.msra.mxu0 0.0
    %1131 = vmatprep.subr.mxu0 0.0
    %1132 = vmatpush1.msra.mxu0 0.0
    %1133 = vmatprep.subr.mxu0 %v100
    %1134 = vmatpush1.msra.mxu0 %v99
    %1135 = vmatprep.subr.mxu0 %v98
    %1136 = vmatpush1.msra.mxu0 %v97
    %1137 = vmatprep.subr.mxu0 %v96
    %1138 = vmatpush1.msra.mxu0 %v95
    %1139 = vmatprep.subr.mxu0 %v94
    %1140 = vmatpush1.msra.mxu0 %v93
    %1141 = vmatprep.subr.mxu0 %v92
    %1142 = vmatpush1.msra.mxu0 %v91
    %1143 = vmatprep.subr.mxu0 %v90
    %1144 = vmatpush1.msra.mxu0 %v89
    %1145 = vmatprep.subr.mxu0 %v88
    %1146 = vmatpush1.msra.mxu0 %v87
    %1147 = vmatprep.subr.mxu0 %v86
    %1148 = vmatpush1.msra.mxu0 %v85
    %1149 = vmatprep.subr.mxu0 0.0
    %1150 = vmatpush2.msra.mxu0 0.0
    %1151 = vmatprep.subr.mxu0 0.0
    %1152 = vmatpush2.msra.mxu0 0.0
    %1153 = vmatprep.subr.mxu0 0.0
    %1154 = vmatpush2.msra.mxu0 0.0
    %1155 = vmatprep.subr.mxu0 0.0
    %1156 = vmatpush2.msra.mxu0 0.0
    %1157 = vmatprep.subr.mxu0 0.0
    %1158 = vmatpush2.msra.mxu0 0.0
    %1159 = vmatprep.subr.mxu0 0.0
    %1160 = vmatpush2.msra.mxu0 0.0
    %1161 = vmatprep.subr.mxu0 0.0
    %1162 = vmatpush2.msra.mxu0 0.0
    %1163 = vmatprep.subr.mxu0 0.0
    %1164 = vmatpush2.msra.mxu0 0.0
    %1165 = vmatprep.subr.mxu0 0.0
    %1166 = vmatpush2.msra.mxu0 0.0
    %1167 = vmatprep.subr.mxu0 0.0
    %1168 = vmatpush2.msra.mxu0 0.0
    %1169 = vmatprep.subr.mxu0 0.0
    %1170 = vmatpush2.msra.mxu0 0.0
    %1171 = vmatprep.subr.mxu0 0.0
    %1172 = vmatpush2.msra.mxu0 0.0
    %1173 = vmatprep.subr.mxu0 0.0
    %1174 = vmatpush2.msra.mxu0 0.0
    %1175 = vmatprep.subr.mxu0 0.0
    %1176 = vmatpush2.msra.mxu0 0.0
    %1177 = vmatprep.subr.mxu0 0.0
    %1178 = vmatpush2.msra.mxu0 0.0
    %1179 = vmatprep.subr.mxu0 0.0
    %1180 = vmatpush2.msra.mxu0 0.0
    %1181 = vmatprep.mubr.f32.mxu0 0.0
    %1182 = vmatmul.mubr.f32.gmra.mxu0 %v1115
    %v1183 = vpop.f32.mrf.mxu0
    %v1184 = vadd.f32 %v308, %v1183
    %v1185 = vpop.f32.mrf.mxu0
    %v1186 = vadd.f32 %v312, %v1185
    %1187 = vdwg.mxu0
    %v1189 = vrot.slane %v1184, 5
    %v1190 = vrot.slane %v1184, 6
    %v1193 = vadd.f32 %v296, %v1189
    %v1194 = vadd.f32 %v301, %v1190
    %v1195 = vxor.u32 %v1193, 2147483648
    %v1196 = vxor.u32 %v1194, 2147483648
    %v1197 = vmul.f32 %v1195, 1.442695
    %v1198 = vpow.pop %v1197
    %v1199 = vmul.f32 %v1196, 1.442695
    %v1200 = vpow.pop %v1199
    %v1201 = vadd.f32 %v1198, 1.0
    %v1202 = vadd.f32 %v1200, 1.0
    %v1203 = vrcp.pop %v1201
    %v1204 = vmul.f32 1.0, %v1203
    %v1205 = vrcp.pop %v1202
    %v1206 = vmul.f32 1.0, %v1205
    %1207 = vrot.lane.b32.xlu0 %v1189, 64
    %v1208 = vpop.permute.xlu0 %1207
    %1209 = vrot.lane.b32.xlu0 %v1190, 64
    %v1210 = vpop.permute.xlu0 %1209
    %v1213 = vmul.f32 %v1204, %v1208
    %v1214 = vmul.f32 %v1206, %v1210
    %1217 = vrot.lane.b32.xlu0 %v1213, 64
    %v1218 = vpop.permute.xlu0 %1217
    %1219 = vrot.lane.b32.xlu0 %v1214, 64
    %v1220 = vpop.permute.xlu0 %1219
    %v1223 = vadd.f32 %v296, %v1218
    %v1224 = vadd.f32 %v301, %v1220
    %v1225 = vtanh.pop %v1223
    %v1226 = vtanh.pop %v1224
    %v1229 = vrot.slane %v1225, 1
    %v1230 = vrot.slane %v1226, 1
    %v1233 = vsub.f32 %v985, %v1229
    %v1234 = vsub.f32 %v986, %v1230
    %v1237 = vrot.slane %v1233, 7
    %v1238 = vrot.slane %v1234, 7
    %1239 = vrot.lane.b32.xlu0 %v1237, 96
    %v1240 = vpop.permute.xlu0 %1239
    %1241 = vrot.lane.b32.xlu0 %v1238, 96
    %v1242 = vpop.permute.xlu0 %1241
    %v1245 = vmul.f32 %v1204, %v1240
    %v1246 = vmul.f32 %v1206, %v1242
    %1249 = vrot.lane.b32.xlu0 %v1245, 32
    %v1250 = vpop.permute.xlu0 %1249
    %1251 = vrot.lane.b32.xlu0 %v1246, 32
    %v1252 = vpop.permute.xlu0 %1251
    %v1255 = vadd.f32 %v1225, %v1250
    %v1256 = vadd.f32 %v1226, %v1252
    %v1259 = vrot.slane %v1255, 3
    %v1260 = vrot.slane %v1256, 2
    %v1261 = vsel %vm459, %v1260, %v1259
    %1262 = vrot.lane.b32.xlu0 %v1261, 64
    %v1263 = vpop.permute.xlu0 %1262
    %v1264 = vsel %vm222, %v1263, 0
    %1266 = vmatprep.subr.mxu0 0.0
    %1267 = vmatpush1.msra.mxu0 0.0
    %1268 = vmatprep.subr.mxu0 0.0
    %1269 = vmatpush1.msra.mxu0 0.0
    %1270 = vmatprep.subr.mxu0 0.0
    %1271 = vmatpush1.msra.mxu0 0.0
    %1272 = vmatprep.subr.mxu0 0.0
    %1273 = vmatpush1.msra.mxu0 0.0
    %1274 = vmatprep.subr.mxu0 0.0
    %1275 = vmatpush1.msra.mxu0 0.0
    %1276 = vmatprep.subr.mxu0 0.0
    %1277 = vmatpush1.msra.mxu0 0.0
    %1278 = vmatprep.subr.mxu0 0.0
    %1279 = vmatpush1.msra.mxu0 0.0
    %1280 = vmatprep.subr.mxu0 0.0
    %1281 = vmatpush1.msra.mxu0 0.0
    %1282 = vmatprep.subr.mxu0 0.0
    %1283 = vmatpush1.msra.mxu0 0.0
    %1284 = vmatprep.subr.mxu0 0.0
    %1285 = vmatpush1.msra.mxu0 0.0
    %1286 = vmatprep.subr.mxu0 0.0
    %1287 = vmatpush1.msra.mxu0 0.0
    %1288 = vmatprep.subr.mxu0 0.0
    %1289 = vmatpush1.msra.mxu0 0.0
    %1290 = vmatprep.subr.mxu0 0.0
    %1291 = vmatpush1.msra.mxu0 %v105
    %1292 = vmatprep.subr.mxu0 0.0
    %1293 = vmatpush1.msra.mxu0 %v104
    %1294 = vmatprep.subr.mxu0 0.0
    %1295 = vmatpush1.msra.mxu0 %v103
    %1296 = vmatprep.subr.mxu0 0.0
    %1297 = vmatpush1.msra.mxu0 %v102
    %1298 = vmatprep.subr.mxu0 0.0
    %1299 = vmatpush2.msra.mxu0 0.0
    %1300 = vmatprep.subr.mxu0 0.0
    %1301 = vmatpush2.msra.mxu0 0.0
    %1302 = vmatprep.subr.mxu0 0.0
    %1303 = vmatpush2.msra.mxu0 0.0
    %1304 = vmatprep.subr.mxu0 0.0
    %1305 = vmatpush2.msra.mxu0 0.0
    %1306 = vmatprep.subr.mxu0 0.0
    %1307 = vmatpush2.msra.mxu0 0.0
    %1308 = vmatprep.subr.mxu0 0.0
    %1309 = vmatpush2.msra.mxu0 0.0
    %1310 = vmatprep.subr.mxu0 0.0
    %1311 = vmatpush2.msra.mxu0 0.0
    %1312 = vmatprep.subr.mxu0 0.0
    %1313 = vmatpush2.msra.mxu0 0.0
    %1314 = vmatprep.subr.mxu0 0.0
    %1315 = vmatpush2.msra.mxu0 0.0
    %1316 = vmatprep.subr.mxu0 0.0
    %1317 = vmatpush2.msra.mxu0 0.0
    %1318 = vmatprep.subr.mxu0 0.0
    %1319 = vmatpush2.msra.mxu0 0.0
    %1320 = vmatprep.subr.mxu0 0.0
    %1321 = vmatpush2.msra.mxu0 0.0
    %1322 = vmatprep.subr.mxu0 0.0
    %1323 = vmatpush2.msra.mxu0 0.0
    %1324 = vmatprep.subr.mxu0 0.0
    %1325 = vmatpush2.msra.mxu0 0.0
    %1326 = vmatprep.subr.mxu0 0.0
    %1327 = vmatpush2.msra.mxu0 0.0
    %1328 = vmatprep.subr.mxu0 0.0
    %1329 = vmatpush2.msra.mxu0 0.0
    %1330 = vmatprep.mubr.f32.mxu0 0.0
    %1331 = vmatmul.mubr.f32.gmra.mxu0 %v1264
    %v1332 = vpop.f32.mrf.mxu0
    %v1333 = vadd.f32 %v454, %v1332
    %v1334 = vpop.f32.mrf.mxu0
    %1335 = vdwg.mxu0
    %1337 = vrot.lane.b32.xlu0 %v1184, 32
    %v1338 = vpop.permute.xlu0 %1337
    %1339 = vrot.lane.b32.xlu0 %v1186, 32
    %v1340 = vpop.permute.xlu0 %1339
    %v1341 = vsel %vm222, %v1338, %v1340
    %v1343 = vadd.f32 %v1333, %v1341
    %v1344 = vxor.u32 %v1343, 2147483648
    %v1345 = vmul.f32 %v1344, 1.442695
    %v1346 = vpow.pop %v1345
    %v1347 = vadd.f32 %v1346, 1.0
    %v1348 = vrcp.pop %v1347
    %v1349 = vmul.f32 1.0, %v1348
    %1350 = vrot.lane.b32.xlu0 %v1186, 96
    %v1351 = vpop.permute.xlu0 %1350
    %v1353 = vmul.f32 %v1349, %v1351
    %1355 = vrot.lane.b32.xlu0 %v1353, 64
    %v1356 = vpop.permute.xlu0 %1355
    %v1358 = vadd.f32 %v1333, %v1356
    %v1359 = vtanh.pop %v1358
    %v1360 = vsub.f32 %v1100, %v1359
    %1362 = vrot.lane.b32.xlu0 %v1360, 96
    %v1363 = vpop.permute.xlu0 %1362
    %v1365 = vmul.f32 %v1349, %v1363
    %1367 = vrot.lane.b32.xlu0 %v1365, 32
    %v1368 = vpop.permute.xlu0 %1367
    %v1370 = vadd.f32 %v1359, %v1368
    %v1371 = vrot.slane %v1256, 7
    %vm1372 = vcmask 1044484
    %v1373 = vsel %vm1372, %v1371, %v1255
    %1374 = vrot.lane.b32.xlu0 %v1373, 64
    %v1375 = vpop.permute.xlu0 %1374
    %v1378 = vrot.slane %v1370, 5
    %1379 = vrot.lane.b32.xlu0 %v1378, 96
    %v1380 = vpop.permute.xlu0 %1379
    %v1382 = vsel %vm222, %v1375, %v1380
    %v1384 = vrot.slane %v1382, 3
    %v1385 = vsel %vm315, %v1384, 0
    %1387 = vmatprep.subr.mxu0 0.0
    %1388 = vmatpush1.msra.mxu0 0.0
    %1389 = vmatprep.subr.mxu0 0.0
    %1390 = vmatpush1.msra.mxu0 0.0
    %1391 = vmatprep.subr.mxu0 0.0
    %1392 = vmatpush1.msra.mxu0 0.0
    %1393 = vmatprep.subr.mxu0 0.0
    %1394 = vmatpush1.msra.mxu0 0.0
    %1395 = vmatprep.subr.mxu0 0.0
    %1396 = vmatpush1.msra.mxu0 0.0
    %1397 = vmatprep.subr.mxu0 0.0
    %1398 = vmatpush1.msra.mxu0 0.0
    %1399 = vmatprep.subr.mxu0 0.0
    %1400 = vmatpush1.msra.mxu0 0.0
    %1401 = vmatprep.subr.mxu0 0.0
    %1402 = vmatpush1.msra.mxu0 0.0
    %1403 = vmatprep.subr.mxu0 %v100
    %1404 = vmatpush1.msra.mxu0 %v99
    %1405 = vmatprep.subr.mxu0 %v98
    %1406 = vmatpush1.msra.mxu0 %v97
    %1407 = vmatprep.subr.mxu0 %v96
    %1408 = vmatpush1.msra.mxu0 %v95
    %1409 = vmatprep.subr.mxu0 %v94
    %1410 = vmatpush1.msra.mxu0 %v93
    %1411 = vmatprep.subr.mxu0 %v92
    %1412 = vmatpush1.msra.mxu0 %v91
    %1413 = vmatprep.subr.mxu0 %v90
    %1414 = vmatpush1.msra.mxu0 %v89
    %1415 = vmatprep.subr.mxu0 %v88
    %1416 = vmatpush1.msra.mxu0 %v87
    %1417 = vmatprep.subr.mxu0 %v86
    %1418 = vmatpush1.msra.mxu0 %v85
    %1419 = vmatprep.subr.mxu0 0.0
    %1420 = vmatpush2.msra.mxu0 0.0
    %1421 = vmatprep.subr.mxu0 0.0
    %1422 = vmatpush2.msra.mxu0 0.0
    %1423 = vmatprep.subr.mxu0 0.0
    %1424 = vmatpush2.msra.mxu0 0.0
    %1425 = vmatprep.subr.mxu0 0.0
    %1426 = vmatpush2.msra.mxu0 0.0
    %1427 = vmatprep.subr.mxu0 0.0
    %1428 = vmatpush2.msra.mxu0 0.0
    %1429 = vmatprep.subr.mxu0 0.0
    %1430 = vmatpush2.msra.mxu0 0.0
    %1431 = vmatprep.subr.mxu0 0.0
    %1432 = vmatpush2.msra.mxu0 0.0
    %1433 = vmatprep.subr.mxu0 0.0
    %1434 = vmatpush2.msra.mxu0 0.0
    %1435 = vmatprep.subr.mxu0 0.0
    %1436 = vmatpush2.msra.mxu0 0.0
    %1437 = vmatprep.subr.mxu0 0.0
    %1438 = vmatpush2.msra.mxu0 0.0
    %1439 = vmatprep.subr.mxu0 0.0
    %1440 = vmatpush2.msra.mxu0 0.0
    %1441 = vmatprep.subr.mxu0 0.0
    %1442 = vmatpush2.msra.mxu0 0.0
    %1443 = vmatprep.subr.mxu0 0.0
    %1444 = vmatpush2.msra.mxu0 0.0
    %1445 = vmatprep.subr.mxu0 0.0
    %1446 = vmatpush2.msra.mxu0 0.0
    %1447 = vmatprep.subr.mxu0 0.0
    %1448 = vmatpush2.msra.mxu0 0.0
    %1449 = vmatprep.subr.mxu0 0.0
    %1450 = vmatpush2.msra.mxu0 0.0
    %1451 = vmatprep.mubr.f32.mxu0 0.0
    %1452 = vmatmul.mubr.f32.gmra.mxu0 %v1385
    %v1453 = vpop.f32.mrf.mxu0
    %v1454 = vadd.f32 %v308, %v1453
    %v1455 = vpop.f32.mrf.mxu0
    %v1456 = vadd.f32 %v312, %v1455
    %1457 = vdwg.mxu0
    %v1459 = vrot.slane %v1454, 4
    %v1460 = vrot.slane %v1454, 5
    %v1463 = vadd.f32 %v296, %v1459
    %v1464 = vadd.f32 %v301, %v1460
    %v1465 = vxor.u32 %v1463, 2147483648
    %v1466 = vxor.u32 %v1464, 2147483648
    %v1467 = vmul.f32 %v1465, 1.442695
    %v1468 = vpow.pop %v1467
    %v1469 = vmul.f32 %v1466, 1.442695
    %v1470 = vpow.pop %v1469
    %v1471 = vadd.f32 %v1468, 1.0
    %v1472 = vadd.f32 %v1470, 1.0
    %v1473 = vrcp.pop %v1471
    %v1474 = vmul.f32 1.0, %v1473
    %v1475 = vrcp.pop %v1472
    %v1476 = vmul.f32 1.0, %v1475
    %1477 = vrot.lane.b32.xlu0 %v1459, 64
    %v1478 = vpop.permute.xlu0 %1477
    %1479 = vrot.lane.b32.xlu0 %v1460, 64
    %v1480 = vpop.permute.xlu0 %1479
    %v1483 = vmul.f32 %v1474, %v1478
    %v1484 = vmul.f32 %v1476, %v1480
    %1487 = vrot.lane.b32.xlu0 %v1483, 64
    %v1488 = vpop.permute.xlu0 %1487
    %1489 = vrot.lane.b32.xlu0 %v1484, 64
    %v1490 = vpop.permute.xlu0 %1489
    %v1493 = vadd.f32 %v296, %v1488
    %v1494 = vadd.f32 %v301, %v1490
    %v1495 = vtanh.pop %v1493
    %v1496 = vtanh.pop %v1494
    %v1499 = vrot.slane %v1495, 1
    %v1500 = vrot.slane %v1496, 1
    %v1503 = vsub.f32 %v1255, %v1499
    %v1504 = vsub.f32 %v1256, %v1500
    %v1507 = vrot.slane %v1503, 7
    %v1508 = vrot.slane %v1504, 7
    %1509 = vrot.lane.b32.xlu0 %v1507, 96
    %v1510 = vpop.permute.xlu0 %1509
    %1511 = vrot.lane.b32.xlu0 %v1508, 96
    %v1512 = vpop.permute.xlu0 %1511
    %v1515 = vmul.f32 %v1474, %v1510
    %v1516 = vmul.f32 %v1476, %v1512
    %1519 = vrot.lane.b32.xlu0 %v1515, 32
    %v1520 = vpop.permute.xlu0 %1519
    %1521 = vrot.lane.b32.xlu0 %v1516, 32
    %v1522 = vpop.permute.xlu0 %1521
    %v1525 = vadd.f32 %v1495, %v1520
    %v1526 = vadd.f32 %v1496, %v1522
    %v1529 = vrot.slane %v1525, 4
    %v1530 = vrot.slane %v1526, 3
    %v1531 = vsel %vm459, %v1530, %v1529
    %1532 = vrot.lane.b32.xlu0 %v1531, 64
    %v1533 = vpop.permute.xlu0 %1532
    %v1534 = vsel %vm222, %v1533, 0
    %1536 = vmatprep.subr.mxu0 0.0
    %1537 = vmatpush1.msra.mxu0 0.0
    %1538 = vmatprep.subr.mxu0 0.0
    %1539 = vmatpush1.msra.mxu0 0.0
    %1540 = vmatprep.subr.mxu0 0.0
    %1541 = vmatpush1.msra.mxu0 0.0
    %1542 = vmatprep.subr.mxu0 0.0
    %1543 = vmatpush1.msra.mxu0 0.0
    %1544 = vmatprep.subr.mxu0 0.0
    %1545 = vmatpush1.msra.mxu0 0.0
    %1546 = vmatprep.subr.mxu0 0.0
    %1547 = vmatpush1.msra.mxu0 0.0
    %1548 = vmatprep.subr.mxu0 0.0
    %1549 = vmatpush1.msra.mxu0 0.0
    %1550 = vmatprep.subr.mxu0 0.0
    %1551 = vmatpush1.msra.mxu0 0.0
    %1552 = vmatprep.subr.mxu0 0.0
    %1553 = vmatpush1.msra.mxu0 0.0
    %1554 = vmatprep.subr.mxu0 0.0
    %1555 = vmatpush1.msra.mxu0 0.0
    %1556 = vmatprep.subr.mxu0 0.0
    %1557 = vmatpush1.msra.mxu0 0.0
    %1558 = vmatprep.subr.mxu0 0.0
    %1559 = vmatpush1.msra.mxu0 0.0
    %1560 = vmatprep.subr.mxu0 0.0
    %1561 = vmatpush1.msra.mxu0 %v105
    %1562 = vmatprep.subr.mxu0 0.0
    %1563 = vmatpush1.msra.mxu0 %v104
    %1564 = vmatprep.subr.mxu0 0.0
    %1565 = vmatpush1.msra.mxu0 %v103
    %1566 = vmatprep.subr.mxu0 0.0
    %1567 = vmatpush1.msra.mxu0 %v102
    %1568 = vmatprep.subr.mxu0 0.0
    %1569 = vmatpush2.msra.mxu0 0.0
    %1570 = vmatprep.subr.mxu0 0.0
    %1571 = vmatpush2.msra.mxu0 0.0
    %1572 = vmatprep.subr.mxu0 0.0
    %1573 = vmatpush2.msra.mxu0 0.0
    %1574 = vmatprep.subr.mxu0 0.0
    %1575 = vmatpush2.msra.mxu0 0.0
    %1576 = vmatprep.subr.mxu0 0.0
    %1577 = vmatpush2.msra.mxu0 0.0
    %1578 = vmatprep.subr.mxu0 0.0
    %1579 = vmatpush2.msra.mxu0 0.0
    %1580 = vmatprep.subr.mxu0 0.0
    %1581 = vmatpush2.msra.mxu0 0.0
    %1582 = vmatprep.subr.mxu0 0.0
    %1583 = vmatpush2.msra.mxu0 0.0
    %1584 = vmatprep.subr.mxu0 0.0
    %1585 = vmatpush2.msra.mxu0 0.0
    %1586 = vmatprep.subr.mxu0 0.0
    %1587 = vmatpush2.msra.mxu0 0.0
    %1588 = vmatprep.subr.mxu0 0.0
    %1589 = vmatpush2.msra.mxu0 0.0
    %1590 = vmatprep.subr.mxu0 0.0
    %1591 = vmatpush2.msra.mxu0 0.0
    %1592 = vmatprep.subr.mxu0 0.0
    %1593 = vmatpush2.msra.mxu0 0.0
    %1594 = vmatprep.subr.mxu0 0.0
    %1595 = vmatpush2.msra.mxu0 0.0
    %1596 = vmatprep.subr.mxu0 0.0
    %1597 = vmatpush2.msra.mxu0 0.0
    %1598 = vmatprep.subr.mxu0 0.0
    %1599 = vmatpush2.msra.mxu0 0.0
    %1600 = vmatprep.mubr.f32.mxu0 0.0
    %1601 = vmatmul.mubr.f32.gmra.mxu0 %v1534
    %v1602 = vpop.f32.mrf.mxu0
    %v1603 = vadd.f32 %v454, %v1602
    %v1604 = vpop.f32.mrf.mxu0
    %1605 = vdwg.mxu0
    %1607 = vrot.lane.b32.xlu0 %v1454, 32
    %v1608 = vpop.permute.xlu0 %1607
    %1609 = vrot.lane.b32.xlu0 %v1456, 32
    %v1610 = vpop.permute.xlu0 %1609
    %v1611 = vsel %vm222, %v1608, %v1610
    %v1613 = vadd.f32 %v1603, %v1611
    %v1614 = vxor.u32 %v1613, 2147483648
    %v1615 = vmul.f32 %v1614, 1.442695
    %v1616 = vpow.pop %v1615
    %v1617 = vadd.f32 %v1616, 1.0
    %v1618 = vrcp.pop %v1617
    %v1619 = vmul.f32 1.0, %v1618
    %1620 = vrot.lane.b32.xlu0 %v1456, 96
    %v1621 = vpop.permute.xlu0 %1620
    %v1623 = vmul.f32 %v1619, %v1621
    %1625 = vrot.lane.b32.xlu0 %v1623, 64
    %v1626 = vpop.permute.xlu0 %1625
    %v1628 = vadd.f32 %v1603, %v1626
    %v1629 = vtanh.pop %v1628
    %v1630 = vsub.f32 %v1370, %v1629
    %1632 = vrot.lane.b32.xlu0 %v1630, 96
    %v1633 = vpop.permute.xlu0 %1632
    %v1635 = vmul.f32 %v1619, %v1633
    %1637 = vrot.lane.b32.xlu0 %v1635, 32
    %v1638 = vpop.permute.xlu0 %1637
    %v1640 = vadd.f32 %v1629, %v1638
    %v1641 = vrot.slane %v1526, 7
    %vm1642 = vcmask 1045509
    %v1643 = vsel %vm1642, %v1641, %v1525
    %1644 = vrot.lane.b32.xlu0 %v1643, 64
    %v1645 = vpop.permute.xlu0 %1644
    %v1648 = vrot.slane %v1640, 4
    %1649 = vrot.lane.b32.xlu0 %v1648, 96
    %v1650 = vpop.permute.xlu0 %1649
    %v1652 = vsel %vm222, %v1645, %v1650
    %v1654 = vrot.slane %v1652, 4
    %v1655 = vsel %vm315, %v1654, 0
    %1657 = vmatprep.subr.mxu0 0.0
    %1658 = vmatpush1.msra.mxu0 0.0
    %1659 = vmatprep.subr.mxu0 0.0
    %1660 = vmatpush1.msra.mxu0 0.0
    %1661 = vmatprep.subr.mxu0 0.0
    %1662 = vmatpush1.msra.mxu0 0.0
    %1663 = vmatprep.subr.mxu0 0.0
    %1664 = vmatpush1.msra.mxu0 0.0
    %1665 = vmatprep.subr.mxu0 0.0
    %1666 = vmatpush1.msra.mxu0 0.0
    %1667 = vmatprep.subr.mxu0 0.0
    %1668 = vmatpush1.msra.mxu0 0.0
    %1669 = vmatprep.subr.mxu0 0.0
    %1670 = vmatpush1.msra.mxu0 0.0
    %1671 = vmatprep.subr.mxu0 0.0
    %1672 = vmatpush1.msra.mxu0 0.0
    %1673 = vmatprep.subr.mxu0 %v100
    %1674 = vmatpush1.msra.mxu0 %v99
    %1675 = vmatprep.subr.mxu0 %v98
    %1676 = vmatpush1.msra.mxu0 %v97
    %1677 = vmatprep.subr.mxu0 %v96
    %1678 = vmatpush1.msra.mxu0 %v95
    %1679 = vmatprep.subr.mxu0 %v94
    %1680 = vmatpush1.msra.mxu0 %v93
    %1681 = vmatprep.subr.mxu0 %v92
    %1682 = vmatpush1.msra.mxu0 %v91
    %1683 = vmatprep.subr.mxu0 %v90
    %1684 = vmatpush1.msra.mxu0 %v89
    %1685 = vmatprep.subr.mxu0 %v88
    %1686 = vmatpush1.msra.mxu0 %v87
    %1687 = vmatprep.subr.mxu0 %v86
    %1688 = vmatpush1.msra.mxu0 %v85
    %1689 = vmatprep.subr.mxu0 0.0
    %1690 = vmatpush2.msra.mxu0 0.0
    %1691 = vmatprep.subr.mxu0 0.0
    %1692 = vmatpush2.msra.mxu0 0.0
    %1693 = vmatprep.subr.mxu0 0.0
    %1694 = vmatpush2.msra.mxu0 0.0
    %1695 = vmatprep.subr.mxu0 0.0
    %1696 = vmatpush2.msra.mxu0 0.0
    %1697 = vmatprep.subr.mxu0 0.0
    %1698 = vmatpush2.msra.mxu0 0.0
    %1699 = vmatprep.subr.mxu0 0.0
    %1700 = vmatpush2.msra.mxu0 0.0
    %1701 = vmatprep.subr.mxu0 0.0
    %1702 = vmatpush2.msra.mxu0 0.0
    %1703 = vmatprep.subr.mxu0 0.0
    %1704 = vmatpush2.msra.mxu0 0.0
    %1705 = vmatprep.subr.mxu0 0.0
    %1706 = vmatpush2.msra.mxu0 0.0
    %1707 = vmatprep.subr.mxu0 0.0
    %1708 = vmatpush2.msra.mxu0 0.0
    %1709 = vmatprep.subr.mxu0 0.0
    %1710 = vmatpush2.msra.mxu0 0.0
    %1711 = vmatprep.subr.mxu0 0.0
    %1712 = vmatpush2.msra.mxu0 0.0
    %1713 = vmatprep.subr.mxu0 0.0
    %1714 = vmatpush2.msra.mxu0 0.0
    %1715 = vmatprep.subr.mxu0 0.0
    %1716 = vmatpush2.msra.mxu0 0.0
    %1717 = vmatprep.subr.mxu0 0.0
    %1718 = vmatpush2.msra.mxu0 0.0
    %1719 = vmatprep.subr.mxu0 0.0
    %1720 = vmatpush2.msra.mxu0 0.0
    %1721 = vmatprep.mubr.f32.mxu0 0.0
    %1722 = vmatmul.mubr.f32.gmra.mxu0 %v1655
    %v1723 = vpop.f32.mrf.mxu0
    %v1724 = vadd.f32 %v308, %v1723
    %v1725 = vpop.f32.mrf.mxu0
    %v1726 = vadd.f32 %v312, %v1725
    %1727 = vdwg.mxu0
    %v1729 = vrot.slane %v1724, 3
    %v1730 = vrot.slane %v1724, 4
    %v1733 = vadd.f32 %v296, %v1729
    %v1734 = vadd.f32 %v301, %v1730
    %v1735 = vxor.u32 %v1733, 2147483648
    %v1736 = vxor.u32 %v1734, 2147483648
    %v1737 = vmul.f32 %v1735, 1.442695
    %v1738 = vpow.pop %v1737
    %v1739 = vmul.f32 %v1736, 1.442695
    %v1740 = vpow.pop %v1739
    %v1741 = vadd.f32 %v1738, 1.0
    %v1742 = vadd.f32 %v1740, 1.0
    %v1743 = vrcp.pop %v1741
    %v1744 = vmul.f32 1.0, %v1743
    %v1745 = vrcp.pop %v1742
    %v1746 = vmul.f32 1.0, %v1745
    %1747 = vrot.lane.b32.xlu0 %v1729, 64
    %v1748 = vpop.permute.xlu0 %1747
    %1749 = vrot.lane.b32.xlu0 %v1730, 64
    %v1750 = vpop.permute.xlu0 %1749
    %v1753 = vmul.f32 %v1744, %v1748
    %v1754 = vmul.f32 %v1746, %v1750
    %1757 = vrot.lane.b32.xlu0 %v1753, 64
    %v1758 = vpop.permute.xlu0 %1757
    %1759 = vrot.lane.b32.xlu0 %v1754, 64
    %v1760 = vpop.permute.xlu0 %1759
    %v1763 = vadd.f32 %v296, %v1758
    %v1764 = vadd.f32 %v301, %v1760
    %v1765 = vtanh.pop %v1763
    %v1766 = vtanh.pop %v1764
    %v1769 = vrot.slane %v1765, 1
    %v1770 = vrot.slane %v1766, 1
    %v1773 = vsub.f32 %v1525, %v1769
    %v1774 = vsub.f32 %v1526, %v1770
    %v1777 = vrot.slane %v1773, 7
    %v1778 = vrot.slane %v1774, 7
    %1779 = vrot.lane.b32.xlu0 %v1777, 96
    %v1780 = vpop.permute.xlu0 %1779
    %1781 = vrot.lane.b32.xlu0 %v1778, 96
    %v1782 = vpop.permute.xlu0 %1781
    %v1785 = vmul.f32 %v1744, %v1780
    %v1786 = vmul.f32 %v1746, %v1782
    %1789 = vrot.lane.b32.xlu0 %v1785, 32
    %v1790 = vpop.permute.xlu0 %1789
    %1791 = vrot.lane.b32.xlu0 %v1786, 32
    %v1792 = vpop.permute.xlu0 %1791
    %v1795 = vadd.f32 %v1765, %v1790
    %v1796 = vadd.f32 %v1766, %v1792
    %v1799 = vrot.slane %v1795, 5
    %v1800 = vrot.slane %v1796, 4
    %v1801 = vsel %vm459, %v1800, %v1799
    %1802 = vrot.lane.b32.xlu0 %v1801, 64
    %v1803 = vpop.permute.xlu0 %1802
    %v1804 = vsel %vm222, %v1803, 0
    %1806 = vmatprep.subr.mxu0 0.0
    %1807 = vmatpush1.msra.mxu0 0.0
    %1808 = vmatprep.subr.mxu0 0.0
    %1809 = vmatpush1.msra.mxu0 0.0
    %1810 = vmatprep.subr.mxu0 0.0
    %1811 = vmatpush1.msra.mxu0 0.0
    %1812 = vmatprep.subr.mxu0 0.0
    %1813 = vmatpush1.msra.mxu0 0.0
    %1814 = vmatprep.subr.mxu0 0.0
    %1815 = vmatpush1.msra.mxu0 0.0
    %1816 = vmatprep.subr.mxu0 0.0
    %1817 = vmatpush1.msra.mxu0 0.0
    %1818 = vmatprep.subr.mxu0 0.0
    %1819 = vmatpush1.msra.mxu0 0.0
    %1820 = vmatprep.subr.mxu0 0.0
    %1821 = vmatpush1.msra.mxu0 0.0
    %1822 = vmatprep.subr.mxu0 0.0
    %1823 = vmatpush1.msra.mxu0 0.0
    %1824 = vmatprep.subr.mxu0 0.0
    %1825 = vmatpush1.msra.mxu0 0.0
    %1826 = vmatprep.subr.mxu0 0.0
    %1827 = vmatpush1.msra.mxu0 0.0
    %1828 = vmatprep.subr.mxu0 0.0
    %1829 = vmatpush1.msra.mxu0 0.0
    %1830 = vmatprep.subr.mxu0 0.0
    %1831 = vmatpush1.msra.mxu0 %v105
    %1832 = vmatprep.subr.mxu0 0.0
    %1833 = vmatpush1.msra.mxu0 %v104
    %1834 = vmatprep.subr.mxu0 0.0
    %1835 = vmatpush1.msra.mxu0 %v103
    %1836 = vmatprep.subr.mxu0 0.0
    %1837 = vmatpush1.msra.mxu0 %v102
    %1838 = vmatprep.subr.mxu0 0.0
    %1839 = vmatpush2.msra.mxu0 0.0
    %1840 = vmatprep.subr.mxu0 0.0
    %1841 = vmatpush2.msra.mxu0 0.0
    %1842 = vmatprep.subr.mxu0 0.0
    %1843 = vmatpush2.msra.mxu0 0.0
    %1844 = vmatprep.subr.mxu0 0.0
    %1845 = vmatpush2.msra.mxu0 0.0
    %1846 = vmatprep.subr.mxu0 0.0
    %1847 = vmatpush2.msra.mxu0 0.0
    %1848 = vmatprep.subr.mxu0 0.0
    %1849 = vmatpush2.msra.mxu0 0.0
    %1850 = vmatprep.subr.mxu0 0.0
    %1851 = vmatpush2.msra.mxu0 0.0
    %1852 = vmatprep.subr.mxu0 0.0
    %1853 = vmatpush2.msra.mxu0 0.0
    %1854 = vmatprep.subr.mxu0 0.0
    %1855 = vmatpush2.msra.mxu0 0.0
    %1856 = vmatprep.subr.mxu0 0.0
    %1857 = vmatpush2.msra.mxu0 0.0
    %1858 = vmatprep.subr.mxu0 0.0
    %1859 = vmatpush2.msra.mxu0 0.0
    %1860 = vmatprep.subr.mxu0 0.0
    %1861 = vmatpush2.msra.mxu0 0.0
    %1862 = vmatprep.subr.mxu0 0.0
    %1863 = vmatpush2.msra.mxu0 0.0
    %1864 = vmatprep.subr.mxu0 0.0
    %1865 = vmatpush2.msra.mxu0 0.0
    %1866 = vmatprep.subr.mxu0 0.0
    %1867 = vmatpush2.msra.mxu0 0.0
    %1868 = vmatprep.subr.mxu0 0.0
    %1869 = vmatpush2.msra.mxu0 0.0
    %1870 = vmatprep.mubr.f32.mxu0 0.0
    %1871 = vmatmul.mubr.f32.gmra.mxu0 %v1804
    %v1872 = vpop.f32.mrf.mxu0
    %v1873 = vadd.f32 %v454, %v1872
    %v1874 = vpop.f32.mrf.mxu0
    %1875 = vdwg.mxu0
    %1877 = vrot.lane.b32.xlu0 %v1724, 32
    %v1878 = vpop.permute.xlu0 %1877
    %1879 = vrot.lane.b32.xlu0 %v1726, 32
    %v1880 = vpop.permute.xlu0 %1879
    %v1881 = vsel %vm222, %v1878, %v1880
    %v1883 = vadd.f32 %v1873, %v1881
    %v1884 = vxor.u32 %v1883, 2147483648
    %v1885 = vmul.f32 %v1884, 1.442695
    %v1886 = vpow.pop %v1885
    %v1887 = vadd.f32 %v1886, 1.0
    %v1888 = vrcp.pop %v1887
    %v1889 = vmul.f32 1.0, %v1888
    %1890 = vrot.lane.b32.xlu0 %v1726, 96
    %v1891 = vpop.permute.xlu0 %1890
    %v1893 = vmul.f32 %v1889, %v1891
    %1895 = vrot.lane.b32.xlu0 %v1893, 64
    %v1896 = vpop.permute.xlu0 %1895
    %v1898 = vadd.f32 %v1873, %v1896
    %v1899 = vtanh.pop %v1898
    %v1900 = vsub.f32 %v1640, %v1899
    %1902 = vrot.lane.b32.xlu0 %v1900, 96
    %v1903 = vpop.permute.xlu0 %1902
    %v1905 = vmul.f32 %v1889, %v1903
    %1907 = vrot.lane.b32.xlu0 %v1905, 32
    %v1908 = vpop.permute.xlu0 %1907
    %v1910 = vadd.f32 %v1899, %v1908
    %v1911 = vrot.slane %v1796, 7
    %vm1912 = vcmask 1046534
    %v1913 = vsel %vm1912, %v1911, %v1795
    %1914 = vrot.lane.b32.xlu0 %v1913, 64
    %v1915 = vpop.permute.xlu0 %1914
    %v1918 = vrot.slane %v1910, 3
    %1919 = vrot.lane.b32.xlu0 %v1918, 96
    %v1920 = vpop.permute.xlu0 %1919
    %v1922 = vsel %vm222, %v1915, %v1920
    %v1924 = vrot.slane %v1922, 5
    %v1925 = vsel %vm315, %v1924, 0
    %1927 = vmatprep.subr.mxu0 0.0
    %1928 = vmatpush1.msra.mxu0 0.0
    %1929 = vmatprep.subr.mxu0 0.0
    %1930 = vmatpush1.msra.mxu0 0.0
    %1931 = vmatprep.subr.mxu0 0.0
    %1932 = vmatpush1.msra.mxu0 0.0
    %1933 = vmatprep.subr.mxu0 0.0
    %1934 = vmatpush1.msra.mxu0 0.0
    %1935 = vmatprep.subr.mxu0 0.0
    %1936 = vmatpush1.msra.mxu0 0.0
    %1937 = vmatprep.subr.mxu0 0.0
    %1938 = vmatpush1.msra.mxu0 0.0
    %1939 = vmatprep.subr.mxu0 0.0
    %1940 = vmatpush1.msra.mxu0 0.0
    %1941 = vmatprep.subr.mxu0 0.0
    %1942 = vmatpush1.msra.mxu0 0.0
    %1943 = vmatprep.subr.mxu0 %v100
    %1944 = vmatpush1.msra.mxu0 %v99
    %1945 = vmatprep.subr.mxu0 %v98
    %1946 = vmatpush1.msra.mxu0 %v97
    %1947 = vmatprep.subr.mxu0 %v96
    %1948 = vmatpush1.msra.mxu0 %v95
    %1949 = vmatprep.subr.mxu0 %v94
    %1950 = vmatpush1.msra.mxu0 %v93
    %1951 = vmatprep.subr.mxu0 %v92
    %1952 = vmatpush1.msra.mxu0 %v91
    %1953 = vmatprep.subr.mxu0 %v90
    %1954 = vmatpush1.msra.mxu0 %v89
    %1955 = vmatprep.subr.mxu0 %v88
    %1956 = vmatpush1.msra.mxu0 %v87
    %1957 = vmatprep.subr.mxu0 %v86
    %1958 = vmatpush1.msra.mxu0 %v85
    %1959 = vmatprep.subr.mxu0 0.0
    %1960 = vmatpush2.msra.mxu0 0.0
    %1961 = vmatprep.subr.mxu0 0.0
    %1962 = vmatpush2.msra.mxu0 0.0
    %1963 = vmatprep.subr.mxu0 0.0
    %1964 = vmatpush2.msra.mxu0 0.0
    %1965 = vmatprep.subr.mxu0 0.0
    %1966 = vmatpush2.msra.mxu0 0.0
    %1967 = vmatprep.subr.mxu0 0.0
    %1968 = vmatpush2.msra.mxu0 0.0
    %1969 = vmatprep.subr.mxu0 0.0
    %1970 = vmatpush2.msra.mxu0 0.0
    %1971 = vmatprep.subr.mxu0 0.0
    %1972 = vmatpush2.msra.mxu0 0.0
    %1973 = vmatprep.subr.mxu0 0.0
    %1974 = vmatpush2.msra.mxu0 0.0
    %1975 = vmatprep.subr.mxu0 0.0
    %1976 = vmatpush2.msra.mxu0 0.0
    %1977 = vmatprep.subr.mxu0 0.0
    %1978 = vmatpush2.msra.mxu0 0.0
    %1979 = vmatprep.subr.mxu0 0.0
    %1980 = vmatpush2.msra.mxu0 0.0
    %1981 = vmatprep.subr.mxu0 0.0
    %1982 = vmatpush2.msra.mxu0 0.0
    %1983 = vmatprep.subr.mxu0 0.0
    %1984 = vmatpush2.msra.mxu0 0.0
    %1985 = vmatprep.subr.mxu0 0.0
    %1986 = vmatpush2.msra.mxu0 0.0
    %1987 = vmatprep.subr.mxu0 0.0
    %1988 = vmatpush2.msra.mxu0 0.0
    %1989 = vmatprep.subr.mxu0 0.0
    %1990 = vmatpush2.msra.mxu0 0.0
    %1991 = vmatprep.mubr.f32.mxu0 0.0
    %1992 = vmatmul.mubr.f32.gmra.mxu0 %v1925
    %v1993 = vpop.f32.mrf.mxu0
    %v1994 = vadd.f32 %v308, %v1993
    %v1995 = vpop.f32.mrf.mxu0
    %v1996 = vadd.f32 %v312, %v1995
    %1997 = vdwg.mxu0
    %v1999 = vrot.slane %v1994, 2
    %v2000 = vrot.slane %v1994, 3
    %v2003 = vadd.f32 %v296, %v1999
    %v2004 = vadd.f32 %v301, %v2000
    %v2005 = vxor.u32 %v2003, 2147483648
    %v2006 = vxor.u32 %v2004, 2147483648
    %v2007 = vmul.f32 %v2005, 1.442695
    %v2008 = vpow.pop %v2007
    %v2009 = vmul.f32 %v2006, 1.442695
    %v2010 = vpow.pop %v2009
    %v2011 = vadd.f32 %v2008, 1.0
    %v2012 = vadd.f32 %v2010, 1.0
    %v2013 = vrcp.pop %v2011
    %v2014 = vmul.f32 1.0, %v2013
    %v2015 = vrcp.pop %v2012
    %v2016 = vmul.f32 1.0, %v2015
    %2017 = vrot.lane.b32.xlu0 %v1999, 64
    %v2018 = vpop.permute.xlu0 %2017
    %2019 = vrot.lane.b32.xlu0 %v2000, 64
    %v2020 = vpop.permute.xlu0 %2019
    %v2023 = vmul.f32 %v2014, %v2018
    %v2024 = vmul.f32 %v2016, %v2020
    %2027 = vrot.lane.b32.xlu0 %v2023, 64
    %v2028 = vpop.permute.xlu0 %2027
    %2029 = vrot.lane.b32.xlu0 %v2024, 64
    %v2030 = vpop.permute.xlu0 %2029
    %v2033 = vadd.f32 %v296, %v2028
    %v2034 = vadd.f32 %v301, %v2030
    %v2035 = vtanh.pop %v2033
    %v2036 = vtanh.pop %v2034
    %v2039 = vrot.slane %v2035, 1
    %v2040 = vrot.slane %v2036, 1
    %v2043 = vsub.f32 %v1795, %v2039
    %v2044 = vsub.f32 %v1796, %v2040
    %v2047 = vrot.slane %v2043, 7
    %v2048 = vrot.slane %v2044, 7
    %2049 = vrot.lane.b32.xlu0 %v2047, 96
    %v2050 = vpop.permute.xlu0 %2049
    %2051 = vrot.lane.b32.xlu0 %v2048, 96
    %v2052 = vpop.permute.xlu0 %2051
    %v2055 = vmul.f32 %v2014, %v2050
    %v2056 = vmul.f32 %v2016, %v2052
    %2059 = vrot.lane.b32.xlu0 %v2055, 32
    %v2060 = vpop.permute.xlu0 %2059
    %2061 = vrot.lane.b32.xlu0 %v2056, 32
    %v2062 = vpop.permute.xlu0 %2061
    %v2065 = vadd.f32 %v2035, %v2060
    %v2066 = vadd.f32 %v2036, %v2062
    %v2069 = vrot.slane %v2065, 6
    %v2070 = vrot.slane %v2066, 5
    %v2071 = vsel %vm459, %v2070, %v2069
    %2072 = vrot.lane.b32.xlu0 %v2071, 64
    %v2073 = vpop.permute.xlu0 %2072
    %v2074 = vsel %vm222, %v2073, 0
    %2076 = vmatprep.subr.mxu0 0.0
    %2077 = vmatpush1.msra.mxu0 0.0
    %2078 = vmatprep.subr.mxu0 0.0
    %2079 = vmatpush1.msra.mxu0 0.0
    %2080 = vmatprep.subr.mxu0 0.0
    %2081 = vmatpush1.msra.mxu0 0.0
    %2082 = vmatprep.subr.mxu0 0.0
    %2083 = vmatpush1.msra.mxu0 0.0
    %2084 = vmatprep.subr.mxu0 0.0
    %2085 = vmatpush1.msra.mxu0 0.0
    %2086 = vmatprep.subr.mxu0 0.0
    %2087 = vmatpush1.msra.mxu0 0.0
    %2088 = vmatprep.subr.mxu0 0.0
    %2089 = vmatpush1.msra.mxu0 0.0
    %2090 = vmatprep.subr.mxu0 0.0
    %2091 = vmatpush1.msra.mxu0 0.0
    %2092 = vmatprep.subr.mxu0 0.0
    %2093 = vmatpush1.msra.mxu0 0.0
    %2094 = vmatprep.subr.mxu0 0.0
    %2095 = vmatpush1.msra.mxu0 0.0
    %2096 = vmatprep.subr.mxu0 0.0
    %2097 = vmatpush1.msra.mxu0 0.0
    %2098 = vmatprep.subr.mxu0 0.0
    %2099 = vmatpush1.msra.mxu0 0.0
    %2100 = vmatprep.subr.mxu0 0.0
    %2101 = vmatpush1.msra.mxu0 %v105
    %2102 = vmatprep.subr.mxu0 0.0
    %2103 = vmatpush1.msra.mxu0 %v104
    %2104 = vmatprep.subr.mxu0 0.0
    %2105 = vmatpush1.msra.mxu0 %v103
    %2106 = vmatprep.subr.mxu0 0.0
    %2107 = vmatpush1.msra.mxu0 %v102
    %2108 = vmatprep.subr.mxu0 0.0
    %2109 = vmatpush2.msra.mxu0 0.0
    %2110 = vmatprep.subr.mxu0 0.0
    %2111 = vmatpush2.msra.mxu0 0.0
    %2112 = vmatprep.subr.mxu0 0.0
    %2113 = vmatpush2.msra.mxu0 0.0
    %2114 = vmatprep.subr.mxu0 0.0
    %2115 = vmatpush2.msra.mxu0 0.0
    %2116 = vmatprep.subr.mxu0 0.0
    %2117 = vmatpush2.msra.mxu0 0.0
    %2118 = vmatprep.subr.mxu0 0.0
    %2119 = vmatpush2.msra.mxu0 0.0
    %2120 = vmatprep.subr.mxu0 0.0
    %2121 = vmatpush2.msra.mxu0 0.0
    %2122 = vmatprep.subr.mxu0 0.0
    %2123 = vmatpush2.msra.mxu0 0.0
    %2124 = vmatprep.subr.mxu0 0.0
    %2125 = vmatpush2.msra.mxu0 0.0
    %2126 = vmatprep.subr.mxu0 0.0
    %2127 = vmatpush2.msra.mxu0 0.0
    %2128 = vmatprep.subr.mxu0 0.0
    %2129 = vmatpush2.msra.mxu0 0.0
    %2130 = vmatprep.subr.mxu0 0.0
    %2131 = vmatpush2.msra.mxu0 0.0
    %2132 = vmatprep.subr.mxu0 0.0
    %2133 = vmatpush2.msra.mxu0 0.0
    %2134 = vmatprep.subr.mxu0 0.0
    %2135 = vmatpush2.msra.mxu0 0.0
    %2136 = vmatprep.subr.mxu0 0.0
    %2137 = vmatpush2.msra.mxu0 0.0
    %2138 = vmatprep.subr.mxu0 0.0
    %2139 = vmatpush2.msra.mxu0 0.0
    %2140 = vmatprep.mubr.f32.mxu0 0.0
    %2141 = vmatmul.mubr.f32.gmra.mxu0 %v2074
    %v2142 = vpop.f32.mrf.mxu0
    %v2143 = vadd.f32 %v454, %v2142
    %v2144 = vpop.f32.mrf.mxu0
    %2145 = vdwg.mxu0
    %2147 = vrot.lane.b32.xlu0 %v1994, 32
    %v2148 = vpop.permute.xlu0 %2147
    %2149 = vrot.lane.b32.xlu0 %v1996, 32
    %v2150 = vpop.permute.xlu0 %2149
    %v2151 = vsel %vm222, %v2148, %v2150
    %v2153 = vadd.f32 %v2143, %v2151
    %v2154 = vxor.u32 %v2153, 2147483648
    %v2155 = vmul.f32 %v2154, 1.442695
    %v2156 = vpow.pop %v2155
    %v2157 = vadd.f32 %v2156, 1.0
    %v2158 = vrcp.pop %v2157
    %v2159 = vmul.f32 1.0, %v2158
    %2160 = vrot.lane.b32.xlu0 %v1996, 96
    %v2161 = vpop.permute.xlu0 %2160
    %v2163 = vmul.f32 %v2159, %v2161
    %2165 = vrot.lane.b32.xlu0 %v2163, 64
    %v2166 = vpop.permute.xlu0 %2165
    %v2168 = vadd.f32 %v2143, %v2166
    %v2169 = vtanh.pop %v2168
    %v2170 = vsub.f32 %v1910, %v2169
    %2172 = vrot.lane.b32.xlu0 %v2170, 96
    %v2173 = vpop.permute.xlu0 %2172
    %v2175 = vmul.f32 %v2159, %v2173
    %2177 = vrot.lane.b32.xlu0 %v2175, 32
    %v2178 = vpop.permute.xlu0 %2177
    %v2180 = vadd.f32 %v2169, %v2178
    %v2181 = vrot.slane %v2066, 7
    %vm2182 = vcmask 1047559
    %v2183 = vsel %vm2182, %v2181, %v2065
    %2184 = vrot.lane.b32.xlu0 %v2183, 64
    %v2185 = vpop.permute.xlu0 %2184
    %v2188 = vrot.slane %v2180, 2
    %2189 = vrot.lane.b32.xlu0 %v2188, 96
    %v2190 = vpop.permute.xlu0 %2189
    %v2192 = vsel %vm222, %v2185, %v2190
    %v2194 = vrot.slane %v2192, 6
    %v2195 = vsel %vm315, %v2194, 0
    %2197 = vmatprep.subr.mxu0 0.0
    %2198 = vmatpush1.msra.mxu0 0.0
    %2199 = vmatprep.subr.mxu0 0.0
    %2200 = vmatpush1.msra.mxu0 0.0
    %2201 = vmatprep.subr.mxu0 0.0
    %2202 = vmatpush1.msra.mxu0 0.0
    %2203 = vmatprep.subr.mxu0 0.0
    %2204 = vmatpush1.msra.mxu0 0.0
    %2205 = vmatprep.subr.mxu0 0.0
    %2206 = vmatpush1.msra.mxu0 0.0
    %2207 = vmatprep.subr.mxu0 0.0
    %2208 = vmatpush1.msra.mxu0 0.0
    %2209 = vmatprep.subr.mxu0 0.0
    %2210 = vmatpush1.msra.mxu0 0.0
    %2211 = vmatprep.subr.mxu0 0.0
    %2212 = vmatpush1.msra.mxu0 0.0
    %2213 = vmatprep.subr.mxu0 %v100
    %2214 = vmatpush1.msra.mxu0 %v99
    %2215 = vmatprep.subr.mxu0 %v98
    %2216 = vmatpush1.msra.mxu0 %v97
    %2217 = vmatprep.subr.mxu0 %v96
    %2218 = vmatpush1.msra.mxu0 %v95
    %2219 = vmatprep.subr.mxu0 %v94
    %2220 = vmatpush1.msra.mxu0 %v93
    %2221 = vmatprep.subr.mxu0 %v92
    %2222 = vmatpush1.msra.mxu0 %v91
    %2223 = vmatprep.subr.mxu0 %v90
    %2224 = vmatpush1.msra.mxu0 %v89
    %2225 = vmatprep.subr.mxu0 %v88
    %2226 = vmatpush1.msra.mxu0 %v87
    %2227 = vmatprep.subr.mxu0 %v86
    %2228 = vmatpush1.msra.mxu0 %v85
    %2229 = vmatprep.subr.mxu0 0.0
    %2230 = vmatpush2.msra.mxu0 0.0
    %2231 = vmatprep.subr.mxu0 0.0
    %2232 = vmatpush2.msra.mxu0 0.0
    %2233 = vmatprep.subr.mxu0 0.0
    %2234 = vmatpush2.msra.mxu0 0.0
    %2235 = vmatprep.subr.mxu0 0.0
    %2236 = vmatpush2.msra.mxu0 0.0
    %2237 = vmatprep.subr.mxu0 0.0
    %2238 = vmatpush2.msra.mxu0 0.0
    %2239 = vmatprep.subr.mxu0 0.0
    %2240 = vmatpush2.msra.mxu0 0.0
    %2241 = vmatprep.subr.mxu0 0.0
    %2242 = vmatpush2.msra.mxu0 0.0
    %2243 = vmatprep.subr.mxu0 0.0
    %2244 = vmatpush2.msra.mxu0 0.0
    %2245 = vmatprep.subr.mxu0 0.0
    %2246 = vmatpush2.msra.mxu0 0.0
    %2247 = vmatprep.subr.mxu0 0.0
    %2248 = vmatpush2.msra.mxu0 0.0
    %2249 = vmatprep.subr.mxu0 0.0
    %2250 = vmatpush2.msra.mxu0 0.0
    %2251 = vmatprep.subr.mxu0 0.0
    %2252 = vmatpush2.msra.mxu0 0.0
    %2253 = vmatprep.subr.mxu0 0.0
    %2254 = vmatpush2.msra.mxu0 0.0
    %2255 = vmatprep.subr.mxu0 0.0
    %2256 = vmatpush2.msra.mxu0 0.0
    %2257 = vmatprep.subr.mxu0 0.0
    %2258 = vmatpush2.msra.mxu0 0.0
    %2259 = vmatprep.subr.mxu0 0.0
    %2260 = vmatpush2.msra.mxu0 0.0
    %2261 = vmatprep.mubr.f32.mxu0 0.0
    %2262 = vmatmul.mubr.f32.gmra.mxu0 %v2195
    %v2263 = vpop.f32.mrf.mxu0
    %v2264 = vadd.f32 %v308, %v2263
    %v2265 = vpop.f32.mrf.mxu0
    %v2266 = vadd.f32 %v312, %v2265
    %2267 = vdwg.mxu0
    %v2269 = vrot.slane %v2264, 1
    %v2270 = vrot.slane %v2264, 2
    %v2273 = vadd.f32 %v296, %v2269
    %v2274 = vadd.f32 %v301, %v2270
    %v2275 = vxor.u32 %v2273, 2147483648
    %v2276 = vxor.u32 %v2274, 2147483648
    %v2277 = vmul.f32 %v2275, 1.442695
    %v2278 = vpow.pop %v2277
    %v2279 = vmul.f32 %v2276, 1.442695
    %v2280 = vpow.pop %v2279
    %v2281 = vadd.f32 %v2278, 1.0
    %v2282 = vadd.f32 %v2280, 1.0
    %v2283 = vrcp.pop %v2281
    %v2284 = vmul.f32 1.0, %v2283
    %v2285 = vrcp.pop %v2282
    %v2286 = vmul.f32 1.0, %v2285
    %2287 = vrot.lane.b32.xlu0 %v2269, 64
    %v2288 = vpop.permute.xlu0 %2287
    %2289 = vrot.lane.b32.xlu0 %v2270, 64
    %v2290 = vpop.permute.xlu0 %2289
    %v2293 = vmul.f32 %v2284, %v2288
    %v2294 = vmul.f32 %v2286, %v2290
    %2297 = vrot.lane.b32.xlu0 %v2293, 64
    %v2298 = vpop.permute.xlu0 %2297
    %2299 = vrot.lane.b32.xlu0 %v2294, 64
    %v2300 = vpop.permute.xlu0 %2299
    %v2303 = vadd.f32 %v296, %v2298
    %v2304 = vadd.f32 %v301, %v2300
    %v2305 = vtanh.pop %v2303
    %v2306 = vtanh.pop %v2304
    %v2309 = vrot.slane %v2305, 1
    %v2310 = vrot.slane %v2306, 1
    %v2313 = vsub.f32 %v2065, %v2309
    %v2314 = vsub.f32 %v2066, %v2310
    %v2317 = vrot.slane %v2313, 7
    %v2318 = vrot.slane %v2314, 7
    %2319 = vrot.lane.b32.xlu0 %v2317, 96
    %v2320 = vpop.permute.xlu0 %2319
    %2321 = vrot.lane.b32.xlu0 %v2318, 96
    %v2322 = vpop.permute.xlu0 %2321
    %v2325 = vmul.f32 %v2284, %v2320
    %v2326 = vmul.f32 %v2286, %v2322
    %2329 = vrot.lane.b32.xlu0 %v2325, 32
    %v2330 = vpop.permute.xlu0 %2329
    %2331 = vrot.lane.b32.xlu0 %v2326, 32
    %v2332 = vpop.permute.xlu0 %2331
    %v2335 = vadd.f32 %v2305, %v2330
    %v2336 = vadd.f32 %v2306, %v2332
    %v2339 = vrot.slane %v2335, 7
    %v2340 = vrot.slane %v2336, 6
    %v2341 = vsel %vm459, %v2340, %v2339
    %2342 = vrot.lane.b32.xlu0 %v2341, 64
    %v2343 = vpop.permute.xlu0 %2342
    %v2344 = vsel %vm222, %v2343, 0
    %2346 = vmatprep.subr.mxu0 0.0
    %2347 = vmatpush1.msra.mxu0 0.0
    %2348 = vmatprep.subr.mxu0 0.0
    %2349 = vmatpush1.msra.mxu0 0.0
    %2350 = vmatprep.subr.mxu0 0.0
    %2351 = vmatpush1.msra.mxu0 0.0
    %2352 = vmatprep.subr.mxu0 0.0
    %2353 = vmatpush1.msra.mxu0 0.0
    %2354 = vmatprep.subr.mxu0 0.0
    %2355 = vmatpush1.msra.mxu0 0.0
    %2356 = vmatprep.subr.mxu0 0.0
    %2357 = vmatpush1.msra.mxu0 0.0
    %2358 = vmatprep.subr.mxu0 0.0
    %2359 = vmatpush1.msra.mxu0 0.0
    %2360 = vmatprep.subr.mxu0 0.0
    %2361 = vmatpush1.msra.mxu0 0.0
    %2362 = vmatprep.subr.mxu0 0.0
    %2363 = vmatpush1.msra.mxu0 0.0
    %2364 = vmatprep.subr.mxu0 0.0
    %2365 = vmatpush1.msra.mxu0 0.0
    %2366 = vmatprep.subr.mxu0 0.0
    %2367 = vmatpush1.msra.mxu0 0.0
    %2368 = vmatprep.subr.mxu0 0.0
    %2369 = vmatpush1.msra.mxu0 0.0
    %2370 = vmatprep.subr.mxu0 0.0
    %2371 = vmatpush1.msra.mxu0 %v105
    %2372 = vmatprep.subr.mxu0 0.0
    %2373 = vmatpush1.msra.mxu0 %v104
    %2374 = vmatprep.subr.mxu0 0.0
    %2375 = vmatpush1.msra.mxu0 %v103
    %2376 = vmatprep.subr.mxu0 0.0
    %2377 = vmatpush1.msra.mxu0 %v102
    %2378 = vmatprep.subr.mxu0 0.0
    %2379 = vmatpush2.msra.mxu0 0.0
    %2380 = vmatprep.subr.mxu0 0.0
    %2381 = vmatpush2.msra.mxu0 0.0
    %2382 = vmatprep.subr.mxu0 0.0
    %2383 = vmatpush2.msra.mxu0 0.0
    %2384 = vmatprep.subr.mxu0 0.0
    %2385 = vmatpush2.msra.mxu0 0.0
    %2386 = vmatprep.subr.mxu0 0.0
    %2387 = vmatpush2.msra.mxu0 0.0
    %2388 = vmatprep.subr.mxu0 0.0
    %2389 = vmatpush2.msra.mxu0 0.0
    %2390 = vmatprep.subr.mxu0 0.0
    %2391 = vmatpush2.msra.mxu0 0.0
    %2392 = vmatprep.subr.mxu0 0.0
    %2393 = vmatpush2.msra.mxu0 0.0
    %2394 = vmatprep.subr.mxu0 0.0
    %2395 = vmatpush2.msra.mxu0 0.0
    %2396 = vmatprep.subr.mxu0 0.0
    %2397 = vmatpush2.msra.mxu0 0.0
    %2398 = vmatprep.subr.mxu0 0.0
    %2399 = vmatpush2.msra.mxu0 0.0
    %2400 = vmatprep.subr.mxu0 0.0
    %2401 = vmatpush2.msra.mxu0 0.0
    %2402 = vmatprep.subr.mxu0 0.0
    %2403 = vmatpush2.msra.mxu0 0.0
    %2404 = vmatprep.subr.mxu0 0.0
    %2405 = vmatpush2.msra.mxu0 0.0
    %2406 = vmatprep.subr.mxu0 0.0
    %2407 = vmatpush2.msra.mxu0 0.0
    %2408 = vmatprep.subr.mxu0 0.0
    %2409 = vmatpush2.msra.mxu0 0.0
    %2410 = vmatprep.mubr.f32.mxu0 0.0
    %2411 = vmatmul.mubr.f32.gmra.mxu0 %v2344
    %v2412 = vpop.f32.mrf.mxu0
    %v2413 = vadd.f32 %v454, %v2412
    %v2414 = vpop.f32.mrf.mxu0
    %2415 = vdwg.mxu0
    %2417 = vrot.lane.b32.xlu0 %v2264, 32
    %v2418 = vpop.permute.xlu0 %2417
    %2419 = vrot.lane.b32.xlu0 %v2266, 32
    %v2420 = vpop.permute.xlu0 %2419
    %v2421 = vsel %vm222, %v2418, %v2420
    %v2423 = vadd.f32 %v2413, %v2421
    %v2424 = vxor.u32 %v2423, 2147483648
    %v2425 = vmul.f32 %v2424, 1.442695
    %v2426 = vpow.pop %v2425
    %v2427 = vadd.f32 %v2426, 1.0
    %v2428 = vrcp.pop %v2427
    %v2429 = vmul.f32 1.0, %v2428
    %2430 = vrot.lane.b32.xlu0 %v2266, 96
    %v2431 = vpop.permute.xlu0 %2430
    %v2433 = vmul.f32 %v2429, %v2431
    %2435 = vrot.lane.b32.xlu0 %v2433, 64
    %v2436 = vpop.permute.xlu0 %2435
    %v2438 = vadd.f32 %v2413, %v2436
    %v2439 = vtanh.pop %v2438
    %v2440 = vsub.f32 %v2180, %v2439
    %2442 = vrot.lane.b32.xlu0 %v2440, 96
    %v2443 = vpop.permute.xlu0 %2442
    %v2445 = vmul.f32 %v2429, %v2443
    %2447 = vrot.lane.b32.xlu0 %v2445, 32
    %v2448 = vpop.permute.xlu0 %2447
    %v2450 = vadd.f32 %v2439, %v2448
    %v2452 = vunpack.c.l.s4 1966171168
    %v2453 = vunpack.c.0.s8 %v2452
    %v2454 = vlaneseq
    %v2455 = vshrl.u32 %v2454, 7
    %v2456 = vsub.s32 %v2453, %v2455
    %v2457 = vrot.slane %v569, %v2456
    %v2458 = vcombine.high %v2457, %v2457
    %v2460 = vunpack.c.l.s4 1966171168
    %v2461 = vunpack.c.0.s8 %v2460
    %v2462 = vlaneseq
    %v2463 = vshrl.u32 %v2462, 7
    %v2464 = vsub.s32 %v2461, %v2463
    %v2465 = vrot.slane %v2457, %v2464
    %v2467 = vunpack.c.l.s4 1966171168
    %v2468 = vunpack.c.0.s8 %v2467
    %v2469 = vlaneseq
    %v2470 = vshrl.u32 %v2469, 7
    %v2471 = vsub.s32 %v2468, %v2470
    %v2472 = vrot.slane %v2458, %v2471
    %v2476 = vunpack.c.l.s4 1966171168
    %v2477 = vunpack.c.0.s8 %v2476
    %v2478 = vlaneseq
    %v2479 = vshrl.u32 %v2478, 7
    %v2480 = vsub.s32 %v2477, %v2479
    %v2481 = vrot.slane %v830, %v2480
    %v2482 = vcombine.high %v2481, %v2481
    %v2484 = vunpack.c.l.s4 1966171168
    %v2485 = vunpack.c.0.s8 %v2484
    %v2486 = vlaneseq
    %v2487 = vshrl.u32 %v2486, 7
    %v2488 = vsub.s32 %v2485, %v2487
    %v2489 = vrot.slane %v2481, %v2488
    %v2491 = vunpack.c.l.s4 1966171168
    %v2492 = vunpack.c.0.s8 %v2491
    %v2493 = vlaneseq
    %v2494 = vshrl.u32 %v2493, 7
    %v2495 = vsub.s32 %v2492, %v2494
    %v2496 = vrot.slane %v2482, %v2495
    %v2498 = vunpack.c.l.s4 1966171168
    %v2499 = vunpack.c.0.s8 %v2498
    %v2500 = vlaneseq
    %v2501 = vshrl.u32 %v2500, 7
    %v2502 = vsub.s32 %v2499, %v2501
    %v2503 = vrot.slane %v1100, %v2502
    %v2504 = vcombine.high %v2503, %v2503
    %v2506 = vunpack.c.l.s4 1966171168
    %v2507 = vunpack.c.0.s8 %v2506
    %v2508 = vlaneseq
    %v2509 = vshrl.u32 %v2508, 7
    %v2510 = vsub.s32 %v2507, %v2509
    %v2511 = vrot.slane %v2503, %v2510
    %v2513 = vunpack.c.l.s4 1966171168
    %v2514 = vunpack.c.0.s8 %v2513
    %v2515 = vlaneseq
    %v2516 = vshrl.u32 %v2515, 7
    %v2517 = vsub.s32 %v2514, %v2516
    %v2518 = vrot.slane %v2504, %v2517
    %v2520 = vunpack.c.l.s4 1966171168
    %v2521 = vunpack.c.0.s8 %v2520
    %v2522 = vlaneseq
    %v2523 = vshrl.u32 %v2522, 7
    %v2524 = vsub.s32 %v2521, %v2523
    %v2525 = vrot.slane %v1370, %v2524
    %v2526 = vcombine.high %v2525, %v2525
    %v2528 = vunpack.c.l.s4 1966171168
    %v2529 = vunpack.c.0.s8 %v2528
    %v2530 = vlaneseq
    %v2531 = vshrl.u32 %v2530, 7
    %v2532 = vsub.s32 %v2529, %v2531
    %v2533 = vrot.slane %v2525, %v2532
    %v2535 = vunpack.c.l.s4 1966171168
    %v2536 = vunpack.c.0.s8 %v2535
    %v2537 = vlaneseq
    %v2538 = vshrl.u32 %v2537, 7
    %v2539 = vsub.s32 %v2536, %v2538
    %v2540 = vrot.slane %v2526, %v2539
    %v2542 = vunpack.c.l.s4 1966171168
    %v2543 = vunpack.c.0.s8 %v2542
    %v2544 = vlaneseq
    %v2545 = vshrl.u32 %v2544, 7
    %v2546 = vsub.s32 %v2543, %v2545
    %v2547 = vrot.slane %v1640, %v2546
    %v2548 = vcombine.high %v2547, %v2547
    %v2550 = vunpack.c.l.s4 1966171168
    %v2551 = vunpack.c.0.s8 %v2550
    %v2552 = vlaneseq
    %v2553 = vshrl.u32 %v2552, 7
    %v2554 = vsub.s32 %v2551, %v2553
    %v2555 = vrot.slane %v2547, %v2554
    %v2557 = vunpack.c.l.s4 1966171168
    %v2558 = vunpack.c.0.s8 %v2557
    %v2559 = vlaneseq
    %v2560 = vshrl.u32 %v2559, 7
    %v2561 = vsub.s32 %v2558, %v2560
    %v2562 = vrot.slane %v2548, %v2561
    %v2564 = vunpack.c.l.s4 1966171168
    %v2565 = vunpack.c.0.s8 %v2564
    %v2566 = vlaneseq
    %v2567 = vshrl.u32 %v2566, 7
    %v2568 = vsub.s32 %v2565, %v2567
    %v2569 = vrot.slane %v1910, %v2568
    %v2570 = vcombine.high %v2569, %v2569
    %v2572 = vunpack.c.l.s4 1966171168
    %v2573 = vunpack.c.0.s8 %v2572
    %v2574 = vlaneseq
    %v2575 = vshrl.u32 %v2574, 7
    %v2576 = vsub.s32 %v2573, %v2575
    %v2577 = vrot.slane %v2569, %v2576
    %v2579 = vunpack.c.l.s4 1966171168
    %v2580 = vunpack.c.0.s8 %v2579
    %v2581 = vlaneseq
    %v2582 = vshrl.u32 %v2581, 7
    %v2583 = vsub.s32 %v2580, %v2582
    %v2584 = vrot.slane %v2570, %v2583
    %v2586 = vunpack.c.l.s4 1966171168
    %v2587 = vunpack.c.0.s8 %v2586
    %v2588 = vlaneseq
    %v2589 = vshrl.u32 %v2588, 7
    %v2590 = vsub.s32 %v2587, %v2589
    %v2591 = vrot.slane %v2180, %v2590
    %v2592 = vcombine.high %v2591, %v2591
    %v2594 = vunpack.c.l.s4 1966171168
    %v2595 = vunpack.c.0.s8 %v2594
    %v2596 = vlaneseq
    %v2597 = vshrl.u32 %v2596, 7
    %v2598 = vsub.s32 %v2595, %v2597
    %v2599 = vrot.slane %v2591, %v2598
    %v2601 = vunpack.c.l.s4 1966171168
    %v2602 = vunpack.c.0.s8 %v2601
    %v2603 = vlaneseq
    %v2604 = vshrl.u32 %v2603, 7
    %v2605 = vsub.s32 %v2602, %v2604
    %v2606 = vrot.slane %v2592, %v2605
    %v2609 = vunpack.c.l.s4 1966171168
    %v2610 = vunpack.c.0.s8 %v2609
    %v2611 = vlaneseq
    %v2612 = vshrl.u32 %v2611, 7
    %v2613 = vsub.s32 %v2610, %v2612
    %v2614 = vrot.slane %v2450, %v2613
    %v2615 = vcombine.high %v2614, %v2614
    %v2617 = vunpack.c.l.s4 1966171168
    %v2618 = vunpack.c.0.s8 %v2617
    %v2619 = vlaneseq
    %v2620 = vshrl.u32 %v2619, 7
    %v2621 = vsub.s32 %v2618, %v2620
    %v2622 = vrot.slane %v2614, %v2621
    %v2624 = vunpack.c.l.s4 1966171168
    %v2625 = vunpack.c.0.s8 %v2624
    %v2626 = vlaneseq
    %v2627 = vshrl.u32 %v2626, 7
    %v2628 = vsub.s32 %v2625, %v2627
    %v2629 = vrot.slane %v2615, %v2628
    %v2630 = vlaneseq
    %v2631 = vshrl.u32 %v2630, 7
    %v2632 = vsub.s32 0, %v2631
    %v2633 = vrot.slane %v2489, %v2632
    %v2634 = vlaneseq
    %v2635 = vshrl.u32 %v2634, 7
    %v2636 = vsub.s32 0, %v2635
    %v2637 = vrot.slane %v2496, %v2636
    %v2640 = vlaneseq
    %v2641 = vshrl.u32 %v2640, 7
    %v2642 = vsub.s32 0, %v2641
    %v2643 = vrot.slane %v2511, %v2642
    %v2644 = vlaneseq
    %v2645 = vshrl.u32 %v2644, 7
    %v2646 = vsub.s32 0, %v2645
    %v2647 = vrot.slane %v2518, %v2646
    %v2650 = vlaneseq
    %v2651 = vshrl.u32 %v2650, 7
    %v2652 = vsub.s32 0, %v2651
    %v2653 = vrot.slane %v2533, %v2652
    %v2654 = vlaneseq
    %v2655 = vshrl.u32 %v2654, 7
    %v2656 = vsub.s32 0, %v2655
    %v2657 = vrot.slane %v2540, %v2656
    %v2660 = vlaneseq
    %v2661 = vshrl.u32 %v2660, 7
    %v2662 = vsub.s32 0, %v2661
    %v2663 = vrot.slane %v2555, %v2662
    %v2664 = vlaneseq
    %v2665 = vshrl.u32 %v2664, 7
    %v2666 = vsub.s32 0, %v2665
    %v2667 = vrot.slane %v2562, %v2666
    %v2670 = vlaneseq
    %v2671 = vshrl.u32 %v2670, 7
    %v2672 = vsub.s32 0, %v2671
    %v2673 = vrot.slane %v2577, %v2672
    %v2674 = vlaneseq
    %v2675 = vshrl.u32 %v2674, 7
    %v2676 = vsub.s32 0, %v2675
    %v2677 = vrot.slane %v2584, %v2676
    %v2680 = vlaneseq
    %v2681 = vshrl.u32 %v2680, 7
    %v2682 = vsub.s32 0, %v2681
    %v2683 = vrot.slane %v2599, %v2682
    %v2684 = vlaneseq
    %v2685 = vshrl.u32 %v2684, 7
    %v2686 = vsub.s32 0, %v2685
    %v2687 = vrot.slane %v2606, %v2686
    %v2690 = vlaneseq
    %v2691 = vshrl.u32 %v2690, 7
    %v2692 = vsub.s32 0, %v2691
    %v2693 = vrot.slane %v2622, %v2692
    %v2694 = vlaneseq
    %v2695 = vshrl.u32 %v2694, 7
    %v2696 = vsub.s32 0, %v2695
    %v2697 = vrot.slane %v2629, %v2696
    %vm2700 = vcmask 1040384
    %v2701 = vsel %vm2700, %v2465, %v2633
    %v2702 = vsel %vm2700, %v2472, %v2637
    %vm2703 = vcmask 1041408
    %v2704 = vsel %vm2703, %v2701, %v2643
    %v2705 = vsel %vm2703, %v2702, %v2647
    %vm2706 = vcmask 1042432
    %v2707 = vsel %vm2706, %v2704, %v2653
    %v2708 = vsel %vm2706, %v2705, %v2657
    %v2709 = vsel %vm137, %v2707, %v2663
    %v2710 = vsel %vm137, %v2708, %v2667
    %vm2711 = vcmask 1044480
    %v2712 = vsel %vm2711, %v2709, %v2673
    %v2713 = vsel %vm2711, %v2710, %v2677
    %vm2714 = vcmask 1045504
    %v2715 = vsel %vm2714, %v2712, %v2683
    %v2716 = vsel %vm2714, %v2713, %v2687
    %vm2717 = vcmask 1046528
    %v2718 = vsel %vm2717, %v2715, %v2693
    %v2719 = vsel %vm2717, %v2716, %v2697
    %v2720 = vld [vmem:[%s8] sm:$0xff]
    %v2721 = vld [vmem:[%s8 + $0x8] sm:$0xff]
    %v2722 = vld [vmem:[%s8 + $0x10] sm:$0xff]
    %v2723 = vld [vmem:[%s8 + $0x18] sm:$0xff]
    %v2724 = vld [vmem:[%s9] sm:$0x1]
    %v2726 = vlaneseq
    %v2727 = vshrl.u32 %v2726, 7
    %v2728 = vsub.s32 0, %v2727
    %v2729 = vrot.slane %v2724, %v2728
    %2733 = vrot.lane.b32.xlu0 %v2718, 64
    %v2734 = vpop.permute.xlu0 %2733
    %2735 = vrot.lane.b32.xlu0 %v2719, 64
    %v2736 = vpop.permute.xlu0 %2735
    %v2737 = vsel %vm222, %v2734, 0
    %v2739 = vsel %vm222, %v2736, 0
    %2741 = vmatprep.subr.mxu0 0.0
    %2742 = vmatpush1.msra.mxu0 0.0
    %2743 = vmatprep.subr.mxu0 0.0
    %2744 = vmatpush1.msra.mxu0 0.0
    %2745 = vmatprep.subr.mxu0 0.0
    %2746 = vmatpush1.msra.mxu0 0.0
    %2747 = vmatprep.subr.mxu0 0.0
    %2748 = vmatpush1.msra.mxu0 0.0
    %2749 = vmatprep.subr.mxu0 0.0
    %2750 = vmatpush1.msra.mxu0 0.0
    %2751 = vmatprep.subr.mxu0 0.0
    %2752 = vmatpush1.msra.mxu0 0.0
    %2753 = vmatprep.subr.mxu0 0.0
    %2754 = vmatpush1.msra.mxu0 0.0
    %2755 = vmatprep.subr.mxu0 0.0
    %2756 = vmatpush1.msra.mxu0 0.0
    %2757 = vmatprep.subr.mxu0 0.0
    %2758 = vmatpush1.msra.mxu0 0.0
    %2759 = vmatprep.subr.mxu0 0.0
    %2760 = vmatpush1.msra.mxu0 0.0
    %2761 = vmatprep.subr.mxu0 0.0
    %2762 = vmatpush1.msra.mxu0 0.0
    %2763 = vmatprep.subr.mxu0 0.0
    %2764 = vmatpush1.msra.mxu0 0.0
    %2765 = vmatprep.subr.mxu0 0.0
    %2766 = vmatpush1.msra.mxu0 %v2723
    %2767 = vmatprep.subr.mxu0 0.0
    %2768 = vmatpush1.msra.mxu0 %v2722
    %2769 = vmatprep.subr.mxu0 0.0
    %2770 = vmatpush1.msra.mxu0 %v2721
    %2771 = vmatprep.subr.mxu0 0.0
    %2772 = vmatpush1.msra.mxu0 %v2720
    %2773 = vmatprep.subr.mxu0 0.0
    %2774 = vmatpush2.msra.mxu0 0.0
    %2775 = vmatprep.subr.mxu0 0.0
    %2776 = vmatpush2.msra.mxu0 0.0
    %2777 = vmatprep.subr.mxu0 0.0
    %2778 = vmatpush2.msra.mxu0 0.0
    %2779 = vmatprep.subr.mxu0 0.0
    %2780 = vmatpush2.msra.mxu0 0.0
    %2781 = vmatprep.subr.mxu0 0.0
    %2782 = vmatpush2.msra.mxu0 0.0
    %2783 = vmatprep.subr.mxu0 0.0
    %2784 = vmatpush2.msra.mxu0 0.0
    %2785 = vmatprep.subr.mxu0 0.0
    %2786 = vmatpush2.msra.mxu0 0.0
    %2787 = vmatprep.subr.mxu0 0.0
    %2788 = vmatpush2.msra.mxu0 0.0
    %2789 = vmatprep.subr.mxu0 0.0
    %2790 = vmatpush2.msra.mxu0 0.0
    %2791 = vmatprep.subr.mxu0 0.0
    %2792 = vmatpush2.msra.mxu0 0.0
    %2793 = vmatprep.subr.mxu0 0.0
    %2794 = vmatpush2.msra.mxu0 0.0
    %2795 = vmatprep.subr.mxu0 0.0
    %2796 = vmatpush2.msra.mxu0 0.0
    %2797 = vmatprep.subr.mxu0 0.0
    %2798 = vmatpush2.msra.mxu0 0.0
    %2799 = vmatprep.subr.mxu0 0.0
    %2800 = vmatpush2.msra.mxu0 0.0
    %2801 = vmatprep.subr.mxu0 0.0
    %2802 = vmatpush2.msra.mxu0 0.0
    %2803 = vmatprep.subr.mxu0 0.0
    %2804 = vmatpush2.msra.mxu0 0.0
    %2805 = vmatprep.mubr.f32.mxu0 0.0
    %2806 = vmatmul.mubr.f32.gmra.mxu0 %v2737
    %v2807 = vpop.f32.mrf.mxu0
    %v2808 = vadd.f32 %v2729, %v2807
    %v2809 = vpop.f32.mrf.mxu0
    %2810 = vmatprep.mubr.f32.mxu0 0.0
    %2811 = vmatmul.mubr.f32.gmra.mxu0 %v2739
    %v2812 = vpop.f32.mrf.mxu0
    %v2813 = vadd.f32 %v2729, %v2812
    %v2814 = vpop.f32.mrf.mxu0
    %2815 = vdwg.mxu0
    %vm2816 = vcmask 80896
    %v2817 = vsel %vm2816, %v2808, -inf
    %v2818 = vrot.slane %v2817, 4
    %v2819 = vmax.f32 %v2817, %v2818
    %v2820 = vrot.slane %v2819, 2
    %v2821 = vmax.f32 %v2819, %v2820
    %v2822 = vrot.slane %v2821, 1
    %v2823 = vmax.f32 %v2821, %v2822
    %v2824 = vsel %vm2816, %v2813, -inf
    %v2825 = vrot.slane %v2824, 4
    %v2826 = vmax.f32 %v2824, %v2825
    %v2827 = vrot.slane %v2826, 2
    %v2828 = vmax.f32 %v2826, %v2827
    %v2829 = vrot.slane %v2828, 1
    %v2830 = vmax.f32 %v2828, %v2829
    %v2831 = vsub.f32 %v2808, %v2823
    %v2832 = vsub.f32 %v2813, %v2830
    %v2833 = vmul.f32 %v2831, 1.442695
    %v2834 = vpow.pop %v2833
    %v2835 = vmul.f32 %v2832, 1.442695
    %v2836 = vpow.pop %v2835
    %v2837 = vsel %vm2816, %v2834, 0.0
    %v2838 = vrot.slane %v2837, 4
    %v2839 = vadd.f32 %v2837, %v2838
    %v2840 = vrot.slane %v2839, 2
    %v2841 = vadd.f32 %v2839, %v2840
    %v2842 = vrot.slane %v2841, 1
    %v2843 = vadd.f32 %v2841, %v2842
    %v2844 = vsel %vm2816, %v2836, 0.0
    %v2845 = vrot.slane %v2844, 4
    %v2846 = vadd.f32 %v2844, %v2845
    %v2847 = vrot.slane %v2846, 2
    %v2848 = vadd.f32 %v2846, %v2847
    %v2849 = vrot.slane %v2848, 1
    %v2850 = vadd.f32 %v2848, %v2849
    %v2851 = vlog2.pop %v2843
    %v2852 = vmul.f32 %v2851, 0.6931472
    %v2853 = vlog2.pop %v2850
    %v2854 = vmul.f32 %v2853, 0.6931472
    %v2855 = vsub.f32 %v2831, %v2852
    %v2856 = vsub.f32 %v2832, %v2854
    %2857 = vst.msk [vmem:[#allocation8] sm:$0xff] %vm2816, %v2855
    %2858 = vst.msk [vmem:[#allocation8 + $0x8] sm:$0xff] %vm2816, %v2856
    // Predicated region
    $region54: #{tpu_custom_call.1} parent=1 // pred_check
      _
    $region55: #{tpu_custom_call.1} parent=1 // pred_check_branch
      %2860 = sbr.rel (0) target = $region57
    $region56: #{tpu_custom_call.1} parent=1 // pred_region
      %s2862 = ssub.s32 256, 256
      %2863 = vsyncadd [#allocation4], %s2862
      %s2864 = sshll.u32 [#allocation8], 4
      %s2865 = int_to_ptr.vmem [resolvable:$true] %s2864
      %2870 = dma.vmem_to_hbm [thread:$0]  %s2865, 256, %s10, [#allocation4], 128, 128, 8
    $region57: #{tpu_custom_call.1} parent=1 // pred_fallthru
      _
    // Predicated region
    $region58: #{tpu_custom_call.1} parent=1 // pred_check
      _
    $region59: #{tpu_custom_call.1} parent=1 // pred_check_branch
      %2872 = sbr.rel (0) target = $region61
    $region60: #{tpu_custom_call.1} parent=1 // pred_region
      %2873 = dma.done [#allocation4], 256
    $region61: #{tpu_custom_call.1} parent=1 // pred_fallthru
      _
    %2874 = vsyncpa [#allocation3], 1
    %2875 = vsyncpa [#allocation6], 1
    %2876 = vsyncpa [#allocation4], 1

</llo_original>
